<compile_context>
chip_gen: v7x
topology: tpu7x:2x2x1
jax: 0.10.0
libtpu: 0.0.40
codegen_flags: <defaults>
</compile_context>

<pallas_src>
import numpy as np
import jax
import jax.numpy as jnp
from jax.experimental import pallas as pl
from jax.experimental.pallas import tpu as pltpu

# Model hyper-parameters (small, consistent with the module)
B = 2          # batch
S = 8          # seq_len
D = 32         # d_model
H = 8          # head_num
DK = D // H    # per-head dim
LN_EPS = 1e-5  # nn.LayerNorm default


def _make_mha_kernel(nb: int):
    """Build kernel handling `nb` batch elements per grid step (nb is static)."""
    scale = float(1.0 / np.sqrt(DK))

    def kernel(xcat_ref, res_ref, wqkv_ref, wo_ref, g_ref, b_ref, o_ref):
        # xcat_ref: [nb*S, 3D]  (Q|K|V concatenated along lanes)
        # res_ref : [nb*S, D]   (residual = Q)
        # wqkv_ref: [H, 3D, 3*DK]  per-head block-diagonal Q/K/V weight
        # wo_ref  : [H, DK, D]     per-head slice of Wo^T
        # g_ref/b_ref: [1, D]      LayerNorm affine
        xcat = xcat_ref[...].astype(jnp.float32)
        resid = res_ref[...].astype(jnp.float32)

        # Fused Q/K/V projection, batched over heads on the MXU:
        #   [H, R, 3D] @ [H, 3D, 3DK] -> [H, R, 3DK]
        # (head split lives in the weight layout, so no per-head lane slicing
        #  of activations is needed in-kernel).
        xb = jnp.broadcast_to(xcat[None], (H,) + xcat.shape)
        qkv = jnp.einsum('hrd,hdk->hrk', xb, wqkv_ref[...],
                         preferred_element_type=jnp.float32)

        # Apply 1/sqrt(dk) once to q (not to each [S,S] score matrix).
        q3 = qkv[:, :, 0:DK] * scale          # [H, R, DK]
        k3 = qkv[:, :, DK:2 * DK]             # [H, R, DK]
        v3 = qkv[:, :, 2 * DK:3 * DK]         # [H, R, DK]
        wo3 = wo_ref[...].astype(jnp.float32)  # [H, DK, D]

        for b in range(nb):                   # nb is 1 or B (tiny, static)
            lo = b * S
            qb = q3[:, lo:lo + S, :]          # [H, S, DK]
            kb = k3[:, lo:lo + S, :]
            vb = v3[:, lo:lo + S, :]

            # Scores + softmax, batched over heads.
            s = jnp.einsum('hqd,hkd->hqk', qb, kb,
                           preferred_element_type=jnp.float32)   # [H, S, S]
            s = s - jnp.max(s, axis=-1, keepdims=True)
            p = jnp.exp(s)
            p = p * pl.reciprocal(jnp.sum(p, axis=-1, keepdims=True),
                                  approx=True)
            # TODO(synk): attention dropout + mask path omitted (eval, mask=None).

            ab = jnp.einsum('hqk,hkd->hqd', p, vb,
                            preferred_element_type=jnp.float32)  # [H, S, DK]

            # Output projection: per-head [S,DK]@[DK,D], summed over heads —
            # mathematically identical to concat(heads) @ Wo^T, with no
            # lane concatenate needed.
            ob = jnp.einsum('hsd,hde->hse', ab, wo3,
                            preferred_element_type=jnp.float32)  # [H, S, D]
            y = jnp.sum(ob, axis=0) + resid[lo:lo + S, :]        # [S, D]
            # TODO(synk): output dropout omitted (eval mode).

            # LayerNorm over d_model
            mu = jnp.mean(y, axis=-1, keepdims=True)
            var = jnp.mean((y - mu) ** 2, axis=-1, keepdims=True)
            yn = (y - mu) * jax.lax.rsqrt(var + LN_EPS)
            o_ref[lo:lo + S, :] = (yn * g_ref[...] + b_ref[...]).astype(o_ref.dtype)

    return kernel


def _tensorcores_per_chip() -> int:
    """Heuristic: v7x has 2 TensorCores per chip, v5e/v6e have 1."""
    try:
        kind = jax.devices()[0].device_kind.lower()
    except Exception:
        return 1
    return 2 if "v7" in kind else 1


def multi_head_attention(Q, K, V, Wq, Wk, Wv, Wo, gamma, beta):
    """Q,K,V: [B,S,D] float32. Wq/Wk/Wv/Wo: [D,D] in PyTorch [out,in] layout.
    gamma/beta: [D] LayerNorm affine params."""
    Bq, Sq, Dq = Q.shape
    assert (Sq, Dq) == (S, D) and Dq % H == 0

    # --- host-side weight prep (precomputable; outside the kernel) ---
    WqT, WkT, WvT, WoT = (jnp.asarray(W).T for W in (Wq, Wk, Wv, Wo))

    def per_head(WT):  # [D, D] -> [H, D, DK] (head-h column block of WT)
        return WT.reshape(D, H, DK).transpose(1, 0, 2)

    wqkv = jnp.zeros((H, 3 * D, 3 * DK), jnp.float32)
    wqkv = wqkv.at[:, 0:D,         0:DK        ].set(per_head(WqT))
    wqkv = wqkv.at[:, D:2 * D,     DK:2 * DK   ].set(per_head(WkT))
    wqkv = wqkv.at[:, 2 * D:3 * D, 2 * DK:3 * DK].set(per_head(WvT))
    wo3 = WoT.reshape(H, DK, D)
    g2 = jnp.asarray(gamma).reshape(1, D)
    b2 = jnp.asarray(beta).reshape(1, D)

    # Activations: Q|K|V concatenated along lanes, batch folded into rows.
    xcat = jnp.concatenate([Q, K, V], axis=-1).reshape(Bq * S, 3 * D)
    resid = Q.reshape(Bq * S, D)

    # Grid policy: collapse batch on 1-TC chips (v5e/v6e); keep grid=(B,)
    # parallel on 2-TC v7x so each core takes one batch element.
    nb = 1 if (_tensorcores_per_chip() > 1 and Bq > 1) else Bq
    grid = (Bq // nb,)
    R = nb * S

    def row_spec(width):
        return pl.BlockSpec((R, width), lambda i: (i, 0))

    out = pl.pallas_call(
        _make_mha_kernel(nb),
        out_shape=jax.ShapeDtypeStruct((Bq * S, D), Q.dtype),
        grid_spec=pltpu.PrefetchScalarGridSpec(
            num_scalar_prefetch=0,
            grid=grid,
            in_specs=[
                row_spec(3 * D),                                        # xcat
                row_spec(D),                                            # residual
                pl.BlockSpec((H, 3 * D, 3 * DK), lambda i: (0, 0, 0)),  # wqkv
                pl.BlockSpec((H, DK, D), lambda i: (0, 0, 0)),          # wo
                pl.BlockSpec((1, D), lambda i: (0, 0)),                 # gamma
                pl.BlockSpec((1, D), lambda i: (0, 0)),                 # beta
            ],
            out_specs=row_spec(D),
        ),
        compiler_params=pltpu.CompilerParams(
            dimension_semantics=("parallel",)),
    )(xcat, resid, wqkv, wo3, g2, b2)
    return out.reshape(Bq, S, D)


def reference_mha(Q, K, V, Wq, Wk, Wv, Wo, gamma, beta):
    """Pure-JAX reference mirroring the PyTorch module (eval mode)."""
    Bq, Sq, Dq = Q.shape

    def proj(x, W):  # nn.Linear (no bias)
        return x @ W.T

    q = proj(Q, Wq).reshape(Bq, Sq, H, DK).transpose(0, 2, 1, 3)
    k = proj(K, Wk).reshape(Bq, Sq, H, DK).transpose(0, 2, 1, 3)
    v = proj(V, Wv).reshape(Bq, Sq, H, DK).transpose(0, 2, 1, 3)
    scores = jnp.einsum('bhqd,bhkd->bhqk', q, k) / np.sqrt(DK)
    p = jax.nn.softmax(scores, axis=-1)
    att = jnp.einsum('bhqk,bhkd->bhqd', p, v)
    att = att.transpose(0, 2, 1, 3).reshape(Bq, Sq, Dq)
    out = proj(att, Wo) + Q
    mu = jnp.mean(out, axis=-1, keepdims=True)
    var = jnp.mean((out - mu) ** 2, axis=-1, keepdims=True)
    return (out - mu) * jax.lax.rsqrt(var + LN_EPS) * gamma + beta


if __name__ == "__main__":
    key = jax.random.PRNGKey(0)
    kq, kk, kv, k1, k2, k3, k4, k5, k6 = jax.random.split(key, 9)

    Q = jax.random.normal(kq, (B, S, D), dtype=jnp.float32)
    K = jax.random.normal(kk, (B, S, D), dtype=jnp.float32)
    V = jax.random.normal(kv, (B, S, D), dtype=jnp.float32)

    # PyTorch Linear weight layout: [out, in]
    Wq = 0.1 * jax.random.normal(k1, (D, D), dtype=jnp.float32)
    Wk = 0.1 * jax.random.normal(k2, (D, D), dtype=jnp.float32)
    Wv = 0.1 * jax.random.normal(k3, (D, D), dtype=jnp.float32)
    Wo = 0.1 * jax.random.normal(k4, (D, D), dtype=jnp.float32)
    gamma = 1.0 + 0.1 * jax.random.normal(k5, (D,), dtype=jnp.float32)
    beta = 0.1 * jax.random.normal(k6, (D,), dtype=jnp.float32)

    out = multi_head_attention(Q, K, V, Wq, Wk, Wv, Wo, gamma, beta)
    out = jax.block_until_ready(out)

    ref = reference_mha(Q, K, V, Wq, Wk, Wv, Wo, gamma, beta)
    # Tolerance allows for the approx (EUP) reciprocal in the softmax.
    np.testing.assert_allclose(np.asarray(out), np.asarray(ref),
                               rtol=2e-3, atol=2e-3)
    print("KERNEL_OK")
</pallas_src>

<mosaic_0001>
module attributes {stable_mosaic.version = 11 : i64} {
  func.func @kernel(%arg0: i32, %arg1: memref<16x96xf32, #tpu.memory_space<vmem>>, %arg2: memref<16x32xf32, #tpu.memory_space<vmem>>, %arg3: memref<8x96x12xf32, #tpu.memory_space<vmem>>, %arg4: memref<8x4x32xf32, #tpu.memory_space<vmem>>, %arg5: memref<1x32xf32, #tpu.memory_space<vmem>>, %arg6: memref<1x32xf32, #tpu.memory_space<vmem>>, %arg7: memref<16x32xf32, #tpu.memory_space<vmem>>) attributes {dimension_semantics = [#tpu.dimension_semantics<parallel>], iteration_bounds = array<i64: 1>, scalar_prefetch = 0 : i64, scratch_operands = 0 : i64, tpu.core_type = #tpu.core_type<tc>, window_params = [{transform_indices = @transform_0, window_bounds = array<i64: 16, 96>}, {transform_indices = @transform_1, window_bounds = array<i64: 16, 32>}, {pipeline_mode = #tpu.pipeline_mode<synchronous>, transform_indices = @transform_2, window_bounds = array<i64: 8, 96, 12>}, {pipeline_mode = #tpu.pipeline_mode<synchronous>, transform_indices = @transform_3, window_bounds = array<i64: 8, 4, 32>}, {pipeline_mode = #tpu.pipeline_mode<synchronous>, transform_indices = @transform_4, window_bounds = array<i64: 1, 32>}, {pipeline_mode = #tpu.pipeline_mode<synchronous>, transform_indices = @transform_5, window_bounds = array<i64: 1, 32>}, {transform_indices = @transform_6, window_bounds = array<i64: 16, 32>}]} {
    %c0 = arith.constant 0 : index
    %c0_0 = arith.constant 0 : index
    %0 = vector.load %arg1[%c0, %c0_0] : memref<16x96xf32, #tpu.memory_space<vmem>>, vector<16x96xf32>
    %c0_1 = arith.constant 0 : index
    %c0_2 = arith.constant 0 : index
    %1 = vector.load %arg2[%c0_1, %c0_2] : memref<16x32xf32, #tpu.memory_space<vmem>>, vector<16x32xf32>
    %2 = vector.shape_cast %0 : vector<16x96xf32> to vector<1x16x96xf32>
    %3 = vector.shape_cast %2 : vector<1x16x96xf32> to vector<1x16x96xf32>
    %4 = vector.broadcast %3 : vector<1x16x96xf32> to vector<8x16x96xf32>
    %c0_3 = arith.constant 0 : index
    %c0_4 = arith.constant 0 : index
    %c0_5 = arith.constant 0 : index
    %5 = vector.load %arg3[%c0_3, %c0_4, %c0_5] : memref<8x96x12xf32, #tpu.memory_space<vmem>>, vector<8x96x12xf32>
    "tpu.trace_start"() <{level = 10 : i32, message = "hrd,hdk->hrk"}> : () -> ()
    %cst = arith.constant dense<0.000000e+00> : vector<8x16x12xf32>
    %6 = tpu.matmul %4, %5, %cst {dimension_numbers = #tpu.dot_dimension_numbers<[2], [1], [1], [2], [0, 0, 0, 1, 1, 2], [0], [0]>} : vector<8x16x96xf32>, vector<8x96x12xf32>, vector<8x16x12xf32> -> vector<8x16x12xf32>
    "tpu.trace_stop"() : () -> ()
    %7 = vector.extract_strided_slice %6 {offsets = [0, 0, 0], sizes = [8, 16, 4], strides = [1, 1, 1]} : vector<8x16x12xf32> to vector<8x16x4xf32>
    %cst_6 = arith.constant 5.000000e-01 : f32
    %8 = vector.broadcast %cst_6 : f32 to vector<8x16x4xf32>
    %9 = arith.mulf %7, %8 : vector<8x16x4xf32>
    %10 = vector.extract_strided_slice %6 {offsets = [0, 0, 4], sizes = [8, 16, 4], strides = [1, 1, 1]} : vector<8x16x12xf32> to vector<8x16x4xf32>
    %11 = vector.extract_strided_slice %6 {offsets = [0, 0, 8], sizes = [8, 16, 4], strides = [1, 1, 1]} : vector<8x16x12xf32> to vector<8x16x4xf32>
    %c0_7 = arith.constant 0 : index
    %c0_8 = arith.constant 0 : index
    %c0_9 = arith.constant 0 : index
    %12 = vector.load %arg4[%c0_7, %c0_8, %c0_9] : memref<8x4x32xf32, #tpu.memory_space<vmem>>, vector<8x4x32xf32>
    %13 = vector.extract_strided_slice %9 {offsets = [0, 0, 0], sizes = [8, 8, 4], strides = [1, 1, 1]} : vector<8x16x4xf32> to vector<8x8x4xf32>
    %14 = vector.extract_strided_slice %10 {offsets = [0, 0, 0], sizes = [8, 8, 4], strides = [1, 1, 1]} : vector<8x16x4xf32> to vector<8x8x4xf32>
    %15 = vector.extract_strided_slice %11 {offsets = [0, 0, 0], sizes = [8, 8, 4], strides = [1, 1, 1]} : vector<8x16x4xf32> to vector<8x8x4xf32>
    "tpu.trace_start"() <{level = 10 : i32, message = "hqd,hkd->hqk"}> : () -> ()
    %cst_10 = arith.constant dense<0.000000e+00> : vector<8x8x8xf32>
    %16 = tpu.matmul %13, %14, %cst_10 {dimension_numbers = #tpu.dot_dimension_numbers<[2], [2], [1], [1], [0, 0, 0, 1, 1, 1], [0], [0]>} : vector<8x8x4xf32>, vector<8x8x4xf32>, vector<8x8x8xf32> -> vector<8x8x8xf32>
    "tpu.trace_stop"() : () -> ()
    %cst_11 = arith.constant dense<0xFF800000> : vector<8x8xf32>
    %17 = vector.multi_reduction <maximumf>, %16, %cst_11 [2] : vector<8x8x8xf32> to vector<8x8xf32>
    %18 = vector.shape_cast %17 : vector<8x8xf32> to vector<8x8x1xf32>
    %19 = vector.broadcast %18 : vector<8x8x1xf32> to vector<8x8x8xf32>
    %20 = arith.subf %16, %19 : vector<8x8x8xf32>
    %21 = math.exp %20 : vector<8x8x8xf32>
    %cst_12 = arith.constant dense<0.000000e+00> : vector<8x8xf32>
    %22 = vector.multi_reduction <add>, %21, %cst_12 [2] : vector<8x8x8xf32> to vector<8x8xf32>
    %23 = vector.shape_cast %22 : vector<8x8xf32> to vector<8x8x1xf32>
    %24 = tpu.reciprocal %23 {approx = true} : vector<8x8x1xf32> -> vector<8x8x1xf32>
    %25 = vector.broadcast %24 : vector<8x8x1xf32> to vector<8x8x8xf32>
    %26 = arith.mulf %21, %25 : vector<8x8x8xf32>
    "tpu.trace_start"() <{level = 10 : i32, message = "hqk,hkd->hqd"}> : () -> ()
    %cst_13 = arith.constant dense<0.000000e+00> : vector<8x8x4xf32>
    %27 = tpu.matmul %26, %15, %cst_13 {dimension_numbers = #tpu.dot_dimension_numbers<[2], [1], [1], [2], [0, 0, 0, 1, 1, 2], [0], [0]>} : vector<8x8x8xf32>, vector<8x8x4xf32>, vector<8x8x4xf32> -> vector<8x8x4xf32>
    "tpu.trace_stop"() : () -> ()
    "tpu.trace_start"() <{level = 10 : i32, message = "hsd,hde->hse"}> : () -> ()
    %cst_14 = arith.constant dense<0.000000e+00> : vector<8x8x32xf32>
    %28 = tpu.matmul %27, %12, %cst_14 {dimension_numbers = #tpu.dot_dimension_numbers<[2], [1], [1], [2], [0, 0, 0, 1, 1, 2], [0], [0]>} : vector<8x8x4xf32>, vector<8x4x32xf32>, vector<8x8x32xf32> -> vector<8x8x32xf32>
    "tpu.trace_stop"() : () -> ()
    %cst_15 = arith.constant dense<0.000000e+00> : vector<8x32xf32>
    %29 = vector.multi_reduction <add>, %28, %cst_15 [0] : vector<8x8x32xf32> to vector<8x32xf32>
    %30 = vector.extract_strided_slice %1 {offsets = [0, 0], sizes = [8, 32], strides = [1, 1]} : vector<16x32xf32> to vector<8x32xf32>
    %31 = arith.addf %29, %30 : vector<8x32xf32>
    %cst_16 = arith.constant dense<0.000000e+00> : vector<8xf32>
    %32 = vector.multi_reduction <add>, %31, %cst_16 [1] : vector<8x32xf32> to vector<8xf32>
    %33 = vector.shape_cast %32 : vector<8xf32> to vector<8x1xf32>
    %cst_17 = arith.constant 3.200000e+01 : f32
    %34 = vector.broadcast %cst_17 : f32 to vector<8x1xf32>
    %35 = arith.divf %33, %34 : vector<8x1xf32>
    %36 = vector.broadcast %35 : vector<8x1xf32> to vector<8x32xf32>
    %37 = arith.subf %31, %36 : vector<8x32xf32>
    %38 = arith.mulf %37, %37 : vector<8x32xf32>
    %cst_18 = arith.constant dense<0.000000e+00> : vector<8xf32>
    %39 = vector.multi_reduction <add>, %38, %cst_18 [1] : vector<8x32xf32> to vector<8xf32>
    %40 = vector.shape_cast %39 : vector<8xf32> to vector<8x1xf32>
    %cst_19 = arith.constant 3.200000e+01 : f32
    %41 = vector.broadcast %cst_19 : f32 to vector<8x1xf32>
    %42 = arith.divf %40, %41 : vector<8x1xf32>
    %43 = vector.broadcast %35 : vector<8x1xf32> to vector<8x32xf32>
    %44 = arith.subf %31, %43 : vector<8x32xf32>
    %cst_20 = arith.constant 9.99999974E-6 : f32
    %45 = vector.broadcast %cst_20 : f32 to vector<8x1xf32>
    %46 = arith.addf %42, %45 : vector<8x1xf32>
    %47 = math.rsqrt %46 : vector<8x1xf32>
    %48 = vector.broadcast %47 : vector<8x1xf32> to vector<8x32xf32>
    %49 = arith.mulf %44, %48 : vector<8x32xf32>
    %c0_21 = arith.constant 0 : index
    %c0_22 = arith.constant 0 : index
    %50 = vector.load %arg5[%c0_21, %c0_22] : memref<1x32xf32, #tpu.memory_space<vmem>>, vector<1x32xf32>
    %51 = vector.broadcast %50 : vector<1x32xf32> to vector<8x32xf32>
    %52 = arith.mulf %49, %51 : vector<8x32xf32>
    %c0_23 = arith.constant 0 : index
    %c0_24 = arith.constant 0 : index
    %53 = vector.load %arg6[%c0_23, %c0_24] : memref<1x32xf32, #tpu.memory_space<vmem>>, vector<1x32xf32>
    %54 = vector.broadcast %53 : vector<1x32xf32> to vector<8x32xf32>
    %55 = arith.addf %52, %54 : vector<8x32xf32>
    %c0_25 = arith.constant 0 : index
    %c0_26 = arith.constant 0 : index
    %56 = vector.load %arg7[%c0_25, %c0_26] : memref<16x32xf32, #tpu.memory_space<vmem>>, vector<8x32xf32>
    tpu.vector_store %arg7[%c0_25, %c0_26], %55 {strides = array<i32>} : memref<16x32xf32, #tpu.memory_space<vmem>>, vector<8x32xf32>,
    %57 = vector.extract_strided_slice %9 {offsets = [0, 8, 0], sizes = [8, 8, 4], strides = [1, 1, 1]} : vector<8x16x4xf32> to vector<8x8x4xf32>
    %58 = vector.extract_strided_slice %10 {offsets = [0, 8, 0], sizes = [8, 8, 4], strides = [1, 1, 1]} : vector<8x16x4xf32> to vector<8x8x4xf32>
    %59 = vector.extract_strided_slice %11 {offsets = [0, 8, 0], sizes = [8, 8, 4], strides = [1, 1, 1]} : vector<8x16x4xf32> to vector<8x8x4xf32>
    "tpu.trace_start"() <{level = 10 : i32, message = "hqd,hkd->hqk"}> : () -> ()
    %cst_27 = arith.constant dense<0.000000e+00> : vector<8x8x8xf32>
    %60 = tpu.matmul %57, %58, %cst_27 {dimension_numbers = #tpu.dot_dimension_numbers<[2], [2], [1], [1], [0, 0, 0, 1, 1, 1], [0], [0]>} : vector<8x8x4xf32>, vector<8x8x4xf32>, vector<8x8x8xf32> -> vector<8x8x8xf32>
    "tpu.trace_stop"() : () -> ()
    %cst_28 = arith.constant dense<0xFF800000> : vector<8x8xf32>
    %61 = vector.multi_reduction <maximumf>, %60, %cst_28 [2] : vector<8x8x8xf32> to vector<8x8xf32>
    %62 = vector.shape_cast %61 : vector<8x8xf32> to vector<8x8x1xf32>
    %63 = vector.broadcast %62 : vector<8x8x1xf32> to vector<8x8x8xf32>
    %64 = arith.subf %60, %63 : vector<8x8x8xf32>
    %65 = math.exp %64 : vector<8x8x8xf32>
    %cst_29 = arith.constant dense<0.000000e+00> : vector<8x8xf32>
    %66 = vector.multi_reduction <add>, %65, %cst_29 [2] : vector<8x8x8xf32> to vector<8x8xf32>
    %67 = vector.shape_cast %66 : vector<8x8xf32> to vector<8x8x1xf32>
    %68 = tpu.reciprocal %67 {approx = true} : vector<8x8x1xf32> -> vector<8x8x1xf32>
    %69 = vector.broadcast %68 : vector<8x8x1xf32> to vector<8x8x8xf32>
    %70 = arith.mulf %65, %69 : vector<8x8x8xf32>
    "tpu.trace_start"() <{level = 10 : i32, message = "hqk,hkd->hqd"}> : () -> ()
    %cst_30 = arith.constant dense<0.000000e+00> : vector<8x8x4xf32>
    %71 = tpu.matmul %70, %59, %cst_30 {dimension_numbers = #tpu.dot_dimension_numbers<[2], [1], [1], [2], [0, 0, 0, 1, 1, 2], [0], [0]>} : vector<8x8x8xf32>, vector<8x8x4xf32>, vector<8x8x4xf32> -> vector<8x8x4xf32>
    "tpu.trace_stop"() : () -> ()
    "tpu.trace_start"() <{level = 10 : i32, message = "hsd,hde->hse"}> : () -> ()
    %cst_31 = arith.constant dense<0.000000e+00> : vector<8x8x32xf32>
    %72 = tpu.matmul %71, %12, %cst_31 {dimension_numbers = #tpu.dot_dimension_numbers<[2], [1], [1], [2], [0, 0, 0, 1, 1, 2], [0], [0]>} : vector<8x8x4xf32>, vector<8x4x32xf32>, vector<8x8x32xf32> -> vector<8x8x32xf32>
    "tpu.trace_stop"() : () -> ()
    %cst_32 = arith.constant dense<0.000000e+00> : vector<8x32xf32>
    %73 = vector.multi_reduction <add>, %72, %cst_32 [0] : vector<8x8x32xf32> to vector<8x32xf32>
    %74 = vector.extract_strided_slice %1 {offsets = [8, 0], sizes = [8, 32], strides = [1, 1]} : vector<16x32xf32> to vector<8x32xf32>
    %75 = arith.addf %73, %74 : vector<8x32xf32>
    %cst_33 = arith.constant dense<0.000000e+00> : vector<8xf32>
    %76 = vector.multi_reduction <add>, %75, %cst_33 [1] : vector<8x32xf32> to vector<8xf32>
    %77 = vector.shape_cast %76 : vector<8xf32> to vector<8x1xf32>
    %cst_34 = arith.constant 3.200000e+01 : f32
    %78 = vector.broadcast %cst_34 : f32 to vector<8x1xf32>
    %79 = arith.divf %77, %78 : vector<8x1xf32>
    %80 = vector.broadcast %79 : vector<8x1xf32> to vector<8x32xf32>
    %81 = arith.subf %75, %80 : vector<8x32xf32>
    %82 = arith.mulf %81, %81 : vector<8x32xf32>
    %cst_35 = arith.constant dense<0.000000e+00> : vector<8xf32>
    %83 = vector.multi_reduction <add>, %82, %cst_35 [1] : vector<8x32xf32> to vector<8xf32>
    %84 = vector.shape_cast %83 : vector<8xf32> to vector<8x1xf32>
    %cst_36 = arith.constant 3.200000e+01 : f32
    %85 = vector.broadcast %cst_36 : f32 to vector<8x1xf32>
    %86 = arith.divf %84, %85 : vector<8x1xf32>
    %87 = vector.broadcast %79 : vector<8x1xf32> to vector<8x32xf32>
    %88 = arith.subf %75, %87 : vector<8x32xf32>
    %cst_37 = arith.constant 9.99999974E-6 : f32
    %89 = vector.broadcast %cst_37 : f32 to vector<8x1xf32>
    %90 = arith.addf %86, %89 : vector<8x1xf32>
    %91 = math.rsqrt %90 : vector<8x1xf32>
    %92 = vector.broadcast %91 : vector<8x1xf32> to vector<8x32xf32>
    %93 = arith.mulf %88, %92 : vector<8x32xf32>
    %c0_38 = arith.constant 0 : index
    %c0_39 = arith.constant 0 : index
    %94 = vector.load %arg5[%c0_38, %c0_39] : memref<1x32xf32, #tpu.memory_space<vmem>>, vector<1x32xf32>
    %95 = vector.broadcast %94 : vector<1x32xf32> to vector<8x32xf32>
    %96 = arith.mulf %93, %95 : vector<8x32xf32>
    %c0_40 = arith.constant 0 : index
    %c0_41 = arith.constant 0 : index
    %97 = vector.load %arg6[%c0_40, %c0_41] : memref<1x32xf32, #tpu.memory_space<vmem>>, vector<1x32xf32>
    %98 = vector.broadcast %97 : vector<1x32xf32> to vector<8x32xf32>
    %99 = arith.addf %96, %98 : vector<8x32xf32>
    %c8 = arith.constant 8 : index
    %c0_42 = arith.constant 0 : index
    %100 = vector.load %arg7[%c8, %c0_42] : memref<16x32xf32, #tpu.memory_space<vmem>>, vector<8x32xf32>
    tpu.vector_store %arg7[%c8, %c0_42], %99 {strides = array<i32>} : memref<16x32xf32, #tpu.memory_space<vmem>>, vector<8x32xf32>,
    return
  }
  func.func @transform_0(%arg0: i32) -> (i32, i32) {
    %c0_i32 = arith.constant 0 : i32
    %c0_i32_0 = arith.constant 0 : i32
    return %arg0, %c0_i32 : i32, i32
  }
  func.func @transform_1(%arg0: i32) -> (i32, i32) {
    %c0_i32 = arith.constant 0 : i32
    %c0_i32_0 = arith.constant 0 : i32
    return %arg0, %c0_i32 : i32, i32
  }
  func.func @transform_2(%arg0: i32) -> (i32, i32, i32) {
    %c0_i32 = arith.constant 0 : i32
    %c0_i32_0 = arith.constant 0 : i32
    %c0_i32_1 = arith.constant 0 : i32
    %c0_i32_2 = arith.constant 0 : i32
    return %c0_i32, %c0_i32_0, %c0_i32_1 : i32, i32, i32
  }
  func.func @transform_3(%arg0: i32) -> (i32, i32, i32) {
    %c0_i32 = arith.constant 0 : i32
    %c0_i32_0 = arith.constant 0 : i32
    %c0_i32_1 = arith.constant 0 : i32
    %c0_i32_2 = arith.constant 0 : i32
    return %c0_i32, %c0_i32_0, %c0_i32_1 : i32, i32, i32
  }
  func.func @transform_4(%arg0: i32) -> (i32, i32) {
    %c0_i32 = arith.constant 0 : i32
    %c0_i32_0 = arith.constant 0 : i32
    %c0_i32_1 = arith.constant 0 : i32
    return %c0_i32, %c0_i32_0 : i32, i32
  }
  func.func @transform_5(%arg0: i32) -> (i32, i32) {
    %c0_i32 = arith.constant 0 : i32
    %c0_i32_0 = arith.constant 0 : i32
    %c0_i32_1 = arith.constant 0 : i32
    return %c0_i32, %c0_i32_0 : i32, i32
  }
  func.func @transform_6(%arg0: i32) -> (i32, i32) {
    %c0_i32 = arith.constant 0 : i32
    %c0_i32_0 = arith.constant 0 : i32
    return %arg0, %c0_i32 : i32, i32
  }
}

</mosaic_0001>

<llo_original>
// kernel: tpu_custom_call.1
$region0: #{tpu_custom_call.1}
  #allocation0 [shape = 'u32[]', space=smem, size = 0x4, offset = 0x4, fixed_abs, tag = 'smem constant byte address 0x4 - core index']
  #allocation1 [shape = 'u32[144,128]{1,0:T(1,128)}', space=vmem, size = 0x12000, scoped, tag = 'internal scratch']
  %s0 = inlined_call_operand.vmem [shape: f32[16,96], index: 0, kind: input, shape index: {}]
  %s1 = inlined_call_operand.vmem [shape: f32[16,32], index: 1, kind: input, shape index: {}]
  %s2 = inlined_call_operand.vmem [shape: f32[8,96,12], index: 2, kind: input, shape index: {}]
  %s3 = inlined_call_operand.vmem [shape: f32[8,4,32], index: 3, kind: input, shape index: {}]
  %s4 = inlined_call_operand.vmem [shape: f32[1,32], index: 4, kind: input, shape index: {}]
  %s5 = inlined_call_operand.vmem [shape: f32[1,32], index: 5, kind: input, shape index: {}]
  %s6 = inlined_call_operand.hbm [shape: f32[16,32], index: 6, kind: output, shape index: {}]
  %s7 = sld [smem:[#allocation0]]
  $region34: #{tpu_custom_call.1} parent=0
    _
  %s9 = ssub.s32 1, %s7
  %s10 = scalar_select 0, %s9, %s7
  $region1: #{tpu_custom_call.1} parent=0
    #allocation2 [shape = 'u8[8192]{0}', space=vmem, size = 0x2000, scoped, tag = 'output window, operand 0, single buffered']
    #allocation3 [shape = 's32[1]{0}', space=sflag, size = 0x4, scoped, tag = 'scoped memory for tpu_custom_call.1']
    %11 = vsyncpa [#allocation3], 0
    // Predicated region
    $region2: #{tpu_custom_call.1} parent=1 // pred_check
      _
    $region3: #{tpu_custom_call.1} parent=1 // pred_check_branch
      %13 = sbr.rel (0) target = $region5
    $region4: #{tpu_custom_call.1} parent=1 // pred_region
      _
    $region5: #{tpu_custom_call.1} parent=1 // pred_fallthru
      _
    // Predicated region
    $region6: #{tpu_custom_call.1} parent=1 // pred_check
      _
    $region7: #{tpu_custom_call.1} parent=1 // pred_check_branch
      %15 = sbr.rel (0) target = $region9
    $region8: #{tpu_custom_call.1} parent=1 // pred_region
      _
    $region9: #{tpu_custom_call.1} parent=1 // pred_fallthru
      _
    // Predicated region
    $region10: #{tpu_custom_call.1} parent=1 // pred_check
      _
    $region11: #{tpu_custom_call.1} parent=1 // pred_check_branch
      %17 = sbr.rel (0) target = $region13
    $region12: #{tpu_custom_call.1} parent=1 // pred_region
      _
    $region13: #{tpu_custom_call.1} parent=1 // pred_fallthru
      _
    // Predicated region
    $region14: #{tpu_custom_call.1} parent=1 // pred_check
      _
    $region15: #{tpu_custom_call.1} parent=1 // pred_check_branch
      %19 = sbr.rel (0) target = $region17
    $region16: #{tpu_custom_call.1} parent=1 // pred_region
      _
    $region17: #{tpu_custom_call.1} parent=1 // pred_fallthru
      _
    // Predicated region
    $region18: #{tpu_custom_call.1} parent=1 // pred_check
      _
    $region19: #{tpu_custom_call.1} parent=1 // pred_check_branch
      %21 = sbr.rel (0) target = $region21
    $region20: #{tpu_custom_call.1} parent=1 // pred_region
      _
    $region21: #{tpu_custom_call.1} parent=1 // pred_fallthru
      _
    // Predicated region
    $region22: #{tpu_custom_call.1} parent=1 // pred_check
      _
    $region23: #{tpu_custom_call.1} parent=1 // pred_check_branch
      %23 = sbr.rel (0) target = $region25
    $region24: #{tpu_custom_call.1} parent=1 // pred_region
      _
    $region25: #{tpu_custom_call.1} parent=1 // pred_fallthru
      _
    %v24 = vld [vmem:[%s0] sm:$0xff]
    %v25 = vld [vmem:[%s0 + $0x8] sm:$0xff]
    %v26 = vld [vmem:[%s1] sm:$0xff]
    %v27 = vld [vmem:[%s1 + $0x8] sm:$0xff]
    %v28 = vld [vmem:[%s2] sm:$0xff]
    %v29 = vld [vmem:[%s2 + $0x8] sm:$0xff]
    %v30 = vld [vmem:[%s2 + $0x10] sm:$0xff]
    %v31 = vld [vmem:[%s2 + $0x18] sm:$0xff]
    %v32 = vld [vmem:[%s2 + $0x20] sm:$0xff]
    %v33 = vld [vmem:[%s2 + $0x28] sm:$0xff]
    %v34 = vld [vmem:[%s2 + $0x30] sm:$0xff]
    %v35 = vld [vmem:[%s2 + $0x38] sm:$0xff]
    %v36 = vld [vmem:[%s2 + $0x40] sm:$0xff]
    %v37 = vld [vmem:[%s2 + $0x48] sm:$0xff]
    %v38 = vld [vmem:[%s2 + $0x50] sm:$0xff]
    %v39 = vld [vmem:[%s2 + $0x58] sm:$0xff]
    %v40 = vld [vmem:[%s2 + $0x60] sm:$0xff]
    %v41 = vld [vmem:[%s2 + $0x68] sm:$0xff]
    %v42 = vld [vmem:[%s2 + $0x70] sm:$0xff]
    %v43 = vld [vmem:[%s2 + $0x78] sm:$0xff]
    %v44 = vld [vmem:[%s2 + $0x80] sm:$0xff]
    %v45 = vld [vmem:[%s2 + $0x88] sm:$0xff]
    %v46 = vld [vmem:[%s2 + $0x90] sm:$0xff]
    %v47 = vld [vmem:[%s2 + $0x98] sm:$0xff]
    %v48 = vld [vmem:[%s2 + $0xa0] sm:$0xff]
    %v49 = vld [vmem:[%s2 + $0xa8] sm:$0xff]
    %v50 = vld [vmem:[%s2 + $0xb0] sm:$0xff]
    %v51 = vld [vmem:[%s2 + $0xb8] sm:$0xff]
    %v52 = vld [vmem:[%s2 + $0xc0] sm:$0xff]
    %v53 = vld [vmem:[%s2 + $0xc8] sm:$0xff]
    %v54 = vld [vmem:[%s2 + $0xd0] sm:$0xff]
    %v55 = vld [vmem:[%s2 + $0xd8] sm:$0xff]
    %v56 = vld [vmem:[%s2 + $0xe0] sm:$0xff]
    %v57 = vld [vmem:[%s2 + $0xe8] sm:$0xff]
    %v58 = vld [vmem:[%s2 + $0xf0] sm:$0xff]
    %v59 = vld [vmem:[%s2 + $0xf8] sm:$0xff]
    %v60 = vld [vmem:[%s2 + $0x100] sm:$0xff]
    %v61 = vld [vmem:[%s2 + $0x108] sm:$0xff]
    %v62 = vld [vmem:[%s2 + $0x110] sm:$0xff]
    %v63 = vld [vmem:[%s2 + $0x118] sm:$0xff]
    %v64 = vld [vmem:[%s2 + $0x120] sm:$0xff]
    %v65 = vld [vmem:[%s2 + $0x128] sm:$0xff]
    %v66 = vld [vmem:[%s2 + $0x130] sm:$0xff]
    %v67 = vld [vmem:[%s2 + $0x138] sm:$0xff]
    %v68 = vld [vmem:[%s2 + $0x140] sm:$0xff]
    %v69 = vld [vmem:[%s2 + $0x148] sm:$0xff]
    %v70 = vld [vmem:[%s2 + $0x150] sm:$0xff]
    %v71 = vld [vmem:[%s2 + $0x158] sm:$0xff]
    %v72 = vld [vmem:[%s2 + $0x160] sm:$0xff]
    %v73 = vld [vmem:[%s2 + $0x168] sm:$0xff]
    %v74 = vld [vmem:[%s2 + $0x170] sm:$0xff]
    %v75 = vld [vmem:[%s2 + $0x178] sm:$0xff]
    %v76 = vld [vmem:[%s2 + $0x180] sm:$0xff]
    %v77 = vld [vmem:[%s2 + $0x188] sm:$0xff]
    %v78 = vld [vmem:[%s2 + $0x190] sm:$0xff]
    %v79 = vld [vmem:[%s2 + $0x198] sm:$0xff]
    %v80 = vld [vmem:[%s2 + $0x1a0] sm:$0xff]
    %v81 = vld [vmem:[%s2 + $0x1a8] sm:$0xff]
    %v82 = vld [vmem:[%s2 + $0x1b0] sm:$0xff]
    %v83 = vld [vmem:[%s2 + $0x1b8] sm:$0xff]
    %v84 = vld [vmem:[%s2 + $0x1c0] sm:$0xff]
    %v85 = vld [vmem:[%s2 + $0x1c8] sm:$0xff]
    %v86 = vld [vmem:[%s2 + $0x1d0] sm:$0xff]
    %v87 = vld [vmem:[%s2 + $0x1d8] sm:$0xff]
    %v88 = vld [vmem:[%s2 + $0x1e0] sm:$0xff]
    %v89 = vld [vmem:[%s2 + $0x1e8] sm:$0xff]
    %v90 = vld [vmem:[%s2 + $0x1f0] sm:$0xff]
    %v91 = vld [vmem:[%s2 + $0x1f8] sm:$0xff]
    %v92 = vld [vmem:[%s2 + $0x200] sm:$0xff]
    %v93 = vld [vmem:[%s2 + $0x208] sm:$0xff]
    %v94 = vld [vmem:[%s2 + $0x210] sm:$0xff]
    %v95 = vld [vmem:[%s2 + $0x218] sm:$0xff]
    %v96 = vld [vmem:[%s2 + $0x220] sm:$0xff]
    %v97 = vld [vmem:[%s2 + $0x228] sm:$0xff]
    %v98 = vld [vmem:[%s2 + $0x230] sm:$0xff]
    %v99 = vld [vmem:[%s2 + $0x238] sm:$0xff]
    %v100 = vld [vmem:[%s2 + $0x240] sm:$0xff]
    %v101 = vld [vmem:[%s2 + $0x248] sm:$0xff]
    %v102 = vld [vmem:[%s2 + $0x250] sm:$0xff]
    %v103 = vld [vmem:[%s2 + $0x258] sm:$0xff]
    %v104 = vld [vmem:[%s2 + $0x260] sm:$0xff]
    %v105 = vld [vmem:[%s2 + $0x268] sm:$0xff]
    %v106 = vld [vmem:[%s2 + $0x270] sm:$0xff]
    %v107 = vld [vmem:[%s2 + $0x278] sm:$0xff]
    %v108 = vld [vmem:[%s2 + $0x280] sm:$0xff]
    %v109 = vld [vmem:[%s2 + $0x288] sm:$0xff]
    %v110 = vld [vmem:[%s2 + $0x290] sm:$0xff]
    %v111 = vld [vmem:[%s2 + $0x298] sm:$0xff]
    %v112 = vld [vmem:[%s2 + $0x2a0] sm:$0xff]
    %v113 = vld [vmem:[%s2 + $0x2a8] sm:$0xff]
    %v114 = vld [vmem:[%s2 + $0x2b0] sm:$0xff]
    %v115 = vld [vmem:[%s2 + $0x2b8] sm:$0xff]
    %v116 = vld [vmem:[%s2 + $0x2c0] sm:$0xff]
    %v117 = vld [vmem:[%s2 + $0x2c8] sm:$0xff]
    %v118 = vld [vmem:[%s2 + $0x2d0] sm:$0xff]
    %v119 = vld [vmem:[%s2 + $0x2d8] sm:$0xff]
    %v120 = vld [vmem:[%s2 + $0x2e0] sm:$0xff]
    %v121 = vld [vmem:[%s2 + $0x2e8] sm:$0xff]
    %v122 = vld [vmem:[%s2 + $0x2f0] sm:$0xff]
    %v123 = vld [vmem:[%s2 + $0x2f8] sm:$0xff]
    %vm124 = vcmask 785408
    %v126 = vsel %vm124, %v24, 0
    %v129 = vsel %vm124, %v25, 0
    %131 = vmatprep.subr.mxu0 0.0
    %132 = vmatpush1.msra.mxu0 %v28
    %133 = vmatprep.subr.mxu0 0.0
    %134 = vmatpush1.msra.mxu0 %v29
    %135 = vmatprep.subr.mxu0 0.0
    %136 = vmatpush1.msra.mxu0 %v30
    %137 = vmatprep.subr.mxu0 0.0
    %138 = vmatpush1.msra.mxu0 %v31
    %139 = vmatprep.subr.mxu0 0.0
    %140 = vmatpush1.msra.mxu0 %v32
    %141 = vmatprep.subr.mxu0 0.0
    %142 = vmatpush1.msra.mxu0 %v33
    %143 = vmatprep.subr.mxu0 0.0
    %144 = vmatpush1.msra.mxu0 %v34
    %145 = vmatprep.subr.mxu0 0.0
    %146 = vmatpush1.msra.mxu0 %v35
    %147 = vmatprep.subr.mxu0 0.0
    %148 = vmatpush1.msra.mxu0 %v36
    %149 = vmatprep.subr.mxu0 0.0
    %150 = vmatpush1.msra.mxu0 %v37
    %151 = vmatprep.subr.mxu0 0.0
    %152 = vmatpush1.msra.mxu0 %v38
    %153 = vmatprep.subr.mxu0 0.0
    %154 = vmatpush1.msra.mxu0 %v39
    %155 = vmatprep.subr.mxu0 0.0
    %156 = vmatpush1.msra.mxu0 0.0
    %157 = vmatprep.subr.mxu0 0.0
    %158 = vmatpush1.msra.mxu0 0.0
    %159 = vmatprep.subr.mxu0 0.0
    %160 = vmatpush1.msra.mxu0 0.0
    %161 = vmatprep.subr.mxu0 0.0
    %162 = vmatpush1.msra.mxu0 0.0
    %163 = vmatprep.subr.mxu0 0.0
    %164 = vmatpush1.msra.mxu0 0.0
    %165 = vmatprep.subr.mxu0 0.0
    %166 = vmatpush1.msra.mxu0 0.0
    %167 = vmatprep.subr.mxu0 0.0
    %168 = vmatpush1.msra.mxu0 0.0
    %169 = vmatprep.subr.mxu0 0.0
    %170 = vmatpush1.msra.mxu0 0.0
    %171 = vmatprep.subr.mxu0 0.0
    %172 = vmatpush1.msra.mxu0 0.0
    %173 = vmatprep.subr.mxu0 0.0
    %174 = vmatpush1.msra.mxu0 0.0
    %175 = vmatprep.subr.mxu0 0.0
    %176 = vmatpush1.msra.mxu0 0.0
    %177 = vmatprep.subr.mxu0 0.0
    %178 = vmatpush1.msra.mxu0 0.0
    %179 = vmatprep.subr.mxu0 0.0
    %180 = vmatpush1.msra.mxu0 0.0
    %181 = vmatprep.subr.mxu0 0.0
    %182 = vmatpush1.msra.mxu0 0.0
    %183 = vmatprep.subr.mxu0 0.0
    %184 = vmatpush1.msra.mxu0 0.0
    %185 = vmatprep.subr.mxu0 0.0
    %186 = vmatpush1.msra.mxu0 0.0
    %187 = vmatprep.subr.mxu0 0.0
    %188 = vmatpush1.msra.mxu0 0.0
    %189 = vmatprep.subr.mxu0 0.0
    %190 = vmatpush1.msra.mxu0 0.0
    %191 = vmatprep.subr.mxu0 0.0
    %192 = vmatpush1.msra.mxu0 0.0
    %193 = vmatprep.subr.mxu0 0.0
    %194 = vmatpush1.msra.mxu0 0.0
    %195 = vmatprep.mubr.f32.mxu0 0.0
    %196 = vmatmul.mubr.f32.gmra.mrb[0].mxu0 %v126
    %v197 = vpop.f32.mrb[0].mxu0
    %v198 = vadd.f32 0.0, %v197
    %v199 = vpop.f32.mrb[0].mxu0
    %200 = vmatprep.mubr.f32.mxu0 0.0
    %201 = vmatmul.mubr.f32.gmra.mrb[0].mxu0 %v129
    %v202 = vpop.f32.mrb[0].mxu0
    %v203 = vadd.f32 0.0, %v202
    %v204 = vpop.f32.mrb[0].mxu0
    %205 = vdwg.mxu0
    %206 = vmatprep.subr.mxu0 0.0
    %207 = vmatpush1.msra.mxu0 %v40
    %208 = vmatprep.subr.mxu0 0.0
    %209 = vmatpush1.msra.mxu0 %v41
    %210 = vmatprep.subr.mxu0 0.0
    %211 = vmatpush1.msra.mxu0 %v42
    %212 = vmatprep.subr.mxu0 0.0
    %213 = vmatpush1.msra.mxu0 %v43
    %214 = vmatprep.subr.mxu0 0.0
    %215 = vmatpush1.msra.mxu0 %v44
    %216 = vmatprep.subr.mxu0 0.0
    %217 = vmatpush1.msra.mxu0 %v45
    %218 = vmatprep.subr.mxu0 0.0
    %219 = vmatpush1.msra.mxu0 %v46
    %220 = vmatprep.subr.mxu0 0.0
    %221 = vmatpush1.msra.mxu0 %v47
    %222 = vmatprep.subr.mxu0 0.0
    %223 = vmatpush1.msra.mxu0 %v48
    %224 = vmatprep.subr.mxu0 0.0
    %225 = vmatpush1.msra.mxu0 %v49
    %226 = vmatprep.subr.mxu0 0.0
    %227 = vmatpush1.msra.mxu0 %v50
    %228 = vmatprep.subr.mxu0 0.0
    %229 = vmatpush1.msra.mxu0 %v51
    %230 = vmatprep.subr.mxu0 0.0
    %231 = vmatpush1.msra.mxu0 0.0
    %232 = vmatprep.subr.mxu0 0.0
    %233 = vmatpush1.msra.mxu0 0.0
    %234 = vmatprep.subr.mxu0 0.0
    %235 = vmatpush1.msra.mxu0 0.0
    %236 = vmatprep.subr.mxu0 0.0
    %237 = vmatpush1.msra.mxu0 0.0
    %238 = vmatprep.subr.mxu0 0.0
    %239 = vmatpush1.msra.mxu0 0.0
    %240 = vmatprep.subr.mxu0 0.0
    %241 = vmatpush1.msra.mxu0 0.0
    %242 = vmatprep.subr.mxu0 0.0
    %243 = vmatpush1.msra.mxu0 0.0
    %244 = vmatprep.subr.mxu0 0.0
    %245 = vmatpush1.msra.mxu0 0.0
    %246 = vmatprep.subr.mxu0 0.0
    %247 = vmatpush1.msra.mxu0 0.0
    %248 = vmatprep.subr.mxu0 0.0
    %249 = vmatpush1.msra.mxu0 0.0
    %250 = vmatprep.subr.mxu0 0.0
    %251 = vmatpush1.msra.mxu0 0.0
    %252 = vmatprep.subr.mxu0 0.0
    %253 = vmatpush1.msra.mxu0 0.0
    %254 = vmatprep.subr.mxu0 0.0
    %255 = vmatpush1.msra.mxu0 0.0
    %256 = vmatprep.subr.mxu0 0.0
    %257 = vmatpush1.msra.mxu0 0.0
    %258 = vmatprep.subr.mxu0 0.0
    %259 = vmatpush1.msra.mxu0 0.0
    %260 = vmatprep.subr.mxu0 0.0
    %261 = vmatpush1.msra.mxu0 0.0
    %262 = vmatprep.subr.mxu0 0.0
    %263 = vmatpush1.msra.mxu0 0.0
    %264 = vmatprep.subr.mxu0 0.0
    %265 = vmatpush1.msra.mxu0 0.0
    %266 = vmatprep.subr.mxu0 0.0
    %267 = vmatpush1.msra.mxu0 0.0
    %268 = vmatprep.subr.mxu0 0.0
    %269 = vmatpush1.msra.mxu0 0.0
    %270 = vmatprep.mubr.f32.mxu0 0.0
    %271 = vmatmul.mubr.f32.gmra.mrb[0].mxu0 %v126
    %v272 = vpop.f32.mrb[0].mxu0
    %v273 = vadd.f32 0.0, %v272
    %v274 = vpop.f32.mrb[0].mxu0
    %275 = vmatprep.mubr.f32.mxu0 0.0
    %276 = vmatmul.mubr.f32.gmra.mrb[0].mxu0 %v129
    %v277 = vpop.f32.mrb[0].mxu0
    %v278 = vadd.f32 0.0, %v277
    %v279 = vpop.f32.mrb[0].mxu0
    %280 = vdwg.mxu0
    %281 = vmatprep.subr.mxu0 0.0
    %282 = vmatpush1.msra.mxu0 %v52
    %283 = vmatprep.subr.mxu0 0.0
    %284 = vmatpush1.msra.mxu0 %v53
    %285 = vmatprep.subr.mxu0 0.0
    %286 = vmatpush1.msra.mxu0 %v54
    %287 = vmatprep.subr.mxu0 0.0
    %288 = vmatpush1.msra.mxu0 %v55
    %289 = vmatprep.subr.mxu0 0.0
    %290 = vmatpush1.msra.mxu0 %v56
    %291 = vmatprep.subr.mxu0 0.0
    %292 = vmatpush1.msra.mxu0 %v57
    %293 = vmatprep.subr.mxu0 0.0
    %294 = vmatpush1.msra.mxu0 %v58
    %295 = vmatprep.subr.mxu0 0.0
    %296 = vmatpush1.msra.mxu0 %v59
    %297 = vmatprep.subr.mxu0 0.0
    %298 = vmatpush1.msra.mxu0 %v60
    %299 = vmatprep.subr.mxu0 0.0
    %300 = vmatpush1.msra.mxu0 %v61
    %301 = vmatprep.subr.mxu0 0.0
    %302 = vmatpush1.msra.mxu0 %v62
    %303 = vmatprep.subr.mxu0 0.0
    %304 = vmatpush1.msra.mxu0 %v63
    %305 = vmatprep.subr.mxu0 0.0
    %306 = vmatpush1.msra.mxu0 0.0
    %307 = vmatprep.subr.mxu0 0.0
    %308 = vmatpush1.msra.mxu0 0.0
    %309 = vmatprep.subr.mxu0 0.0
    %310 = vmatpush1.msra.mxu0 0.0
    %311 = vmatprep.subr.mxu0 0.0
    %312 = vmatpush1.msra.mxu0 0.0
    %313 = vmatprep.subr.mxu0 0.0
    %314 = vmatpush1.msra.mxu0 0.0
    %315 = vmatprep.subr.mxu0 0.0
    %316 = vmatpush1.msra.mxu0 0.0
    %317 = vmatprep.subr.mxu0 0.0
    %318 = vmatpush1.msra.mxu0 0.0
    %319 = vmatprep.subr.mxu0 0.0
    %320 = vmatpush1.msra.mxu0 0.0
    %321 = vmatprep.subr.mxu0 0.0
    %322 = vmatpush1.msra.mxu0 0.0
    %323 = vmatprep.subr.mxu0 0.0
    %324 = vmatpush1.msra.mxu0 0.0
    %325 = vmatprep.subr.mxu0 0.0
    %326 = vmatpush1.msra.mxu0 0.0
    %327 = vmatprep.subr.mxu0 0.0
    %328 = vmatpush1.msra.mxu0 0.0
    %329 = vmatprep.subr.mxu0 0.0
    %330 = vmatpush1.msra.mxu0 0.0
    %331 = vmatprep.subr.mxu0 0.0
    %332 = vmatpush1.msra.mxu0 0.0
    %333 = vmatprep.subr.mxu0 0.0
    %334 = vmatpush1.msra.mxu0 0.0
    %335 = vmatprep.subr.mxu0 0.0
    %336 = vmatpush1.msra.mxu0 0.0
    %337 = vmatprep.subr.mxu0 0.0
    %338 = vmatpush1.msra.mxu0 0.0
    %339 = vmatprep.subr.mxu0 0.0
    %340 = vmatpush1.msra.mxu0 0.0
    %341 = vmatprep.subr.mxu0 0.0
    %342 = vmatpush1.msra.mxu0 0.0
    %343 = vmatprep.subr.mxu0 0.0
    %344 = vmatpush1.msra.mxu0 0.0
    %345 = vmatprep.mubr.f32.mxu0 0.0
    %346 = vmatmul.mubr.f32.gmra.mrb[0].mxu0 %v126
    %v347 = vpop.f32.mrb[0].mxu0
    %v348 = vadd.f32 0.0, %v347
    %v349 = vpop.f32.mrb[0].mxu0
    %350 = vmatprep.mubr.f32.mxu0 0.0
    %351 = vmatmul.mubr.f32.gmra.mrb[0].mxu0 %v129
    %v352 = vpop.f32.mrb[0].mxu0
    %v353 = vadd.f32 0.0, %v352
    %v354 = vpop.f32.mrb[0].mxu0
    %355 = vdwg.mxu0
    %356 = vmatprep.subr.mxu0 0.0
    %357 = vmatpush1.msra.mxu0 %v64
    %358 = vmatprep.subr.mxu0 0.0
    %359 = vmatpush1.msra.mxu0 %v65
    %360 = vmatprep.subr.mxu0 0.0
    %361 = vmatpush1.msra.mxu0 %v66
    %362 = vmatprep.subr.mxu0 0.0
    %363 = vmatpush1.msra.mxu0 %v67
    %364 = vmatprep.subr.mxu0 0.0
    %365 = vmatpush1.msra.mxu0 %v68
    %366 = vmatprep.subr.mxu0 0.0
    %367 = vmatpush1.msra.mxu0 %v69
    %368 = vmatprep.subr.mxu0 0.0
    %369 = vmatpush1.msra.mxu0 %v70
    %370 = vmatprep.subr.mxu0 0.0
    %371 = vmatpush1.msra.mxu0 %v71
    %372 = vmatprep.subr.mxu0 0.0
    %373 = vmatpush1.msra.mxu0 %v72
    %374 = vmatprep.subr.mxu0 0.0
    %375 = vmatpush1.msra.mxu0 %v73
    %376 = vmatprep.subr.mxu0 0.0
    %377 = vmatpush1.msra.mxu0 %v74
    %378 = vmatprep.subr.mxu0 0.0
    %379 = vmatpush1.msra.mxu0 %v75
    %380 = vmatprep.subr.mxu0 0.0
    %381 = vmatpush1.msra.mxu0 0.0
    %382 = vmatprep.subr.mxu0 0.0
    %383 = vmatpush1.msra.mxu0 0.0
    %384 = vmatprep.subr.mxu0 0.0
    %385 = vmatpush1.msra.mxu0 0.0
    %386 = vmatprep.subr.mxu0 0.0
    %387 = vmatpush1.msra.mxu0 0.0
    %388 = vmatprep.subr.mxu0 0.0
    %389 = vmatpush1.msra.mxu0 0.0
    %390 = vmatprep.subr.mxu0 0.0
    %391 = vmatpush1.msra.mxu0 0.0
    %392 = vmatprep.subr.mxu0 0.0
    %393 = vmatpush1.msra.mxu0 0.0
    %394 = vmatprep.subr.mxu0 0.0
    %395 = vmatpush1.msra.mxu0 0.0
    %396 = vmatprep.subr.mxu0 0.0
    %397 = vmatpush1.msra.mxu0 0.0
    %398 = vmatprep.subr.mxu0 0.0
    %399 = vmatpush1.msra.mxu0 0.0
    %400 = vmatprep.subr.mxu0 0.0
    %401 = vmatpush1.msra.mxu0 0.0
    %402 = vmatprep.subr.mxu0 0.0
    %403 = vmatpush1.msra.mxu0 0.0
    %404 = vmatprep.subr.mxu0 0.0
    %405 = vmatpush1.msra.mxu0 0.0
    %406 = vmatprep.subr.mxu0 0.0
    %407 = vmatpush1.msra.mxu0 0.0
    %408 = vmatprep.subr.mxu0 0.0
    %409 = vmatpush1.msra.mxu0 0.0
    %410 = vmatprep.subr.mxu0 0.0
    %411 = vmatpush1.msra.mxu0 0.0
    %412 = vmatprep.subr.mxu0 0.0
    %413 = vmatpush1.msra.mxu0 0.0
    %414 = vmatprep.subr.mxu0 0.0
    %415 = vmatpush1.msra.mxu0 0.0
    %416 = vmatprep.subr.mxu0 0.0
    %417 = vmatpush1.msra.mxu0 0.0
    %418 = vmatprep.subr.mxu0 0.0
    %419 = vmatpush1.msra.mxu0 0.0
    %420 = vmatprep.mubr.f32.mxu0 0.0
    %421 = vmatmul.mubr.f32.gmra.mrb[0].mxu0 %v126
    %v422 = vpop.f32.mrb[0].mxu0
    %v423 = vadd.f32 0.0, %v422
    %v424 = vpop.f32.mrb[0].mxu0
    %425 = vmatprep.mubr.f32.mxu0 0.0
    %426 = vmatmul.mubr.f32.gmra.mrb[0].mxu0 %v129
    %v427 = vpop.f32.mrb[0].mxu0
    %v428 = vadd.f32 0.0, %v427
    %v429 = vpop.f32.mrb[0].mxu0
    %430 = vdwg.mxu0
    %431 = vmatprep.subr.mxu0 0.0
    %432 = vmatpush1.msra.mxu0 %v76
    %433 = vmatprep.subr.mxu0 0.0
    %434 = vmatpush1.msra.mxu0 %v77
    %435 = vmatprep.subr.mxu0 0.0
    %436 = vmatpush1.msra.mxu0 %v78
    %437 = vmatprep.subr.mxu0 0.0
    %438 = vmatpush1.msra.mxu0 %v79
    %439 = vmatprep.subr.mxu0 0.0
    %440 = vmatpush1.msra.mxu0 %v80
    %441 = vmatprep.subr.mxu0 0.0
    %442 = vmatpush1.msra.mxu0 %v81
    %443 = vmatprep.subr.mxu0 0.0
    %444 = vmatpush1.msra.mxu0 %v82
    %445 = vmatprep.subr.mxu0 0.0
    %446 = vmatpush1.msra.mxu0 %v83
    %447 = vmatprep.subr.mxu0 0.0
    %448 = vmatpush1.msra.mxu0 %v84
    %449 = vmatprep.subr.mxu0 0.0
    %450 = vmatpush1.msra.mxu0 %v85
    %451 = vmatprep.subr.mxu0 0.0
    %452 = vmatpush1.msra.mxu0 %v86
    %453 = vmatprep.subr.mxu0 0.0
    %454 = vmatpush1.msra.mxu0 %v87
    %455 = vmatprep.subr.mxu0 0.0
    %456 = vmatpush1.msra.mxu0 0.0
    %457 = vmatprep.subr.mxu0 0.0
    %458 = vmatpush1.msra.mxu0 0.0
    %459 = vmatprep.subr.mxu0 0.0
    %460 = vmatpush1.msra.mxu0 0.0
    %461 = vmatprep.subr.mxu0 0.0
    %462 = vmatpush1.msra.mxu0 0.0
    %463 = vmatprep.subr.mxu0 0.0
    %464 = vmatpush1.msra.mxu0 0.0
    %465 = vmatprep.subr.mxu0 0.0
    %466 = vmatpush1.msra.mxu0 0.0
    %467 = vmatprep.subr.mxu0 0.0
    %468 = vmatpush1.msra.mxu0 0.0
    %469 = vmatprep.subr.mxu0 0.0
    %470 = vmatpush1.msra.mxu0 0.0
    %471 = vmatprep.subr.mxu0 0.0
    %472 = vmatpush1.msra.mxu0 0.0
    %473 = vmatprep.subr.mxu0 0.0
    %474 = vmatpush1.msra.mxu0 0.0
    %475 = vmatprep.subr.mxu0 0.0
    %476 = vmatpush1.msra.mxu0 0.0
    %477 = vmatprep.subr.mxu0 0.0
    %478 = vmatpush1.msra.mxu0 0.0
    %479 = vmatprep.subr.mxu0 0.0
    %480 = vmatpush1.msra.mxu0 0.0
    %481 = vmatprep.subr.mxu0 0.0
    %482 = vmatpush1.msra.mxu0 0.0
    %483 = vmatprep.subr.mxu0 0.0
    %484 = vmatpush1.msra.mxu0 0.0
    %485 = vmatprep.subr.mxu0 0.0
    %486 = vmatpush1.msra.mxu0 0.0
    %487 = vmatprep.subr.mxu0 0.0
    %488 = vmatpush1.msra.mxu0 0.0
    %489 = vmatprep.subr.mxu0 0.0
    %490 = vmatpush1.msra.mxu0 0.0
    %491 = vmatprep.subr.mxu0 0.0
    %492 = vmatpush1.msra.mxu0 0.0
    %493 = vmatprep.subr.mxu0 0.0
    %494 = vmatpush1.msra.mxu0 0.0
    %495 = vmatprep.mubr.f32.mxu0 0.0
    %496 = vmatmul.mubr.f32.gmra.mrb[0].mxu0 %v126
    %v497 = vpop.f32.mrb[0].mxu0
    %v498 = vadd.f32 0.0, %v497
    %v499 = vpop.f32.mrb[0].mxu0
    %500 = vmatprep.mubr.f32.mxu0 0.0
    %501 = vmatmul.mubr.f32.gmra.mrb[0].mxu0 %v129
    %v502 = vpop.f32.mrb[0].mxu0
    %v503 = vadd.f32 0.0, %v502
    %v504 = vpop.f32.mrb[0].mxu0
    %505 = vdwg.mxu0
    %506 = vmatprep.subr.mxu0 0.0
    %507 = vmatpush1.msra.mxu0 %v88
    %508 = vmatprep.subr.mxu0 0.0
    %509 = vmatpush1.msra.mxu0 %v89
    %510 = vmatprep.subr.mxu0 0.0
    %511 = vmatpush1.msra.mxu0 %v90
    %512 = vmatprep.subr.mxu0 0.0
    %513 = vmatpush1.msra.mxu0 %v91
    %514 = vmatprep.subr.mxu0 0.0
    %515 = vmatpush1.msra.mxu0 %v92
    %516 = vmatprep.subr.mxu0 0.0
    %517 = vmatpush1.msra.mxu0 %v93
    %518 = vmatprep.subr.mxu0 0.0
    %519 = vmatpush1.msra.mxu0 %v94
    %520 = vmatprep.subr.mxu0 0.0
    %521 = vmatpush1.msra.mxu0 %v95
    %522 = vmatprep.subr.mxu0 0.0
    %523 = vmatpush1.msra.mxu0 %v96
    %524 = vmatprep.subr.mxu0 0.0
    %525 = vmatpush1.msra.mxu0 %v97
    %526 = vmatprep.subr.mxu0 0.0
    %527 = vmatpush1.msra.mxu0 %v98
    %528 = vmatprep.subr.mxu0 0.0
    %529 = vmatpush1.msra.mxu0 %v99
    %530 = vmatprep.subr.mxu0 0.0
    %531 = vmatpush1.msra.mxu0 0.0
    %532 = vmatprep.subr.mxu0 0.0
    %533 = vmatpush1.msra.mxu0 0.0
    %534 = vmatprep.subr.mxu0 0.0
    %535 = vmatpush1.msra.mxu0 0.0
    %536 = vmatprep.subr.mxu0 0.0
    %537 = vmatpush1.msra.mxu0 0.0
    %538 = vmatprep.subr.mxu0 0.0
    %539 = vmatpush1.msra.mxu0 0.0
    %540 = vmatprep.subr.mxu0 0.0
    %541 = vmatpush1.msra.mxu0 0.0
    %542 = vmatprep.subr.mxu0 0.0
    %543 = vmatpush1.msra.mxu0 0.0
    %544 = vmatprep.subr.mxu0 0.0
    %545 = vmatpush1.msra.mxu0 0.0
    %546 = vmatprep.subr.mxu0 0.0
    %547 = vmatpush1.msra.mxu0 0.0
    %548 = vmatprep.subr.mxu0 0.0
    %549 = vmatpush1.msra.mxu0 0.0
    %550 = vmatprep.subr.mxu0 0.0
    %551 = vmatpush1.msra.mxu0 0.0
    %552 = vmatprep.subr.mxu0 0.0
    %553 = vmatpush1.msra.mxu0 0.0
    %554 = vmatprep.subr.mxu0 0.0
    %555 = vmatpush1.msra.mxu0 0.0
    %556 = vmatprep.subr.mxu0 0.0
    %557 = vmatpush1.msra.mxu0 0.0
    %558 = vmatprep.subr.mxu0 0.0
    %559 = vmatpush1.msra.mxu0 0.0
    %560 = vmatprep.subr.mxu0 0.0
    %561 = vmatpush1.msra.mxu0 0.0
    %562 = vmatprep.subr.mxu0 0.0
    %563 = vmatpush1.msra.mxu0 0.0
    %564 = vmatprep.subr.mxu0 0.0
    %565 = vmatpush1.msra.mxu0 0.0
    %566 = vmatprep.subr.mxu0 0.0
    %567 = vmatpush1.msra.mxu0 0.0
    %568 = vmatprep.subr.mxu0 0.0
    %569 = vmatpush1.msra.mxu0 0.0
    %570 = vmatprep.mubr.f32.mxu0 0.0
    %571 = vmatmul.mubr.f32.gmra.mrb[0].mxu0 %v126
    %v572 = vpop.f32.mrb[0].mxu0
    %v573 = vadd.f32 0.0, %v572
    %v574 = vpop.f32.mrb[0].mxu0
    %575 = vmatprep.mubr.f32.mxu0 0.0
    %576 = vmatmul.mubr.f32.gmra.mrb[0].mxu0 %v129
    %v577 = vpop.f32.mrb[0].mxu0
    %v578 = vadd.f32 0.0, %v577
    %v579 = vpop.f32.mrb[0].mxu0
    %580 = vdwg.mxu0
    %581 = vmatprep.subr.mxu0 0.0
    %582 = vmatpush1.msra.mxu0 %v100
    %583 = vmatprep.subr.mxu0 0.0
    %584 = vmatpush1.msra.mxu0 %v101
    %585 = vmatprep.subr.mxu0 0.0
    %586 = vmatpush1.msra.mxu0 %v102
    %587 = vmatprep.subr.mxu0 0.0
    %588 = vmatpush1.msra.mxu0 %v103
    %589 = vmatprep.subr.mxu0 0.0
    %590 = vmatpush1.msra.mxu0 %v104
    %591 = vmatprep.subr.mxu0 0.0
    %592 = vmatpush1.msra.mxu0 %v105
    %593 = vmatprep.subr.mxu0 0.0
    %594 = vmatpush1.msra.mxu0 %v106
    %595 = vmatprep.subr.mxu0 0.0
    %596 = vmatpush1.msra.mxu0 %v107
    %597 = vmatprep.subr.mxu0 0.0
    %598 = vmatpush1.msra.mxu0 %v108
    %599 = vmatprep.subr.mxu0 0.0
    %600 = vmatpush1.msra.mxu0 %v109
    %601 = vmatprep.subr.mxu0 0.0
    %602 = vmatpush1.msra.mxu0 %v110
    %603 = vmatprep.subr.mxu0 0.0
    %604 = vmatpush1.msra.mxu0 %v111
    %605 = vmatprep.subr.mxu0 0.0
    %606 = vmatpush1.msra.mxu0 0.0
    %607 = vmatprep.subr.mxu0 0.0
    %608 = vmatpush1.msra.mxu0 0.0
    %609 = vmatprep.subr.mxu0 0.0
    %610 = vmatpush1.msra.mxu0 0.0
    %611 = vmatprep.subr.mxu0 0.0
    %612 = vmatpush1.msra.mxu0 0.0
    %613 = vmatprep.subr.mxu0 0.0
    %614 = vmatpush1.msra.mxu0 0.0
    %615 = vmatprep.subr.mxu0 0.0
    %616 = vmatpush1.msra.mxu0 0.0
    %617 = vmatprep.subr.mxu0 0.0
    %618 = vmatpush1.msra.mxu0 0.0
    %619 = vmatprep.subr.mxu0 0.0
    %620 = vmatpush1.msra.mxu0 0.0
    %621 = vmatprep.subr.mxu0 0.0
    %622 = vmatpush1.msra.mxu0 0.0
    %623 = vmatprep.subr.mxu0 0.0
    %624 = vmatpush1.msra.mxu0 0.0
    %625 = vmatprep.subr.mxu0 0.0
    %626 = vmatpush1.msra.mxu0 0.0
    %627 = vmatprep.subr.mxu0 0.0
    %628 = vmatpush1.msra.mxu0 0.0
    %629 = vmatprep.subr.mxu0 0.0
    %630 = vmatpush1.msra.mxu0 0.0
    %631 = vmatprep.subr.mxu0 0.0
    %632 = vmatpush1.msra.mxu0 0.0
    %633 = vmatprep.subr.mxu0 0.0
    %634 = vmatpush1.msra.mxu0 0.0
    %635 = vmatprep.subr.mxu0 0.0
    %636 = vmatpush1.msra.mxu0 0.0
    %637 = vmatprep.subr.mxu0 0.0
    %638 = vmatpush1.msra.mxu0 0.0
    %639 = vmatprep.subr.mxu0 0.0
    %640 = vmatpush1.msra.mxu0 0.0
    %641 = vmatprep.subr.mxu0 0.0
    %642 = vmatpush1.msra.mxu0 0.0
    %643 = vmatprep.subr.mxu0 0.0
    %644 = vmatpush1.msra.mxu0 0.0
    %645 = vmatprep.mubr.f32.mxu0 0.0
    %646 = vmatmul.mubr.f32.gmra.mrb[0].mxu0 %v126
    %v647 = vpop.f32.mrb[0].mxu0
    %v648 = vadd.f32 0.0, %v647
    %v649 = vpop.f32.mrb[0].mxu0
    %650 = vmatprep.mubr.f32.mxu0 0.0
    %651 = vmatmul.mubr.f32.gmra.mrb[0].mxu0 %v129
    %v652 = vpop.f32.mrb[0].mxu0
    %v653 = vadd.f32 0.0, %v652
    %v654 = vpop.f32.mrb[0].mxu0
    %655 = vdwg.mxu0
    %656 = vmatprep.subr.mxu0 0.0
    %657 = vmatpush1.msra.mxu0 %v112
    %658 = vmatprep.subr.mxu0 0.0
    %659 = vmatpush1.msra.mxu0 %v113
    %660 = vmatprep.subr.mxu0 0.0
    %661 = vmatpush1.msra.mxu0 %v114
    %662 = vmatprep.subr.mxu0 0.0
    %663 = vmatpush1.msra.mxu0 %v115
    %664 = vmatprep.subr.mxu0 0.0
    %665 = vmatpush1.msra.mxu0 %v116
    %666 = vmatprep.subr.mxu0 0.0
    %667 = vmatpush1.msra.mxu0 %v117
    %668 = vmatprep.subr.mxu0 0.0
    %669 = vmatpush1.msra.mxu0 %v118
    %670 = vmatprep.subr.mxu0 0.0
    %671 = vmatpush1.msra.mxu0 %v119
    %672 = vmatprep.subr.mxu0 0.0
    %673 = vmatpush1.msra.mxu0 %v120
    %674 = vmatprep.subr.mxu0 0.0
    %675 = vmatpush1.msra.mxu0 %v121
    %676 = vmatprep.subr.mxu0 0.0
    %677 = vmatpush1.msra.mxu0 %v122
    %678 = vmatprep.subr.mxu0 0.0
    %679 = vmatpush1.msra.mxu0 %v123
    %680 = vmatprep.subr.mxu0 0.0
    %681 = vmatpush1.msra.mxu0 0.0
    %682 = vmatprep.subr.mxu0 0.0
    %683 = vmatpush1.msra.mxu0 0.0
    %684 = vmatprep.subr.mxu0 0.0
    %685 = vmatpush1.msra.mxu0 0.0
    %686 = vmatprep.subr.mxu0 0.0
    %687 = vmatpush1.msra.mxu0 0.0
    %688 = vmatprep.subr.mxu0 0.0
    %689 = vmatpush1.msra.mxu0 0.0
    %690 = vmatprep.subr.mxu0 0.0
    %691 = vmatpush1.msra.mxu0 0.0
    %692 = vmatprep.subr.mxu0 0.0
    %693 = vmatpush1.msra.mxu0 0.0
    %694 = vmatprep.subr.mxu0 0.0
    %695 = vmatpush1.msra.mxu0 0.0
    %696 = vmatprep.subr.mxu0 0.0
    %697 = vmatpush1.msra.mxu0 0.0
    %698 = vmatprep.subr.mxu0 0.0
    %699 = vmatpush1.msra.mxu0 0.0
    %700 = vmatprep.subr.mxu0 0.0
    %701 = vmatpush1.msra.mxu0 0.0
    %702 = vmatprep.subr.mxu0 0.0
    %703 = vmatpush1.msra.mxu0 0.0
    %704 = vmatprep.subr.mxu0 0.0
    %705 = vmatpush1.msra.mxu0 0.0
    %706 = vmatprep.subr.mxu0 0.0
    %707 = vmatpush1.msra.mxu0 0.0
    %708 = vmatprep.subr.mxu0 0.0
    %709 = vmatpush1.msra.mxu0 0.0
    %710 = vmatprep.subr.mxu0 0.0
    %711 = vmatpush1.msra.mxu0 0.0
    %712 = vmatprep.subr.mxu0 0.0
    %713 = vmatpush1.msra.mxu0 0.0
    %714 = vmatprep.subr.mxu0 0.0
    %715 = vmatpush1.msra.mxu0 0.0
    %716 = vmatprep.subr.mxu0 0.0
    %717 = vmatpush1.msra.mxu0 0.0
    %718 = vmatprep.subr.mxu0 0.0
    %719 = vmatpush1.msra.mxu0 0.0
    %720 = vmatprep.mubr.f32.mxu0 0.0
    %721 = vmatmul.mubr.f32.gmra.mrb[0].mxu0 %v126
    %v722 = vpop.f32.mrb[0].mxu0
    %v723 = vadd.f32 0.0, %v722
    %v724 = vpop.f32.mrb[0].mxu0
    %725 = vmatprep.mubr.f32.mxu0 0.0
    %726 = vmatmul.mubr.f32.gmra.mrb[0].mxu0 %v129
    %v727 = vpop.f32.mrb[0].mxu0
    %v728 = vadd.f32 0.0, %v727
    %v729 = vpop.f32.mrb[0].mxu0
    %730 = vdwg.mxu0
    %v731 = vmul.f32 %v198, 0.5
    %v732 = vmul.f32 %v203, 0.5
    %v733 = vmul.f32 %v273, 0.5
    %v734 = vmul.f32 %v278, 0.5
    %v735 = vmul.f32 %v348, 0.5
    %v736 = vmul.f32 %v353, 0.5
    %v737 = vmul.f32 %v423, 0.5
    %v738 = vmul.f32 %v428, 0.5
    %v739 = vmul.f32 %v498, 0.5
    %v740 = vmul.f32 %v503, 0.5
    %v741 = vmul.f32 %v573, 0.5
    %v742 = vmul.f32 %v578, 0.5
    %v743 = vmul.f32 %v648, 0.5
    %v744 = vmul.f32 %v653, 0.5
    %v745 = vmul.f32 %v723, 0.5
    %v746 = vmul.f32 %v728, 0.5
    %v747 = vld [vmem:[%s3] sm:$0xf]
    %v748 = vld [vmem:[%s3 + $0x4] sm:$0xf]
    %v749 = vld [vmem:[%s3 + $0x8] sm:$0xf]
    %v750 = vld [vmem:[%s3 + $0xc] sm:$0xf]
    %v751 = vld [vmem:[%s3 + $0x10] sm:$0xf]
    %v752 = vld [vmem:[%s3 + $0x14] sm:$0xf]
    %v753 = vld [vmem:[%s3 + $0x18] sm:$0xf]
    %v754 = vld [vmem:[%s3 + $0x1c] sm:$0xf]
    %756 = vrot.lane.b32.xlu0 %v198, 124
    %v757 = vpop.permute.xlu0 %756
    %vm758 = vcmask 31744
    %v760 = vsel %vm758, %v731, 0
    %v762 = vsel %vm758, %v757, 0
    %764 = vmatprep.subr.mxu0 0.0
    %765 = vmatpush1.xpose.msra.mxu0 %v762
    %766 = vmatprep.subr.mxu0 0.0
    %767 = vmatpush1.xpose.msra.mxu0 0.0
    %768 = vmatprep.subr.mxu0 0.0
    %769 = vmatpush1.xpose.msra.mxu0 0.0
    %770 = vmatprep.subr.mxu0 0.0
    %771 = vmatpush1.xpose.msra.mxu0 0.0
    %772 = vmatprep.subr.mxu0 0.0
    %773 = vmatpush1.xpose.msra.mxu0 0.0
    %774 = vmatprep.subr.mxu0 0.0
    %775 = vmatpush1.xpose.msra.mxu0 0.0
    %776 = vmatprep.subr.mxu0 0.0
    %777 = vmatpush1.xpose.msra.mxu0 0.0
    %778 = vmatprep.subr.mxu0 0.0
    %779 = vmatpush1.xpose.msra.mxu0 0.0
    %780 = vmatprep.subr.mxu0 0.0
    %781 = vmatpush1.xpose.msra.mxu0 0.0
    %782 = vmatprep.subr.mxu0 0.0
    %783 = vmatpush1.xpose.msra.mxu0 0.0
    %784 = vmatprep.subr.mxu0 0.0
    %785 = vmatpush1.xpose.msra.mxu0 0.0
    %786 = vmatprep.subr.mxu0 0.0
    %787 = vmatpush1.xpose.msra.mxu0 0.0
    %788 = vmatprep.subr.mxu0 0.0
    %789 = vmatpush1.xpose.msra.mxu0 0.0
    %790 = vmatprep.subr.mxu0 0.0
    %791 = vmatpush1.xpose.msra.mxu0 0.0
    %792 = vmatprep.subr.mxu0 0.0
    %793 = vmatpush1.xpose.msra.mxu0 0.0
    %794 = vmatprep.subr.mxu0 0.0
    %795 = vmatpush1.xpose.msra.mxu0 0.0
    %796 = vmatprep.subr.mxu0 0.0
    %797 = vmatpush1.xpose.msra.mxu0 0.0
    %798 = vmatprep.subr.mxu0 0.0
    %799 = vmatpush1.xpose.msra.mxu0 0.0
    %800 = vmatprep.subr.mxu0 0.0
    %801 = vmatpush1.xpose.msra.mxu0 0.0
    %802 = vmatprep.subr.mxu0 0.0
    %803 = vmatpush1.xpose.msra.mxu0 0.0
    %804 = vmatprep.subr.mxu0 0.0
    %805 = vmatpush1.xpose.msra.mxu0 0.0
    %806 = vmatprep.subr.mxu0 0.0
    %807 = vmatpush1.xpose.msra.mxu0 0.0
    %808 = vmatprep.subr.mxu0 0.0
    %809 = vmatpush1.xpose.msra.mxu0 0.0
    %810 = vmatprep.subr.mxu0 0.0
    %811 = vmatpush1.xpose.msra.mxu0 0.0
    %812 = vmatprep.subr.mxu0 0.0
    %813 = vmatpush1.xpose.msra.mxu0 0.0
    %814 = vmatprep.subr.mxu0 0.0
    %815 = vmatpush1.xpose.msra.mxu0 0.0
    %816 = vmatprep.subr.mxu0 0.0
    %817 = vmatpush1.xpose.msra.mxu0 0.0
    %818 = vmatprep.subr.mxu0 0.0
    %819 = vmatpush1.xpose.msra.mxu0 0.0
    %820 = vmatprep.subr.mxu0 0.0
    %821 = vmatpush1.xpose.msra.mxu0 0.0
    %822 = vmatprep.subr.mxu0 0.0
    %823 = vmatpush1.xpose.msra.mxu0 0.0
    %824 = vmatprep.subr.mxu0 0.0
    %825 = vmatpush1.xpose.msra.mxu0 0.0
    %826 = vmatprep.subr.mxu0 0.0
    %827 = vmatpush1.xpose.msra.mxu0 0.0
    %828 = vmatprep.mubr.f32.mxu0 0.0
    %829 = vmatmul.mubr.f32.gmra.mrb[0].mxu0 %v760
    %v830 = vpop.f32.mrb[0].mxu0
    %v831 = vadd.f32 0.0, %v830
    %v832 = vpop.f32.mrb[0].mxu0
    %833 = vdwg.mxu0
    %835 = vrot.lane.b32.xlu0 %v273, 124
    %v836 = vpop.permute.xlu0 %835
    %v838 = vsel %vm758, %v733, 0
    %v840 = vsel %vm758, %v836, 0
    %842 = vmatprep.subr.mxu0 0.0
    %843 = vmatpush1.xpose.msra.mxu0 %v840
    %844 = vmatprep.subr.mxu0 0.0
    %845 = vmatpush1.xpose.msra.mxu0 0.0
    %846 = vmatprep.subr.mxu0 0.0
    %847 = vmatpush1.xpose.msra.mxu0 0.0
    %848 = vmatprep.subr.mxu0 0.0
    %849 = vmatpush1.xpose.msra.mxu0 0.0
    %850 = vmatprep.subr.mxu0 0.0
    %851 = vmatpush1.xpose.msra.mxu0 0.0
    %852 = vmatprep.subr.mxu0 0.0
    %853 = vmatpush1.xpose.msra.mxu0 0.0
    %854 = vmatprep.subr.mxu0 0.0
    %855 = vmatpush1.xpose.msra.mxu0 0.0
    %856 = vmatprep.subr.mxu0 0.0
    %857 = vmatpush1.xpose.msra.mxu0 0.0
    %858 = vmatprep.subr.mxu0 0.0
    %859 = vmatpush1.xpose.msra.mxu0 0.0
    %860 = vmatprep.subr.mxu0 0.0
    %861 = vmatpush1.xpose.msra.mxu0 0.0
    %862 = vmatprep.subr.mxu0 0.0
    %863 = vmatpush1.xpose.msra.mxu0 0.0
    %864 = vmatprep.subr.mxu0 0.0
    %865 = vmatpush1.xpose.msra.mxu0 0.0
    %866 = vmatprep.subr.mxu0 0.0
    %867 = vmatpush1.xpose.msra.mxu0 0.0
    %868 = vmatprep.subr.mxu0 0.0
    %869 = vmatpush1.xpose.msra.mxu0 0.0
    %870 = vmatprep.subr.mxu0 0.0
    %871 = vmatpush1.xpose.msra.mxu0 0.0
    %872 = vmatprep.subr.mxu0 0.0
    %873 = vmatpush1.xpose.msra.mxu0 0.0
    %874 = vmatprep.subr.mxu0 0.0
    %875 = vmatpush1.xpose.msra.mxu0 0.0
    %876 = vmatprep.subr.mxu0 0.0
    %877 = vmatpush1.xpose.msra.mxu0 0.0
    %878 = vmatprep.subr.mxu0 0.0
    %879 = vmatpush1.xpose.msra.mxu0 0.0
    %880 = vmatprep.subr.mxu0 0.0
    %881 = vmatpush1.xpose.msra.mxu0 0.0
    %882 = vmatprep.subr.mxu0 0.0
    %883 = vmatpush1.xpose.msra.mxu0 0.0
    %884 = vmatprep.subr.mxu0 0.0
    %885 = vmatpush1.xpose.msra.mxu0 0.0
    %886 = vmatprep.subr.mxu0 0.0
    %887 = vmatpush1.xpose.msra.mxu0 0.0
    %888 = vmatprep.subr.mxu0 0.0
    %889 = vmatpush1.xpose.msra.mxu0 0.0
    %890 = vmatprep.subr.mxu0 0.0
    %891 = vmatpush1.xpose.msra.mxu0 0.0
    %892 = vmatprep.subr.mxu0 0.0
    %893 = vmatpush1.xpose.msra.mxu0 0.0
    %894 = vmatprep.subr.mxu0 0.0
    %895 = vmatpush1.xpose.msra.mxu0 0.0
    %896 = vmatprep.subr.mxu0 0.0
    %897 = vmatpush1.xpose.msra.mxu0 0.0
    %898 = vmatprep.subr.mxu0 0.0
    %899 = vmatpush1.xpose.msra.mxu0 0.0
    %900 = vmatprep.subr.mxu0 0.0
    %901 = vmatpush1.xpose.msra.mxu0 0.0
    %902 = vmatprep.subr.mxu0 0.0
    %903 = vmatpush1.xpose.msra.mxu0 0.0
    %904 = vmatprep.subr.mxu0 0.0
    %905 = vmatpush1.xpose.msra.mxu0 0.0
    %906 = vmatprep.mubr.f32.mxu0 0.0
    %907 = vmatmul.mubr.f32.gmra.mrb[0].mxu0 %v838
    %v908 = vpop.f32.mrb[0].mxu0
    %v909 = vadd.f32 0.0, %v908
    %v910 = vpop.f32.mrb[0].mxu0
    %911 = vdwg.mxu0
    %913 = vrot.lane.b32.xlu0 %v348, 124
    %v914 = vpop.permute.xlu0 %913
    %v916 = vsel %vm758, %v735, 0
    %v918 = vsel %vm758, %v914, 0
    %920 = vmatprep.subr.mxu0 0.0
    %921 = vmatpush1.xpose.msra.mxu0 %v918
    %922 = vmatprep.subr.mxu0 0.0
    %923 = vmatpush1.xpose.msra.mxu0 0.0
    %924 = vmatprep.subr.mxu0 0.0
    %925 = vmatpush1.xpose.msra.mxu0 0.0
    %926 = vmatprep.subr.mxu0 0.0
    %927 = vmatpush1.xpose.msra.mxu0 0.0
    %928 = vmatprep.subr.mxu0 0.0
    %929 = vmatpush1.xpose.msra.mxu0 0.0
    %930 = vmatprep.subr.mxu0 0.0
    %931 = vmatpush1.xpose.msra.mxu0 0.0
    %932 = vmatprep.subr.mxu0 0.0
    %933 = vmatpush1.xpose.msra.mxu0 0.0
    %934 = vmatprep.subr.mxu0 0.0
    %935 = vmatpush1.xpose.msra.mxu0 0.0
    %936 = vmatprep.subr.mxu0 0.0
    %937 = vmatpush1.xpose.msra.mxu0 0.0
    %938 = vmatprep.subr.mxu0 0.0
    %939 = vmatpush1.xpose.msra.mxu0 0.0
    %940 = vmatprep.subr.mxu0 0.0
    %941 = vmatpush1.xpose.msra.mxu0 0.0
    %942 = vmatprep.subr.mxu0 0.0
    %943 = vmatpush1.xpose.msra.mxu0 0.0
    %944 = vmatprep.subr.mxu0 0.0
    %945 = vmatpush1.xpose.msra.mxu0 0.0
    %946 = vmatprep.subr.mxu0 0.0
    %947 = vmatpush1.xpose.msra.mxu0 0.0
    %948 = vmatprep.subr.mxu0 0.0
    %949 = vmatpush1.xpose.msra.mxu0 0.0
    %950 = vmatprep.subr.mxu0 0.0
    %951 = vmatpush1.xpose.msra.mxu0 0.0
    %952 = vmatprep.subr.mxu0 0.0
    %953 = vmatpush1.xpose.msra.mxu0 0.0
    %954 = vmatprep.subr.mxu0 0.0
    %955 = vmatpush1.xpose.msra.mxu0 0.0
    %956 = vmatprep.subr.mxu0 0.0
    %957 = vmatpush1.xpose.msra.mxu0 0.0
    %958 = vmatprep.subr.mxu0 0.0
    %959 = vmatpush1.xpose.msra.mxu0 0.0
    %960 = vmatprep.subr.mxu0 0.0
    %961 = vmatpush1.xpose.msra.mxu0 0.0
    %962 = vmatprep.subr.mxu0 0.0
    %963 = vmatpush1.xpose.msra.mxu0 0.0
    %964 = vmatprep.subr.mxu0 0.0
    %965 = vmatpush1.xpose.msra.mxu0 0.0
    %966 = vmatprep.subr.mxu0 0.0
    %967 = vmatpush1.xpose.msra.mxu0 0.0
    %968 = vmatprep.subr.mxu0 0.0
    %969 = vmatpush1.xpose.msra.mxu0 0.0
    %970 = vmatprep.subr.mxu0 0.0
    %971 = vmatpush1.xpose.msra.mxu0 0.0
    %972 = vmatprep.subr.mxu0 0.0
    %973 = vmatpush1.xpose.msra.mxu0 0.0
    %974 = vmatprep.subr.mxu0 0.0
    %975 = vmatpush1.xpose.msra.mxu0 0.0
    %976 = vmatprep.subr.mxu0 0.0
    %977 = vmatpush1.xpose.msra.mxu0 0.0
    %978 = vmatprep.subr.mxu0 0.0
    %979 = vmatpush1.xpose.msra.mxu0 0.0
    %980 = vmatprep.subr.mxu0 0.0
    %981 = vmatpush1.xpose.msra.mxu0 0.0
    %982 = vmatprep.subr.mxu0 0.0
    %983 = vmatpush1.xpose.msra.mxu0 0.0
    %984 = vmatprep.mubr.f32.mxu0 0.0
    %985 = vmatmul.mubr.f32.gmra.mrb[0].mxu0 %v916
    %v986 = vpop.f32.mrb[0].mxu0
    %v987 = vadd.f32 0.0, %v986
    %v988 = vpop.f32.mrb[0].mxu0
    %989 = vdwg.mxu0
    %991 = vrot.lane.b32.xlu0 %v423, 124
    %v992 = vpop.permute.xlu0 %991
    %v994 = vsel %vm758, %v737, 0
    %v996 = vsel %vm758, %v992, 0
    %998 = vmatprep.subr.mxu0 0.0
    %999 = vmatpush1.xpose.msra.mxu0 %v996
    %1000 = vmatprep.subr.mxu0 0.0
    %1001 = vmatpush1.xpose.msra.mxu0 0.0
    %1002 = vmatprep.subr.mxu0 0.0
    %1003 = vmatpush1.xpose.msra.mxu0 0.0
    %1004 = vmatprep.subr.mxu0 0.0
    %1005 = vmatpush1.xpose.msra.mxu0 0.0
    %1006 = vmatprep.subr.mxu0 0.0
    %1007 = vmatpush1.xpose.msra.mxu0 0.0
    %1008 = vmatprep.subr.mxu0 0.0
    %1009 = vmatpush1.xpose.msra.mxu0 0.0
    %1010 = vmatprep.subr.mxu0 0.0
    %1011 = vmatpush1.xpose.msra.mxu0 0.0
    %1012 = vmatprep.subr.mxu0 0.0
    %1013 = vmatpush1.xpose.msra.mxu0 0.0
    %1014 = vmatprep.subr.mxu0 0.0
    %1015 = vmatpush1.xpose.msra.mxu0 0.0
    %1016 = vmatprep.subr.mxu0 0.0
    %1017 = vmatpush1.xpose.msra.mxu0 0.0
    %1018 = vmatprep.subr.mxu0 0.0
    %1019 = vmatpush1.xpose.msra.mxu0 0.0
    %1020 = vmatprep.subr.mxu0 0.0
    %1021 = vmatpush1.xpose.msra.mxu0 0.0
    %1022 = vmatprep.subr.mxu0 0.0
    %1023 = vmatpush1.xpose.msra.mxu0 0.0
    %1024 = vmatprep.subr.mxu0 0.0
    %1025 = vmatpush1.xpose.msra.mxu0 0.0
    %1026 = vmatprep.subr.mxu0 0.0
    %1027 = vmatpush1.xpose.msra.mxu0 0.0
    %1028 = vmatprep.subr.mxu0 0.0
    %1029 = vmatpush1.xpose.msra.mxu0 0.0
    %1030 = vmatprep.subr.mxu0 0.0
    %1031 = vmatpush1.xpose.msra.mxu0 0.0
    %1032 = vmatprep.subr.mxu0 0.0
    %1033 = vmatpush1.xpose.msra.mxu0 0.0
    %1034 = vmatprep.subr.mxu0 0.0
    %1035 = vmatpush1.xpose.msra.mxu0 0.0
    %1036 = vmatprep.subr.mxu0 0.0
    %1037 = vmatpush1.xpose.msra.mxu0 0.0
    %1038 = vmatprep.subr.mxu0 0.0
    %1039 = vmatpush1.xpose.msra.mxu0 0.0
    %1040 = vmatprep.subr.mxu0 0.0
    %1041 = vmatpush1.xpose.msra.mxu0 0.0
    %1042 = vmatprep.subr.mxu0 0.0
    %1043 = vmatpush1.xpose.msra.mxu0 0.0
    %1044 = vmatprep.subr.mxu0 0.0
    %1045 = vmatpush1.xpose.msra.mxu0 0.0
    %1046 = vmatprep.subr.mxu0 0.0
    %1047 = vmatpush1.xpose.msra.mxu0 0.0
    %1048 = vmatprep.subr.mxu0 0.0
    %1049 = vmatpush1.xpose.msra.mxu0 0.0
    %1050 = vmatprep.subr.mxu0 0.0
    %1051 = vmatpush1.xpose.msra.mxu0 0.0
    %1052 = vmatprep.subr.mxu0 0.0
    %1053 = vmatpush1.xpose.msra.mxu0 0.0
    %1054 = vmatprep.subr.mxu0 0.0
    %1055 = vmatpush1.xpose.msra.mxu0 0.0
    %1056 = vmatprep.subr.mxu0 0.0
    %1057 = vmatpush1.xpose.msra.mxu0 0.0
    %1058 = vmatprep.subr.mxu0 0.0
    %1059 = vmatpush1.xpose.msra.mxu0 0.0
    %1060 = vmatprep.subr.mxu0 0.0
    %1061 = vmatpush1.xpose.msra.mxu0 0.0
    %1062 = vmatprep.mubr.f32.mxu0 0.0
    %1063 = vmatmul.mubr.f32.gmra.mrb[0].mxu0 %v994
    %v1064 = vpop.f32.mrb[0].mxu0
    %v1065 = vadd.f32 0.0, %v1064
    %v1066 = vpop.f32.mrb[0].mxu0
    %1067 = vdwg.mxu0
    %1069 = vrot.lane.b32.xlu0 %v498, 124
    %v1070 = vpop.permute.xlu0 %1069
    %v1072 = vsel %vm758, %v739, 0
    %v1074 = vsel %vm758, %v1070, 0
    %1076 = vmatprep.subr.mxu0 0.0
    %1077 = vmatpush1.xpose.msra.mxu0 %v1074
    %1078 = vmatprep.subr.mxu0 0.0
    %1079 = vmatpush1.xpose.msra.mxu0 0.0
    %1080 = vmatprep.subr.mxu0 0.0
    %1081 = vmatpush1.xpose.msra.mxu0 0.0
    %1082 = vmatprep.subr.mxu0 0.0
    %1083 = vmatpush1.xpose.msra.mxu0 0.0
    %1084 = vmatprep.subr.mxu0 0.0
    %1085 = vmatpush1.xpose.msra.mxu0 0.0
    %1086 = vmatprep.subr.mxu0 0.0
    %1087 = vmatpush1.xpose.msra.mxu0 0.0
    %1088 = vmatprep.subr.mxu0 0.0
    %1089 = vmatpush1.xpose.msra.mxu0 0.0
    %1090 = vmatprep.subr.mxu0 0.0
    %1091 = vmatpush1.xpose.msra.mxu0 0.0
    %1092 = vmatprep.subr.mxu0 0.0
    %1093 = vmatpush1.xpose.msra.mxu0 0.0
    %1094 = vmatprep.subr.mxu0 0.0
    %1095 = vmatpush1.xpose.msra.mxu0 0.0
    %1096 = vmatprep.subr.mxu0 0.0
    %1097 = vmatpush1.xpose.msra.mxu0 0.0
    %1098 = vmatprep.subr.mxu0 0.0
    %1099 = vmatpush1.xpose.msra.mxu0 0.0
    %1100 = vmatprep.subr.mxu0 0.0
    %1101 = vmatpush1.xpose.msra.mxu0 0.0
    %1102 = vmatprep.subr.mxu0 0.0
    %1103 = vmatpush1.xpose.msra.mxu0 0.0
    %1104 = vmatprep.subr.mxu0 0.0
    %1105 = vmatpush1.xpose.msra.mxu0 0.0
    %1106 = vmatprep.subr.mxu0 0.0
    %1107 = vmatpush1.xpose.msra.mxu0 0.0
    %1108 = vmatprep.subr.mxu0 0.0
    %1109 = vmatpush1.xpose.msra.mxu0 0.0
    %1110 = vmatprep.subr.mxu0 0.0
    %1111 = vmatpush1.xpose.msra.mxu0 0.0
    %1112 = vmatprep.subr.mxu0 0.0
    %1113 = vmatpush1.xpose.msra.mxu0 0.0
    %1114 = vmatprep.subr.mxu0 0.0
    %1115 = vmatpush1.xpose.msra.mxu0 0.0
    %1116 = vmatprep.subr.mxu0 0.0
    %1117 = vmatpush1.xpose.msra.mxu0 0.0
    %1118 = vmatprep.subr.mxu0 0.0
    %1119 = vmatpush1.xpose.msra.mxu0 0.0
    %1120 = vmatprep.subr.mxu0 0.0
    %1121 = vmatpush1.xpose.msra.mxu0 0.0
    %1122 = vmatprep.subr.mxu0 0.0
    %1123 = vmatpush1.xpose.msra.mxu0 0.0
    %1124 = vmatprep.subr.mxu0 0.0
    %1125 = vmatpush1.xpose.msra.mxu0 0.0
    %1126 = vmatprep.subr.mxu0 0.0
    %1127 = vmatpush1.xpose.msra.mxu0 0.0
    %1128 = vmatprep.subr.mxu0 0.0
    %1129 = vmatpush1.xpose.msra.mxu0 0.0
    %1130 = vmatprep.subr.mxu0 0.0
    %1131 = vmatpush1.xpose.msra.mxu0 0.0
    %1132 = vmatprep.subr.mxu0 0.0
    %1133 = vmatpush1.xpose.msra.mxu0 0.0
    %1134 = vmatprep.subr.mxu0 0.0
    %1135 = vmatpush1.xpose.msra.mxu0 0.0
    %1136 = vmatprep.subr.mxu0 0.0
    %1137 = vmatpush1.xpose.msra.mxu0 0.0
    %1138 = vmatprep.subr.mxu0 0.0
    %1139 = vmatpush1.xpose.msra.mxu0 0.0
    %1140 = vmatprep.mubr.f32.mxu0 0.0
    %1141 = vmatmul.mubr.f32.gmra.mrb[0].mxu0 %v1072
    %v1142 = vpop.f32.mrb[0].mxu0
    %v1143 = vadd.f32 0.0, %v1142
    %v1144 = vpop.f32.mrb[0].mxu0
    %1145 = vdwg.mxu0
    %1147 = vrot.lane.b32.xlu0 %v573, 124
    %v1148 = vpop.permute.xlu0 %1147
    %v1150 = vsel %vm758, %v741, 0
    %v1152 = vsel %vm758, %v1148, 0
    %1154 = vmatprep.subr.mxu0 0.0
    %1155 = vmatpush1.xpose.msra.mxu0 %v1152
    %1156 = vmatprep.subr.mxu0 0.0
    %1157 = vmatpush1.xpose.msra.mxu0 0.0
    %1158 = vmatprep.subr.mxu0 0.0
    %1159 = vmatpush1.xpose.msra.mxu0 0.0
    %1160 = vmatprep.subr.mxu0 0.0
    %1161 = vmatpush1.xpose.msra.mxu0 0.0
    %1162 = vmatprep.subr.mxu0 0.0
    %1163 = vmatpush1.xpose.msra.mxu0 0.0
    %1164 = vmatprep.subr.mxu0 0.0
    %1165 = vmatpush1.xpose.msra.mxu0 0.0
    %1166 = vmatprep.subr.mxu0 0.0
    %1167 = vmatpush1.xpose.msra.mxu0 0.0
    %1168 = vmatprep.subr.mxu0 0.0
    %1169 = vmatpush1.xpose.msra.mxu0 0.0
    %1170 = vmatprep.subr.mxu0 0.0
    %1171 = vmatpush1.xpose.msra.mxu0 0.0
    %1172 = vmatprep.subr.mxu0 0.0
    %1173 = vmatpush1.xpose.msra.mxu0 0.0
    %1174 = vmatprep.subr.mxu0 0.0
    %1175 = vmatpush1.xpose.msra.mxu0 0.0
    %1176 = vmatprep.subr.mxu0 0.0
    %1177 = vmatpush1.xpose.msra.mxu0 0.0
    %1178 = vmatprep.subr.mxu0 0.0
    %1179 = vmatpush1.xpose.msra.mxu0 0.0
    %1180 = vmatprep.subr.mxu0 0.0
    %1181 = vmatpush1.xpose.msra.mxu0 0.0
    %1182 = vmatprep.subr.mxu0 0.0
    %1183 = vmatpush1.xpose.msra.mxu0 0.0
    %1184 = vmatprep.subr.mxu0 0.0
    %1185 = vmatpush1.xpose.msra.mxu0 0.0
    %1186 = vmatprep.subr.mxu0 0.0
    %1187 = vmatpush1.xpose.msra.mxu0 0.0
    %1188 = vmatprep.subr.mxu0 0.0
    %1189 = vmatpush1.xpose.msra.mxu0 0.0
    %1190 = vmatprep.subr.mxu0 0.0
    %1191 = vmatpush1.xpose.msra.mxu0 0.0
    %1192 = vmatprep.subr.mxu0 0.0
    %1193 = vmatpush1.xpose.msra.mxu0 0.0
    %1194 = vmatprep.subr.mxu0 0.0
    %1195 = vmatpush1.xpose.msra.mxu0 0.0
    %1196 = vmatprep.subr.mxu0 0.0
    %1197 = vmatpush1.xpose.msra.mxu0 0.0
    %1198 = vmatprep.subr.mxu0 0.0
    %1199 = vmatpush1.xpose.msra.mxu0 0.0
    %1200 = vmatprep.subr.mxu0 0.0
    %1201 = vmatpush1.xpose.msra.mxu0 0.0
    %1202 = vmatprep.subr.mxu0 0.0
    %1203 = vmatpush1.xpose.msra.mxu0 0.0
    %1204 = vmatprep.subr.mxu0 0.0
    %1205 = vmatpush1.xpose.msra.mxu0 0.0
    %1206 = vmatprep.subr.mxu0 0.0
    %1207 = vmatpush1.xpose.msra.mxu0 0.0
    %1208 = vmatprep.subr.mxu0 0.0
    %1209 = vmatpush1.xpose.msra.mxu0 0.0
    %1210 = vmatprep.subr.mxu0 0.0
    %1211 = vmatpush1.xpose.msra.mxu0 0.0
    %1212 = vmatprep.subr.mxu0 0.0
    %1213 = vmatpush1.xpose.msra.mxu0 0.0
    %1214 = vmatprep.subr.mxu0 0.0
    %1215 = vmatpush1.xpose.msra.mxu0 0.0
    %1216 = vmatprep.subr.mxu0 0.0
    %1217 = vmatpush1.xpose.msra.mxu0 0.0
    %1218 = vmatprep.mubr.f32.mxu0 0.0
    %1219 = vmatmul.mubr.f32.gmra.mrb[0].mxu0 %v1150
    %v1220 = vpop.f32.mrb[0].mxu0
    %v1221 = vadd.f32 0.0, %v1220
    %v1222 = vpop.f32.mrb[0].mxu0
    %1223 = vdwg.mxu0
    %1225 = vrot.lane.b32.xlu0 %v648, 124
    %v1226 = vpop.permute.xlu0 %1225
    %v1228 = vsel %vm758, %v743, 0
    %v1230 = vsel %vm758, %v1226, 0
    %1232 = vmatprep.subr.mxu0 0.0
    %1233 = vmatpush1.xpose.msra.mxu0 %v1230
    %1234 = vmatprep.subr.mxu0 0.0
    %1235 = vmatpush1.xpose.msra.mxu0 0.0
    %1236 = vmatprep.subr.mxu0 0.0
    %1237 = vmatpush1.xpose.msra.mxu0 0.0
    %1238 = vmatprep.subr.mxu0 0.0
    %1239 = vmatpush1.xpose.msra.mxu0 0.0
    %1240 = vmatprep.subr.mxu0 0.0
    %1241 = vmatpush1.xpose.msra.mxu0 0.0
    %1242 = vmatprep.subr.mxu0 0.0
    %1243 = vmatpush1.xpose.msra.mxu0 0.0
    %1244 = vmatprep.subr.mxu0 0.0
    %1245 = vmatpush1.xpose.msra.mxu0 0.0
    %1246 = vmatprep.subr.mxu0 0.0
    %1247 = vmatpush1.xpose.msra.mxu0 0.0
    %1248 = vmatprep.subr.mxu0 0.0
    %1249 = vmatpush1.xpose.msra.mxu0 0.0
    %1250 = vmatprep.subr.mxu0 0.0
    %1251 = vmatpush1.xpose.msra.mxu0 0.0
    %1252 = vmatprep.subr.mxu0 0.0
    %1253 = vmatpush1.xpose.msra.mxu0 0.0
    %1254 = vmatprep.subr.mxu0 0.0
    %1255 = vmatpush1.xpose.msra.mxu0 0.0
    %1256 = vmatprep.subr.mxu0 0.0
    %1257 = vmatpush1.xpose.msra.mxu0 0.0
    %1258 = vmatprep.subr.mxu0 0.0
    %1259 = vmatpush1.xpose.msra.mxu0 0.0
    %1260 = vmatprep.subr.mxu0 0.0
    %1261 = vmatpush1.xpose.msra.mxu0 0.0
    %1262 = vmatprep.subr.mxu0 0.0
    %1263 = vmatpush1.xpose.msra.mxu0 0.0
    %1264 = vmatprep.subr.mxu0 0.0
    %1265 = vmatpush1.xpose.msra.mxu0 0.0
    %1266 = vmatprep.subr.mxu0 0.0
    %1267 = vmatpush1.xpose.msra.mxu0 0.0
    %1268 = vmatprep.subr.mxu0 0.0
    %1269 = vmatpush1.xpose.msra.mxu0 0.0
    %1270 = vmatprep.subr.mxu0 0.0
    %1271 = vmatpush1.xpose.msra.mxu0 0.0
    %1272 = vmatprep.subr.mxu0 0.0
    %1273 = vmatpush1.xpose.msra.mxu0 0.0
    %1274 = vmatprep.subr.mxu0 0.0
    %1275 = vmatpush1.xpose.msra.mxu0 0.0
    %1276 = vmatprep.subr.mxu0 0.0
    %1277 = vmatpush1.xpose.msra.mxu0 0.0
    %1278 = vmatprep.subr.mxu0 0.0
    %1279 = vmatpush1.xpose.msra.mxu0 0.0
    %1280 = vmatprep.subr.mxu0 0.0
    %1281 = vmatpush1.xpose.msra.mxu0 0.0
    %1282 = vmatprep.subr.mxu0 0.0
    %1283 = vmatpush1.xpose.msra.mxu0 0.0
    %1284 = vmatprep.subr.mxu0 0.0
    %1285 = vmatpush1.xpose.msra.mxu0 0.0
    %1286 = vmatprep.subr.mxu0 0.0
    %1287 = vmatpush1.xpose.msra.mxu0 0.0
    %1288 = vmatprep.subr.mxu0 0.0
    %1289 = vmatpush1.xpose.msra.mxu0 0.0
    %1290 = vmatprep.subr.mxu0 0.0
    %1291 = vmatpush1.xpose.msra.mxu0 0.0
    %1292 = vmatprep.subr.mxu0 0.0
    %1293 = vmatpush1.xpose.msra.mxu0 0.0
    %1294 = vmatprep.subr.mxu0 0.0
    %1295 = vmatpush1.xpose.msra.mxu0 0.0
    %1296 = vmatprep.mubr.f32.mxu0 0.0
    %1297 = vmatmul.mubr.f32.gmra.mrb[0].mxu0 %v1228
    %v1298 = vpop.f32.mrb[0].mxu0
    %v1299 = vadd.f32 0.0, %v1298
    %v1300 = vpop.f32.mrb[0].mxu0
    %1301 = vdwg.mxu0
    %1303 = vrot.lane.b32.xlu0 %v723, 124
    %v1304 = vpop.permute.xlu0 %1303
    %v1306 = vsel %vm758, %v745, 0
    %v1308 = vsel %vm758, %v1304, 0
    %1310 = vmatprep.subr.mxu0 0.0
    %1311 = vmatpush1.xpose.msra.mxu0 %v1308
    %1312 = vmatprep.subr.mxu0 0.0
    %1313 = vmatpush1.xpose.msra.mxu0 0.0
    %1314 = vmatprep.subr.mxu0 0.0
    %1315 = vmatpush1.xpose.msra.mxu0 0.0
    %1316 = vmatprep.subr.mxu0 0.0
    %1317 = vmatpush1.xpose.msra.mxu0 0.0
    %1318 = vmatprep.subr.mxu0 0.0
    %1319 = vmatpush1.xpose.msra.mxu0 0.0
    %1320 = vmatprep.subr.mxu0 0.0
    %1321 = vmatpush1.xpose.msra.mxu0 0.0
    %1322 = vmatprep.subr.mxu0 0.0
    %1323 = vmatpush1.xpose.msra.mxu0 0.0
    %1324 = vmatprep.subr.mxu0 0.0
    %1325 = vmatpush1.xpose.msra.mxu0 0.0
    %1326 = vmatprep.subr.mxu0 0.0
    %1327 = vmatpush1.xpose.msra.mxu0 0.0
    %1328 = vmatprep.subr.mxu0 0.0
    %1329 = vmatpush1.xpose.msra.mxu0 0.0
    %1330 = vmatprep.subr.mxu0 0.0
    %1331 = vmatpush1.xpose.msra.mxu0 0.0
    %1332 = vmatprep.subr.mxu0 0.0
    %1333 = vmatpush1.xpose.msra.mxu0 0.0
    %1334 = vmatprep.subr.mxu0 0.0
    %1335 = vmatpush1.xpose.msra.mxu0 0.0
    %1336 = vmatprep.subr.mxu0 0.0
    %1337 = vmatpush1.xpose.msra.mxu0 0.0
    %1338 = vmatprep.subr.mxu0 0.0
    %1339 = vmatpush1.xpose.msra.mxu0 0.0
    %1340 = vmatprep.subr.mxu0 0.0
    %1341 = vmatpush1.xpose.msra.mxu0 0.0
    %1342 = vmatprep.subr.mxu0 0.0
    %1343 = vmatpush1.xpose.msra.mxu0 0.0
    %1344 = vmatprep.subr.mxu0 0.0
    %1345 = vmatpush1.xpose.msra.mxu0 0.0
    %1346 = vmatprep.subr.mxu0 0.0
    %1347 = vmatpush1.xpose.msra.mxu0 0.0
    %1348 = vmatprep.subr.mxu0 0.0
    %1349 = vmatpush1.xpose.msra.mxu0 0.0
    %1350 = vmatprep.subr.mxu0 0.0
    %1351 = vmatpush1.xpose.msra.mxu0 0.0
    %1352 = vmatprep.subr.mxu0 0.0
    %1353 = vmatpush1.xpose.msra.mxu0 0.0
    %1354 = vmatprep.subr.mxu0 0.0
    %1355 = vmatpush1.xpose.msra.mxu0 0.0
    %1356 = vmatprep.subr.mxu0 0.0
    %1357 = vmatpush1.xpose.msra.mxu0 0.0
    %1358 = vmatprep.subr.mxu0 0.0
    %1359 = vmatpush1.xpose.msra.mxu0 0.0
    %1360 = vmatprep.subr.mxu0 0.0
    %1361 = vmatpush1.xpose.msra.mxu0 0.0
    %1362 = vmatprep.subr.mxu0 0.0
    %1363 = vmatpush1.xpose.msra.mxu0 0.0
    %1364 = vmatprep.subr.mxu0 0.0
    %1365 = vmatpush1.xpose.msra.mxu0 0.0
    %1366 = vmatprep.subr.mxu0 0.0
    %1367 = vmatpush1.xpose.msra.mxu0 0.0
    %1368 = vmatprep.subr.mxu0 0.0
    %1369 = vmatpush1.xpose.msra.mxu0 0.0
    %1370 = vmatprep.subr.mxu0 0.0
    %1371 = vmatpush1.xpose.msra.mxu0 0.0
    %1372 = vmatprep.subr.mxu0 0.0
    %1373 = vmatpush1.xpose.msra.mxu0 0.0
    %1374 = vmatprep.mubr.f32.mxu0 0.0
    %1375 = vmatmul.mubr.f32.gmra.mrb[0].mxu0 %v1306
    %v1376 = vpop.f32.mrb[0].mxu0
    %v1377 = vadd.f32 0.0, %v1376
    %v1378 = vpop.f32.mrb[0].mxu0
    %1379 = vdwg.mxu0
    %vm1380 = vcmask 64512
    %v1381 = vsel %vm1380, %v831, -inf
    %1382 = vmax.xlane.f32.xlu0 %v1381
    %v1383 = vpop.xlane.xlu0 %1382
    %v1384 = vsel %vm1380, %v909, -inf
    %1385 = vmax.xlane.f32.xlu0 %v1384
    %v1386 = vpop.xlane.xlu0 %1385
    %v1387 = vsel %vm1380, %v987, -inf
    %1388 = vmax.xlane.f32.xlu0 %v1387
    %v1389 = vpop.xlane.xlu0 %1388
    %v1390 = vsel %vm1380, %v1065, -inf
    %1391 = vmax.xlane.f32.xlu0 %v1390
    %v1392 = vpop.xlane.xlu0 %1391
    %v1393 = vsel %vm1380, %v1143, -inf
    %1394 = vmax.xlane.f32.xlu0 %v1393
    %v1395 = vpop.xlane.xlu0 %1394
    %v1396 = vsel %vm1380, %v1221, -inf
    %1397 = vmax.xlane.f32.xlu0 %v1396
    %v1398 = vpop.xlane.xlu0 %1397
    %v1399 = vsel %vm1380, %v1299, -inf
    %1400 = vmax.xlane.f32.xlu0 %v1399
    %v1401 = vpop.xlane.xlu0 %1400
    %v1402 = vsel %vm1380, %v1377, -inf
    %1403 = vmax.xlane.f32.xlu0 %v1402
    %v1404 = vpop.xlane.xlu0 %1403
    %v1405 = vsub.f32 %v831, %v1383
    %v1406 = vsub.f32 %v909, %v1386
    %v1407 = vsub.f32 %v987, %v1389
    %v1408 = vsub.f32 %v1065, %v1392
    %v1409 = vsub.f32 %v1143, %v1395
    %v1410 = vsub.f32 %v1221, %v1398
    %v1411 = vsub.f32 %v1299, %v1401
    %v1412 = vsub.f32 %v1377, %v1404
    %v1413 = vmul.f32 %v1405, 1.442695
    %v1414 = vpow.pop %v1413
    %v1415 = vmul.f32 %v1406, 1.442695
    %v1416 = vpow.pop %v1415
    %v1417 = vmul.f32 %v1407, 1.442695
    %v1418 = vpow.pop %v1417
    %v1419 = vmul.f32 %v1408, 1.442695
    %v1420 = vpow.pop %v1419
    %v1421 = vmul.f32 %v1409, 1.442695
    %v1422 = vpow.pop %v1421
    %v1423 = vmul.f32 %v1410, 1.442695
    %v1424 = vpow.pop %v1423
    %v1425 = vmul.f32 %v1411, 1.442695
    %v1426 = vpow.pop %v1425
    %v1427 = vmul.f32 %v1412, 1.442695
    %v1428 = vpow.pop %v1427
    %v1429 = vsel %vm1380, %v1414, 0.0
    %1430 = vadd.xlane.f32.xlu0 %v1429
    %v1431 = vpop.xlane.xlu0 %1430
    %v1432 = vsel %vm1380, %v1416, 0.0
    %1433 = vadd.xlane.f32.xlu0 %v1432
    %v1434 = vpop.xlane.xlu0 %1433
    %v1435 = vsel %vm1380, %v1418, 0.0
    %1436 = vadd.xlane.f32.xlu0 %v1435
    %v1437 = vpop.xlane.xlu0 %1436
    %v1438 = vsel %vm1380, %v1420, 0.0
    %1439 = vadd.xlane.f32.xlu0 %v1438
    %v1440 = vpop.xlane.xlu0 %1439
    %v1441 = vsel %vm1380, %v1422, 0.0
    %1442 = vadd.xlane.f32.xlu0 %v1441
    %v1443 = vpop.xlane.xlu0 %1442
    %v1444 = vsel %vm1380, %v1424, 0.0
    %1445 = vadd.xlane.f32.xlu0 %v1444
    %v1446 = vpop.xlane.xlu0 %1445
    %v1447 = vsel %vm1380, %v1426, 0.0
    %1448 = vadd.xlane.f32.xlu0 %v1447
    %v1449 = vpop.xlane.xlu0 %1448
    %v1450 = vsel %vm1380, %v1428, 0.0
    %1451 = vadd.xlane.f32.xlu0 %v1450
    %v1452 = vpop.xlane.xlu0 %1451
    %v1453 = vrcp.pop %v1431
    %v1454 = vrcp.pop %v1434
    %v1455 = vrcp.pop %v1437
    %v1456 = vrcp.pop %v1440
    %v1457 = vrcp.pop %v1443
    %v1458 = vrcp.pop %v1446
    %v1459 = vrcp.pop %v1449
    %v1460 = vrcp.pop %v1452
    %v1461 = vmul.f32 %v1414, %v1453
    %v1462 = vmul.f32 %v1416, %v1454
    %v1463 = vmul.f32 %v1418, %v1455
    %v1464 = vmul.f32 %v1420, %v1456
    %v1465 = vmul.f32 %v1422, %v1457
    %v1466 = vmul.f32 %v1424, %v1458
    %v1467 = vmul.f32 %v1426, %v1459
    %v1468 = vmul.f32 %v1428, %v1460
    %1469 = vrot.lane.b32.xlu0 %v198, 120
    %v1470 = vpop.permute.xlu0 %1469
    %v1473 = vsel %vm1380, %v1461, 0
    %1475 = vmatprep.subr.mxu0 0.0
    %1476 = vmatpush1.msra.mxu0 %v1470
    %1477 = vmatprep.subr.mxu0 0.0
    %1478 = vmatpush1.msra.mxu0 0.0
    %1479 = vmatprep.subr.mxu0 0.0
    %1480 = vmatpush1.msra.mxu0 0.0
    %1481 = vmatprep.subr.mxu0 0.0
    %1482 = vmatpush1.msra.mxu0 0.0
    %1483 = vmatprep.subr.mxu0 0.0
    %1484 = vmatpush1.msra.mxu0 0.0
    %1485 = vmatprep.subr.mxu0 0.0
    %1486 = vmatpush1.msra.mxu0 0.0
    %1487 = vmatprep.subr.mxu0 0.0
    %1488 = vmatpush1.msra.mxu0 0.0
    %1489 = vmatprep.subr.mxu0 0.0
    %1490 = vmatpush1.msra.mxu0 0.0
    %1491 = vmatprep.subr.mxu0 0.0
    %1492 = vmatpush1.msra.mxu0 0.0
    %1493 = vmatprep.subr.mxu0 0.0
    %1494 = vmatpush1.msra.mxu0 0.0
    %1495 = vmatprep.subr.mxu0 0.0
    %1496 = vmatpush1.msra.mxu0 0.0
    %1497 = vmatprep.subr.mxu0 0.0
    %1498 = vmatpush1.msra.mxu0 0.0
    %1499 = vmatprep.subr.mxu0 0.0
    %1500 = vmatpush1.msra.mxu0 0.0
    %1501 = vmatprep.subr.mxu0 0.0
    %1502 = vmatpush1.msra.mxu0 0.0
    %1503 = vmatprep.subr.mxu0 0.0
    %1504 = vmatpush1.msra.mxu0 0.0
    %1505 = vmatprep.subr.mxu0 0.0
    %1506 = vmatpush1.msra.mxu0 0.0
    %1507 = vmatprep.subr.mxu0 0.0
    %1508 = vmatpush1.msra.mxu0 0.0
    %1509 = vmatprep.subr.mxu0 0.0
    %1510 = vmatpush1.msra.mxu0 0.0
    %1511 = vmatprep.subr.mxu0 0.0
    %1512 = vmatpush1.msra.mxu0 0.0
    %1513 = vmatprep.subr.mxu0 0.0
    %1514 = vmatpush1.msra.mxu0 0.0
    %1515 = vmatprep.subr.mxu0 0.0
    %1516 = vmatpush1.msra.mxu0 0.0
    %1517 = vmatprep.subr.mxu0 0.0
    %1518 = vmatpush1.msra.mxu0 0.0
    %1519 = vmatprep.subr.mxu0 0.0
    %1520 = vmatpush1.msra.mxu0 0.0
    %1521 = vmatprep.subr.mxu0 0.0
    %1522 = vmatpush1.msra.mxu0 0.0
    %1523 = vmatprep.subr.mxu0 0.0
    %1524 = vmatpush1.msra.mxu0 0.0
    %1525 = vmatprep.subr.mxu0 0.0
    %1526 = vmatpush1.msra.mxu0 0.0
    %1527 = vmatprep.subr.mxu0 0.0
    %1528 = vmatpush1.msra.mxu0 0.0
    %1529 = vmatprep.subr.mxu0 0.0
    %1530 = vmatpush1.msra.mxu0 0.0
    %1531 = vmatprep.subr.mxu0 0.0
    %1532 = vmatpush1.msra.mxu0 0.0
    %1533 = vmatprep.subr.mxu0 0.0
    %1534 = vmatpush1.msra.mxu0 0.0
    %1535 = vmatprep.subr.mxu0 0.0
    %1536 = vmatpush1.msra.mxu0 0.0
    %1537 = vmatprep.subr.mxu0 0.0
    %1538 = vmatpush1.msra.mxu0 0.0
    %1539 = vmatprep.mubr.f32.mxu0 0.0
    %1540 = vmatmul.mubr.f32.gmra.mrb[0].mxu0 %v1473
    %v1541 = vpop.f32.mrb[0].mxu0
    %v1542 = vadd.f32 0.0, %v1541
    %v1543 = vpop.f32.mrb[0].mxu0
    %1544 = vdwg.mxu0
    %1545 = vrot.lane.b32.xlu0 %v273, 120
    %v1546 = vpop.permute.xlu0 %1545
    %v1549 = vsel %vm1380, %v1462, 0
    %1551 = vmatprep.subr.mxu0 0.0
    %1552 = vmatpush1.msra.mxu0 %v1546
    %1553 = vmatprep.subr.mxu0 0.0
    %1554 = vmatpush1.msra.mxu0 0.0
    %1555 = vmatprep.subr.mxu0 0.0
    %1556 = vmatpush1.msra.mxu0 0.0
    %1557 = vmatprep.subr.mxu0 0.0
    %1558 = vmatpush1.msra.mxu0 0.0
    %1559 = vmatprep.subr.mxu0 0.0
    %1560 = vmatpush1.msra.mxu0 0.0
    %1561 = vmatprep.subr.mxu0 0.0
    %1562 = vmatpush1.msra.mxu0 0.0
    %1563 = vmatprep.subr.mxu0 0.0
    %1564 = vmatpush1.msra.mxu0 0.0
    %1565 = vmatprep.subr.mxu0 0.0
    %1566 = vmatpush1.msra.mxu0 0.0
    %1567 = vmatprep.subr.mxu0 0.0
    %1568 = vmatpush1.msra.mxu0 0.0
    %1569 = vmatprep.subr.mxu0 0.0
    %1570 = vmatpush1.msra.mxu0 0.0
    %1571 = vmatprep.subr.mxu0 0.0
    %1572 = vmatpush1.msra.mxu0 0.0
    %1573 = vmatprep.subr.mxu0 0.0
    %1574 = vmatpush1.msra.mxu0 0.0
    %1575 = vmatprep.subr.mxu0 0.0
    %1576 = vmatpush1.msra.mxu0 0.0
    %1577 = vmatprep.subr.mxu0 0.0
    %1578 = vmatpush1.msra.mxu0 0.0
    %1579 = vmatprep.subr.mxu0 0.0
    %1580 = vmatpush1.msra.mxu0 0.0
    %1581 = vmatprep.subr.mxu0 0.0
    %1582 = vmatpush1.msra.mxu0 0.0
    %1583 = vmatprep.subr.mxu0 0.0
    %1584 = vmatpush1.msra.mxu0 0.0
    %1585 = vmatprep.subr.mxu0 0.0
    %1586 = vmatpush1.msra.mxu0 0.0
    %1587 = vmatprep.subr.mxu0 0.0
    %1588 = vmatpush1.msra.mxu0 0.0
    %1589 = vmatprep.subr.mxu0 0.0
    %1590 = vmatpush1.msra.mxu0 0.0
    %1591 = vmatprep.subr.mxu0 0.0
    %1592 = vmatpush1.msra.mxu0 0.0
    %1593 = vmatprep.subr.mxu0 0.0
    %1594 = vmatpush1.msra.mxu0 0.0
    %1595 = vmatprep.subr.mxu0 0.0
    %1596 = vmatpush1.msra.mxu0 0.0
    %1597 = vmatprep.subr.mxu0 0.0
    %1598 = vmatpush1.msra.mxu0 0.0
    %1599 = vmatprep.subr.mxu0 0.0
    %1600 = vmatpush1.msra.mxu0 0.0
    %1601 = vmatprep.subr.mxu0 0.0
    %1602 = vmatpush1.msra.mxu0 0.0
    %1603 = vmatprep.subr.mxu0 0.0
    %1604 = vmatpush1.msra.mxu0 0.0
    %1605 = vmatprep.subr.mxu0 0.0
    %1606 = vmatpush1.msra.mxu0 0.0
    %1607 = vmatprep.subr.mxu0 0.0
    %1608 = vmatpush1.msra.mxu0 0.0
    %1609 = vmatprep.subr.mxu0 0.0
    %1610 = vmatpush1.msra.mxu0 0.0
    %1611 = vmatprep.subr.mxu0 0.0
    %1612 = vmatpush1.msra.mxu0 0.0
    %1613 = vmatprep.subr.mxu0 0.0
    %1614 = vmatpush1.msra.mxu0 0.0
    %1615 = vmatprep.mubr.f32.mxu0 0.0
    %1616 = vmatmul.mubr.f32.gmra.mrb[0].mxu0 %v1549
    %v1617 = vpop.f32.mrb[0].mxu0
    %v1618 = vadd.f32 0.0, %v1617
    %v1619 = vpop.f32.mrb[0].mxu0
    %1620 = vdwg.mxu0
    %1621 = vrot.lane.b32.xlu0 %v348, 120
    %v1622 = vpop.permute.xlu0 %1621
    %v1625 = vsel %vm1380, %v1463, 0
    %1627 = vmatprep.subr.mxu0 0.0
    %1628 = vmatpush1.msra.mxu0 %v1622
    %1629 = vmatprep.subr.mxu0 0.0
    %1630 = vmatpush1.msra.mxu0 0.0
    %1631 = vmatprep.subr.mxu0 0.0
    %1632 = vmatpush1.msra.mxu0 0.0
    %1633 = vmatprep.subr.mxu0 0.0
    %1634 = vmatpush1.msra.mxu0 0.0
    %1635 = vmatprep.subr.mxu0 0.0
    %1636 = vmatpush1.msra.mxu0 0.0
    %1637 = vmatprep.subr.mxu0 0.0
    %1638 = vmatpush1.msra.mxu0 0.0
    %1639 = vmatprep.subr.mxu0 0.0
    %1640 = vmatpush1.msra.mxu0 0.0
    %1641 = vmatprep.subr.mxu0 0.0
    %1642 = vmatpush1.msra.mxu0 0.0
    %1643 = vmatprep.subr.mxu0 0.0
    %1644 = vmatpush1.msra.mxu0 0.0
    %1645 = vmatprep.subr.mxu0 0.0
    %1646 = vmatpush1.msra.mxu0 0.0
    %1647 = vmatprep.subr.mxu0 0.0
    %1648 = vmatpush1.msra.mxu0 0.0
    %1649 = vmatprep.subr.mxu0 0.0
    %1650 = vmatpush1.msra.mxu0 0.0
    %1651 = vmatprep.subr.mxu0 0.0
    %1652 = vmatpush1.msra.mxu0 0.0
    %1653 = vmatprep.subr.mxu0 0.0
    %1654 = vmatpush1.msra.mxu0 0.0
    %1655 = vmatprep.subr.mxu0 0.0
    %1656 = vmatpush1.msra.mxu0 0.0
    %1657 = vmatprep.subr.mxu0 0.0
    %1658 = vmatpush1.msra.mxu0 0.0
    %1659 = vmatprep.subr.mxu0 0.0
    %1660 = vmatpush1.msra.mxu0 0.0
    %1661 = vmatprep.subr.mxu0 0.0
    %1662 = vmatpush1.msra.mxu0 0.0
    %1663 = vmatprep.subr.mxu0 0.0
    %1664 = vmatpush1.msra.mxu0 0.0
    %1665 = vmatprep.subr.mxu0 0.0
    %1666 = vmatpush1.msra.mxu0 0.0
    %1667 = vmatprep.subr.mxu0 0.0
    %1668 = vmatpush1.msra.mxu0 0.0
    %1669 = vmatprep.subr.mxu0 0.0
    %1670 = vmatpush1.msra.mxu0 0.0
    %1671 = vmatprep.subr.mxu0 0.0
    %1672 = vmatpush1.msra.mxu0 0.0
    %1673 = vmatprep.subr.mxu0 0.0
    %1674 = vmatpush1.msra.mxu0 0.0
    %1675 = vmatprep.subr.mxu0 0.0
    %1676 = vmatpush1.msra.mxu0 0.0
    %1677 = vmatprep.subr.mxu0 0.0
    %1678 = vmatpush1.msra.mxu0 0.0
    %1679 = vmatprep.subr.mxu0 0.0
    %1680 = vmatpush1.msra.mxu0 0.0
    %1681 = vmatprep.subr.mxu0 0.0
    %1682 = vmatpush1.msra.mxu0 0.0
    %1683 = vmatprep.subr.mxu0 0.0
    %1684 = vmatpush1.msra.mxu0 0.0
    %1685 = vmatprep.subr.mxu0 0.0
    %1686 = vmatpush1.msra.mxu0 0.0
    %1687 = vmatprep.subr.mxu0 0.0
    %1688 = vmatpush1.msra.mxu0 0.0
    %1689 = vmatprep.subr.mxu0 0.0
    %1690 = vmatpush1.msra.mxu0 0.0
    %1691 = vmatprep.mubr.f32.mxu0 0.0
    %1692 = vmatmul.mubr.f32.gmra.mrb[0].mxu0 %v1625
    %v1693 = vpop.f32.mrb[0].mxu0
    %v1694 = vadd.f32 0.0, %v1693
    %v1695 = vpop.f32.mrb[0].mxu0
    %1696 = vdwg.mxu0
    %1697 = vrot.lane.b32.xlu0 %v423, 120
    %v1698 = vpop.permute.xlu0 %1697
    %v1701 = vsel %vm1380, %v1464, 0
    %1703 = vmatprep.subr.mxu0 0.0
    %1704 = vmatpush1.msra.mxu0 %v1698
    %1705 = vmatprep.subr.mxu0 0.0
    %1706 = vmatpush1.msra.mxu0 0.0
    %1707 = vmatprep.subr.mxu0 0.0
    %1708 = vmatpush1.msra.mxu0 0.0
    %1709 = vmatprep.subr.mxu0 0.0
    %1710 = vmatpush1.msra.mxu0 0.0
    %1711 = vmatprep.subr.mxu0 0.0
    %1712 = vmatpush1.msra.mxu0 0.0
    %1713 = vmatprep.subr.mxu0 0.0
    %1714 = vmatpush1.msra.mxu0 0.0
    %1715 = vmatprep.subr.mxu0 0.0
    %1716 = vmatpush1.msra.mxu0 0.0
    %1717 = vmatprep.subr.mxu0 0.0
    %1718 = vmatpush1.msra.mxu0 0.0
    %1719 = vmatprep.subr.mxu0 0.0
    %1720 = vmatpush1.msra.mxu0 0.0
    %1721 = vmatprep.subr.mxu0 0.0
    %1722 = vmatpush1.msra.mxu0 0.0
    %1723 = vmatprep.subr.mxu0 0.0
    %1724 = vmatpush1.msra.mxu0 0.0
    %1725 = vmatprep.subr.mxu0 0.0
    %1726 = vmatpush1.msra.mxu0 0.0
    %1727 = vmatprep.subr.mxu0 0.0
    %1728 = vmatpush1.msra.mxu0 0.0
    %1729 = vmatprep.subr.mxu0 0.0
    %1730 = vmatpush1.msra.mxu0 0.0
    %1731 = vmatprep.subr.mxu0 0.0
    %1732 = vmatpush1.msra.mxu0 0.0
    %1733 = vmatprep.subr.mxu0 0.0
    %1734 = vmatpush1.msra.mxu0 0.0
    %1735 = vmatprep.subr.mxu0 0.0
    %1736 = vmatpush1.msra.mxu0 0.0
    %1737 = vmatprep.subr.mxu0 0.0
    %1738 = vmatpush1.msra.mxu0 0.0
    %1739 = vmatprep.subr.mxu0 0.0
    %1740 = vmatpush1.msra.mxu0 0.0
    %1741 = vmatprep.subr.mxu0 0.0
    %1742 = vmatpush1.msra.mxu0 0.0
    %1743 = vmatprep.subr.mxu0 0.0
    %1744 = vmatpush1.msra.mxu0 0.0
    %1745 = vmatprep.subr.mxu0 0.0
    %1746 = vmatpush1.msra.mxu0 0.0
    %1747 = vmatprep.subr.mxu0 0.0
    %1748 = vmatpush1.msra.mxu0 0.0
    %1749 = vmatprep.subr.mxu0 0.0
    %1750 = vmatpush1.msra.mxu0 0.0
    %1751 = vmatprep.subr.mxu0 0.0
    %1752 = vmatpush1.msra.mxu0 0.0
    %1753 = vmatprep.subr.mxu0 0.0
    %1754 = vmatpush1.msra.mxu0 0.0
    %1755 = vmatprep.subr.mxu0 0.0
    %1756 = vmatpush1.msra.mxu0 0.0
    %1757 = vmatprep.subr.mxu0 0.0
    %1758 = vmatpush1.msra.mxu0 0.0
    %1759 = vmatprep.subr.mxu0 0.0
    %1760 = vmatpush1.msra.mxu0 0.0
    %1761 = vmatprep.subr.mxu0 0.0
    %1762 = vmatpush1.msra.mxu0 0.0
    %1763 = vmatprep.subr.mxu0 0.0
    %1764 = vmatpush1.msra.mxu0 0.0
    %1765 = vmatprep.subr.mxu0 0.0
    %1766 = vmatpush1.msra.mxu0 0.0
    %1767 = vmatprep.mubr.f32.mxu0 0.0
    %1768 = vmatmul.mubr.f32.gmra.mrb[0].mxu0 %v1701
    %v1769 = vpop.f32.mrb[0].mxu0
    %v1770 = vadd.f32 0.0, %v1769
    %v1771 = vpop.f32.mrb[0].mxu0
    %1772 = vdwg.mxu0
    %1773 = vrot.lane.b32.xlu0 %v498, 120
    %v1774 = vpop.permute.xlu0 %1773
    %v1777 = vsel %vm1380, %v1465, 0
    %1779 = vmatprep.subr.mxu0 0.0
    %1780 = vmatpush1.msra.mxu0 %v1774
    %1781 = vmatprep.subr.mxu0 0.0
    %1782 = vmatpush1.msra.mxu0 0.0
    %1783 = vmatprep.subr.mxu0 0.0
    %1784 = vmatpush1.msra.mxu0 0.0
    %1785 = vmatprep.subr.mxu0 0.0
    %1786 = vmatpush1.msra.mxu0 0.0
    %1787 = vmatprep.subr.mxu0 0.0
    %1788 = vmatpush1.msra.mxu0 0.0
    %1789 = vmatprep.subr.mxu0 0.0
    %1790 = vmatpush1.msra.mxu0 0.0
    %1791 = vmatprep.subr.mxu0 0.0
    %1792 = vmatpush1.msra.mxu0 0.0
    %1793 = vmatprep.subr.mxu0 0.0
    %1794 = vmatpush1.msra.mxu0 0.0
    %1795 = vmatprep.subr.mxu0 0.0
    %1796 = vmatpush1.msra.mxu0 0.0
    %1797 = vmatprep.subr.mxu0 0.0
    %1798 = vmatpush1.msra.mxu0 0.0
    %1799 = vmatprep.subr.mxu0 0.0
    %1800 = vmatpush1.msra.mxu0 0.0
    %1801 = vmatprep.subr.mxu0 0.0
    %1802 = vmatpush1.msra.mxu0 0.0
    %1803 = vmatprep.subr.mxu0 0.0
    %1804 = vmatpush1.msra.mxu0 0.0
    %1805 = vmatprep.subr.mxu0 0.0
    %1806 = vmatpush1.msra.mxu0 0.0
    %1807 = vmatprep.subr.mxu0 0.0
    %1808 = vmatpush1.msra.mxu0 0.0
    %1809 = vmatprep.subr.mxu0 0.0
    %1810 = vmatpush1.msra.mxu0 0.0
    %1811 = vmatprep.subr.mxu0 0.0
    %1812 = vmatpush1.msra.mxu0 0.0
    %1813 = vmatprep.subr.mxu0 0.0
    %1814 = vmatpush1.msra.mxu0 0.0
    %1815 = vmatprep.subr.mxu0 0.0
    %1816 = vmatpush1.msra.mxu0 0.0
    %1817 = vmatprep.subr.mxu0 0.0
    %1818 = vmatpush1.msra.mxu0 0.0
    %1819 = vmatprep.subr.mxu0 0.0
    %1820 = vmatpush1.msra.mxu0 0.0
    %1821 = vmatprep.subr.mxu0 0.0
    %1822 = vmatpush1.msra.mxu0 0.0
    %1823 = vmatprep.subr.mxu0 0.0
    %1824 = vmatpush1.msra.mxu0 0.0
    %1825 = vmatprep.subr.mxu0 0.0
    %1826 = vmatpush1.msra.mxu0 0.0
    %1827 = vmatprep.subr.mxu0 0.0
    %1828 = vmatpush1.msra.mxu0 0.0
    %1829 = vmatprep.subr.mxu0 0.0
    %1830 = vmatpush1.msra.mxu0 0.0
    %1831 = vmatprep.subr.mxu0 0.0
    %1832 = vmatpush1.msra.mxu0 0.0
    %1833 = vmatprep.subr.mxu0 0.0
    %1834 = vmatpush1.msra.mxu0 0.0
    %1835 = vmatprep.subr.mxu0 0.0
    %1836 = vmatpush1.msra.mxu0 0.0
    %1837 = vmatprep.subr.mxu0 0.0
    %1838 = vmatpush1.msra.mxu0 0.0
    %1839 = vmatprep.subr.mxu0 0.0
    %1840 = vmatpush1.msra.mxu0 0.0
    %1841 = vmatprep.subr.mxu0 0.0
    %1842 = vmatpush1.msra.mxu0 0.0
    %1843 = vmatprep.mubr.f32.mxu0 0.0
    %1844 = vmatmul.mubr.f32.gmra.mrb[0].mxu0 %v1777
    %v1845 = vpop.f32.mrb[0].mxu0
    %v1846 = vadd.f32 0.0, %v1845
    %v1847 = vpop.f32.mrb[0].mxu0
    %1848 = vdwg.mxu0
    %1849 = vrot.lane.b32.xlu0 %v573, 120
    %v1850 = vpop.permute.xlu0 %1849
    %v1853 = vsel %vm1380, %v1466, 0
    %1855 = vmatprep.subr.mxu0 0.0
    %1856 = vmatpush1.msra.mxu0 %v1850
    %1857 = vmatprep.subr.mxu0 0.0
    %1858 = vmatpush1.msra.mxu0 0.0
    %1859 = vmatprep.subr.mxu0 0.0
    %1860 = vmatpush1.msra.mxu0 0.0
    %1861 = vmatprep.subr.mxu0 0.0
    %1862 = vmatpush1.msra.mxu0 0.0
    %1863 = vmatprep.subr.mxu0 0.0
    %1864 = vmatpush1.msra.mxu0 0.0
    %1865 = vmatprep.subr.mxu0 0.0
    %1866 = vmatpush1.msra.mxu0 0.0
    %1867 = vmatprep.subr.mxu0 0.0
    %1868 = vmatpush1.msra.mxu0 0.0
    %1869 = vmatprep.subr.mxu0 0.0
    %1870 = vmatpush1.msra.mxu0 0.0
    %1871 = vmatprep.subr.mxu0 0.0
    %1872 = vmatpush1.msra.mxu0 0.0
    %1873 = vmatprep.subr.mxu0 0.0
    %1874 = vmatpush1.msra.mxu0 0.0
    %1875 = vmatprep.subr.mxu0 0.0
    %1876 = vmatpush1.msra.mxu0 0.0
    %1877 = vmatprep.subr.mxu0 0.0
    %1878 = vmatpush1.msra.mxu0 0.0
    %1879 = vmatprep.subr.mxu0 0.0
    %1880 = vmatpush1.msra.mxu0 0.0
    %1881 = vmatprep.subr.mxu0 0.0
    %1882 = vmatpush1.msra.mxu0 0.0
    %1883 = vmatprep.subr.mxu0 0.0
    %1884 = vmatpush1.msra.mxu0 0.0
    %1885 = vmatprep.subr.mxu0 0.0
    %1886 = vmatpush1.msra.mxu0 0.0
    %1887 = vmatprep.subr.mxu0 0.0
    %1888 = vmatpush1.msra.mxu0 0.0
    %1889 = vmatprep.subr.mxu0 0.0
    %1890 = vmatpush1.msra.mxu0 0.0
    %1891 = vmatprep.subr.mxu0 0.0
    %1892 = vmatpush1.msra.mxu0 0.0
    %1893 = vmatprep.subr.mxu0 0.0
    %1894 = vmatpush1.msra.mxu0 0.0
    %1895 = vmatprep.subr.mxu0 0.0
    %1896 = vmatpush1.msra.mxu0 0.0
    %1897 = vmatprep.subr.mxu0 0.0
    %1898 = vmatpush1.msra.mxu0 0.0
    %1899 = vmatprep.subr.mxu0 0.0
    %1900 = vmatpush1.msra.mxu0 0.0
    %1901 = vmatprep.subr.mxu0 0.0
    %1902 = vmatpush1.msra.mxu0 0.0
    %1903 = vmatprep.subr.mxu0 0.0
    %1904 = vmatpush1.msra.mxu0 0.0
    %1905 = vmatprep.subr.mxu0 0.0
    %1906 = vmatpush1.msra.mxu0 0.0
    %1907 = vmatprep.subr.mxu0 0.0
    %1908 = vmatpush1.msra.mxu0 0.0
    %1909 = vmatprep.subr.mxu0 0.0
    %1910 = vmatpush1.msra.mxu0 0.0
    %1911 = vmatprep.subr.mxu0 0.0
    %1912 = vmatpush1.msra.mxu0 0.0
    %1913 = vmatprep.subr.mxu0 0.0
    %1914 = vmatpush1.msra.mxu0 0.0
    %1915 = vmatprep.subr.mxu0 0.0
    %1916 = vmatpush1.msra.mxu0 0.0
    %1917 = vmatprep.subr.mxu0 0.0
    %1918 = vmatpush1.msra.mxu0 0.0
    %1919 = vmatprep.mubr.f32.mxu0 0.0
    %1920 = vmatmul.mubr.f32.gmra.mrb[0].mxu0 %v1853
    %v1921 = vpop.f32.mrb[0].mxu0
    %v1922 = vadd.f32 0.0, %v1921
    %v1923 = vpop.f32.mrb[0].mxu0
    %1924 = vdwg.mxu0
    %1925 = vrot.lane.b32.xlu0 %v648, 120
    %v1926 = vpop.permute.xlu0 %1925
    %v1929 = vsel %vm1380, %v1467, 0
    %1931 = vmatprep.subr.mxu0 0.0
    %1932 = vmatpush1.msra.mxu0 %v1926
    %1933 = vmatprep.subr.mxu0 0.0
    %1934 = vmatpush1.msra.mxu0 0.0
    %1935 = vmatprep.subr.mxu0 0.0
    %1936 = vmatpush1.msra.mxu0 0.0
    %1937 = vmatprep.subr.mxu0 0.0
    %1938 = vmatpush1.msra.mxu0 0.0
    %1939 = vmatprep.subr.mxu0 0.0
    %1940 = vmatpush1.msra.mxu0 0.0
    %1941 = vmatprep.subr.mxu0 0.0
    %1942 = vmatpush1.msra.mxu0 0.0
    %1943 = vmatprep.subr.mxu0 0.0
    %1944 = vmatpush1.msra.mxu0 0.0
    %1945 = vmatprep.subr.mxu0 0.0
    %1946 = vmatpush1.msra.mxu0 0.0
    %1947 = vmatprep.subr.mxu0 0.0
    %1948 = vmatpush1.msra.mxu0 0.0
    %1949 = vmatprep.subr.mxu0 0.0
    %1950 = vmatpush1.msra.mxu0 0.0
    %1951 = vmatprep.subr.mxu0 0.0
    %1952 = vmatpush1.msra.mxu0 0.0
    %1953 = vmatprep.subr.mxu0 0.0
    %1954 = vmatpush1.msra.mxu0 0.0
    %1955 = vmatprep.subr.mxu0 0.0
    %1956 = vmatpush1.msra.mxu0 0.0
    %1957 = vmatprep.subr.mxu0 0.0
    %1958 = vmatpush1.msra.mxu0 0.0
    %1959 = vmatprep.subr.mxu0 0.0
    %1960 = vmatpush1.msra.mxu0 0.0
    %1961 = vmatprep.subr.mxu0 0.0
    %1962 = vmatpush1.msra.mxu0 0.0
    %1963 = vmatprep.subr.mxu0 0.0
    %1964 = vmatpush1.msra.mxu0 0.0
    %1965 = vmatprep.subr.mxu0 0.0
    %1966 = vmatpush1.msra.mxu0 0.0
    %1967 = vmatprep.subr.mxu0 0.0
    %1968 = vmatpush1.msra.mxu0 0.0
    %1969 = vmatprep.subr.mxu0 0.0
    %1970 = vmatpush1.msra.mxu0 0.0
    %1971 = vmatprep.subr.mxu0 0.0
    %1972 = vmatpush1.msra.mxu0 0.0
    %1973 = vmatprep.subr.mxu0 0.0
    %1974 = vmatpush1.msra.mxu0 0.0
    %1975 = vmatprep.subr.mxu0 0.0
    %1976 = vmatpush1.msra.mxu0 0.0
    %1977 = vmatprep.subr.mxu0 0.0
    %1978 = vmatpush1.msra.mxu0 0.0
    %1979 = vmatprep.subr.mxu0 0.0
    %1980 = vmatpush1.msra.mxu0 0.0
    %1981 = vmatprep.subr.mxu0 0.0
    %1982 = vmatpush1.msra.mxu0 0.0
    %1983 = vmatprep.subr.mxu0 0.0
    %1984 = vmatpush1.msra.mxu0 0.0
    %1985 = vmatprep.subr.mxu0 0.0
    %1986 = vmatpush1.msra.mxu0 0.0
    %1987 = vmatprep.subr.mxu0 0.0
    %1988 = vmatpush1.msra.mxu0 0.0
    %1989 = vmatprep.subr.mxu0 0.0
    %1990 = vmatpush1.msra.mxu0 0.0
    %1991 = vmatprep.subr.mxu0 0.0
    %1992 = vmatpush1.msra.mxu0 0.0
    %1993 = vmatprep.subr.mxu0 0.0
    %1994 = vmatpush1.msra.mxu0 0.0
    %1995 = vmatprep.mubr.f32.mxu0 0.0
    %1996 = vmatmul.mubr.f32.gmra.mrb[0].mxu0 %v1929
    %v1997 = vpop.f32.mrb[0].mxu0
    %v1998 = vadd.f32 0.0, %v1997
    %v1999 = vpop.f32.mrb[0].mxu0
    %2000 = vdwg.mxu0
    %2001 = vrot.lane.b32.xlu0 %v723, 120
    %v2002 = vpop.permute.xlu0 %2001
    %v2005 = vsel %vm1380, %v1468, 0
    %2007 = vmatprep.subr.mxu0 0.0
    %2008 = vmatpush1.msra.mxu0 %v2002
    %2009 = vmatprep.subr.mxu0 0.0
    %2010 = vmatpush1.msra.mxu0 0.0
    %2011 = vmatprep.subr.mxu0 0.0
    %2012 = vmatpush1.msra.mxu0 0.0
    %2013 = vmatprep.subr.mxu0 0.0
    %2014 = vmatpush1.msra.mxu0 0.0
    %2015 = vmatprep.subr.mxu0 0.0
    %2016 = vmatpush1.msra.mxu0 0.0
    %2017 = vmatprep.subr.mxu0 0.0
    %2018 = vmatpush1.msra.mxu0 0.0
    %2019 = vmatprep.subr.mxu0 0.0
    %2020 = vmatpush1.msra.mxu0 0.0
    %2021 = vmatprep.subr.mxu0 0.0
    %2022 = vmatpush1.msra.mxu0 0.0
    %2023 = vmatprep.subr.mxu0 0.0
    %2024 = vmatpush1.msra.mxu0 0.0
    %2025 = vmatprep.subr.mxu0 0.0
    %2026 = vmatpush1.msra.mxu0 0.0
    %2027 = vmatprep.subr.mxu0 0.0
    %2028 = vmatpush1.msra.mxu0 0.0
    %2029 = vmatprep.subr.mxu0 0.0
    %2030 = vmatpush1.msra.mxu0 0.0
    %2031 = vmatprep.subr.mxu0 0.0
    %2032 = vmatpush1.msra.mxu0 0.0
    %2033 = vmatprep.subr.mxu0 0.0
    %2034 = vmatpush1.msra.mxu0 0.0
    %2035 = vmatprep.subr.mxu0 0.0
    %2036 = vmatpush1.msra.mxu0 0.0
    %2037 = vmatprep.subr.mxu0 0.0
    %2038 = vmatpush1.msra.mxu0 0.0
    %2039 = vmatprep.subr.mxu0 0.0
    %2040 = vmatpush1.msra.mxu0 0.0
    %2041 = vmatprep.subr.mxu0 0.0
    %2042 = vmatpush1.msra.mxu0 0.0
    %2043 = vmatprep.subr.mxu0 0.0
    %2044 = vmatpush1.msra.mxu0 0.0
    %2045 = vmatprep.subr.mxu0 0.0
    %2046 = vmatpush1.msra.mxu0 0.0
    %2047 = vmatprep.subr.mxu0 0.0
    %2048 = vmatpush1.msra.mxu0 0.0
    %2049 = vmatprep.subr.mxu0 0.0
    %2050 = vmatpush1.msra.mxu0 0.0
    %2051 = vmatprep.subr.mxu0 0.0
    %2052 = vmatpush1.msra.mxu0 0.0
    %2053 = vmatprep.subr.mxu0 0.0
    %2054 = vmatpush1.msra.mxu0 0.0
    %2055 = vmatprep.subr.mxu0 0.0
    %2056 = vmatpush1.msra.mxu0 0.0
    %2057 = vmatprep.subr.mxu0 0.0
    %2058 = vmatpush1.msra.mxu0 0.0
    %2059 = vmatprep.subr.mxu0 0.0
    %2060 = vmatpush1.msra.mxu0 0.0
    %2061 = vmatprep.subr.mxu0 0.0
    %2062 = vmatpush1.msra.mxu0 0.0
    %2063 = vmatprep.subr.mxu0 0.0
    %2064 = vmatpush1.msra.mxu0 0.0
    %2065 = vmatprep.subr.mxu0 0.0
    %2066 = vmatpush1.msra.mxu0 0.0
    %2067 = vmatprep.subr.mxu0 0.0
    %2068 = vmatpush1.msra.mxu0 0.0
    %2069 = vmatprep.subr.mxu0 0.0
    %2070 = vmatpush1.msra.mxu0 0.0
    %2071 = vmatprep.mubr.f32.mxu0 0.0
    %2072 = vmatmul.mubr.f32.gmra.mrb[0].mxu0 %v2005
    %v2073 = vpop.f32.mrb[0].mxu0
    %v2074 = vadd.f32 0.0, %v2073
    %v2075 = vpop.f32.mrb[0].mxu0
    %2076 = vdwg.mxu0
    %v2078 = vsel %vm758, %v1542, 0
    %vm2080 = vcmask 1043456
    %v2082 = vsel %vm2080, %v747, 0
    %2084 = vmatprep.subr.mxu0 0.0
    %2085 = vmatpush1.msra.mxu0 %v2082
    %2086 = vmatprep.subr.mxu0 0.0
    %2087 = vmatpush1.msra.mxu0 0.0
    %2088 = vmatprep.subr.mxu0 0.0
    %2089 = vmatpush1.msra.mxu0 0.0
    %2090 = vmatprep.subr.mxu0 0.0
    %2091 = vmatpush1.msra.mxu0 0.0
    %2092 = vmatprep.subr.mxu0 0.0
    %2093 = vmatpush1.msra.mxu0 0.0
    %2094 = vmatprep.subr.mxu0 0.0
    %2095 = vmatpush1.msra.mxu0 0.0
    %2096 = vmatprep.subr.mxu0 0.0
    %2097 = vmatpush1.msra.mxu0 0.0
    %2098 = vmatprep.subr.mxu0 0.0
    %2099 = vmatpush1.msra.mxu0 0.0
    %2100 = vmatprep.subr.mxu0 0.0
    %2101 = vmatpush1.msra.mxu0 0.0
    %2102 = vmatprep.subr.mxu0 0.0
    %2103 = vmatpush1.msra.mxu0 0.0
    %2104 = vmatprep.subr.mxu0 0.0
    %2105 = vmatpush1.msra.mxu0 0.0
    %2106 = vmatprep.subr.mxu0 0.0
    %2107 = vmatpush1.msra.mxu0 0.0
    %2108 = vmatprep.subr.mxu0 0.0
    %2109 = vmatpush1.msra.mxu0 0.0
    %2110 = vmatprep.subr.mxu0 0.0
    %2111 = vmatpush1.msra.mxu0 0.0
    %2112 = vmatprep.subr.mxu0 0.0
    %2113 = vmatpush1.msra.mxu0 0.0
    %2114 = vmatprep.subr.mxu0 0.0
    %2115 = vmatpush1.msra.mxu0 0.0
    %2116 = vmatprep.subr.mxu0 0.0
    %2117 = vmatpush1.msra.mxu0 0.0
    %2118 = vmatprep.subr.mxu0 0.0
    %2119 = vmatpush1.msra.mxu0 0.0
    %2120 = vmatprep.subr.mxu0 0.0
    %2121 = vmatpush1.msra.mxu0 0.0
    %2122 = vmatprep.subr.mxu0 0.0
    %2123 = vmatpush1.msra.mxu0 0.0
    %2124 = vmatprep.subr.mxu0 0.0
    %2125 = vmatpush1.msra.mxu0 0.0
    %2126 = vmatprep.subr.mxu0 0.0
    %2127 = vmatpush1.msra.mxu0 0.0
    %2128 = vmatprep.subr.mxu0 0.0
    %2129 = vmatpush1.msra.mxu0 0.0
    %2130 = vmatprep.subr.mxu0 0.0
    %2131 = vmatpush1.msra.mxu0 0.0
    %2132 = vmatprep.subr.mxu0 0.0
    %2133 = vmatpush1.msra.mxu0 0.0
    %2134 = vmatprep.subr.mxu0 0.0
    %2135 = vmatpush1.msra.mxu0 0.0
    %2136 = vmatprep.subr.mxu0 0.0
    %2137 = vmatpush1.msra.mxu0 0.0
    %2138 = vmatprep.subr.mxu0 0.0
    %2139 = vmatpush1.msra.mxu0 0.0
    %2140 = vmatprep.subr.mxu0 0.0
    %2141 = vmatpush1.msra.mxu0 0.0
    %2142 = vmatprep.subr.mxu0 0.0
    %2143 = vmatpush1.msra.mxu0 0.0
    %2144 = vmatprep.subr.mxu0 0.0
    %2145 = vmatpush1.msra.mxu0 0.0
    %2146 = vmatprep.subr.mxu0 0.0
    %2147 = vmatpush1.msra.mxu0 0.0
    %2148 = vmatprep.mubr.f32.mxu0 0.0
    %2149 = vmatmul.mubr.f32.gmra.mrb[0].mxu0 %v2078
    %v2150 = vpop.f32.mrb[0].mxu0
    %v2151 = vadd.f32 0.0, %v2150
    %v2152 = vpop.f32.mrb[0].mxu0
    %2153 = vdwg.mxu0
    %v2155 = vsel %vm758, %v1618, 0
    %v2158 = vsel %vm2080, %v748, 0
    %2160 = vmatprep.subr.mxu0 0.0
    %2161 = vmatpush1.msra.mxu0 %v2158
    %2162 = vmatprep.subr.mxu0 0.0
    %2163 = vmatpush1.msra.mxu0 0.0
    %2164 = vmatprep.subr.mxu0 0.0
    %2165 = vmatpush1.msra.mxu0 0.0
    %2166 = vmatprep.subr.mxu0 0.0
    %2167 = vmatpush1.msra.mxu0 0.0
    %2168 = vmatprep.subr.mxu0 0.0
    %2169 = vmatpush1.msra.mxu0 0.0
    %2170 = vmatprep.subr.mxu0 0.0
    %2171 = vmatpush1.msra.mxu0 0.0
    %2172 = vmatprep.subr.mxu0 0.0
    %2173 = vmatpush1.msra.mxu0 0.0
    %2174 = vmatprep.subr.mxu0 0.0
    %2175 = vmatpush1.msra.mxu0 0.0
    %2176 = vmatprep.subr.mxu0 0.0
    %2177 = vmatpush1.msra.mxu0 0.0
    %2178 = vmatprep.subr.mxu0 0.0
    %2179 = vmatpush1.msra.mxu0 0.0
    %2180 = vmatprep.subr.mxu0 0.0
    %2181 = vmatpush1.msra.mxu0 0.0
    %2182 = vmatprep.subr.mxu0 0.0
    %2183 = vmatpush1.msra.mxu0 0.0
    %2184 = vmatprep.subr.mxu0 0.0
    %2185 = vmatpush1.msra.mxu0 0.0
    %2186 = vmatprep.subr.mxu0 0.0
    %2187 = vmatpush1.msra.mxu0 0.0
    %2188 = vmatprep.subr.mxu0 0.0
    %2189 = vmatpush1.msra.mxu0 0.0
    %2190 = vmatprep.subr.mxu0 0.0
    %2191 = vmatpush1.msra.mxu0 0.0
    %2192 = vmatprep.subr.mxu0 0.0
    %2193 = vmatpush1.msra.mxu0 0.0
    %2194 = vmatprep.subr.mxu0 0.0
    %2195 = vmatpush1.msra.mxu0 0.0
    %2196 = vmatprep.subr.mxu0 0.0
    %2197 = vmatpush1.msra.mxu0 0.0
    %2198 = vmatprep.subr.mxu0 0.0
    %2199 = vmatpush1.msra.mxu0 0.0
    %2200 = vmatprep.subr.mxu0 0.0
    %2201 = vmatpush1.msra.mxu0 0.0
    %2202 = vmatprep.subr.mxu0 0.0
    %2203 = vmatpush1.msra.mxu0 0.0
    %2204 = vmatprep.subr.mxu0 0.0
    %2205 = vmatpush1.msra.mxu0 0.0
    %2206 = vmatprep.subr.mxu0 0.0
    %2207 = vmatpush1.msra.mxu0 0.0
    %2208 = vmatprep.subr.mxu0 0.0
    %2209 = vmatpush1.msra.mxu0 0.0
    %2210 = vmatprep.subr.mxu0 0.0
    %2211 = vmatpush1.msra.mxu0 0.0
    %2212 = vmatprep.subr.mxu0 0.0
    %2213 = vmatpush1.msra.mxu0 0.0
    %2214 = vmatprep.subr.mxu0 0.0
    %2215 = vmatpush1.msra.mxu0 0.0
    %2216 = vmatprep.subr.mxu0 0.0
    %2217 = vmatpush1.msra.mxu0 0.0
    %2218 = vmatprep.subr.mxu0 0.0
    %2219 = vmatpush1.msra.mxu0 0.0
    %2220 = vmatprep.subr.mxu0 0.0
    %2221 = vmatpush1.msra.mxu0 0.0
    %2222 = vmatprep.subr.mxu0 0.0
    %2223 = vmatpush1.msra.mxu0 0.0
    %2224 = vmatprep.mubr.f32.mxu0 0.0
    %2225 = vmatmul.mubr.f32.gmra.mrb[0].mxu0 %v2155
    %v2226 = vpop.f32.mrb[0].mxu0
    %v2227 = vadd.f32 0.0, %v2226
    %v2228 = vpop.f32.mrb[0].mxu0
    %2229 = vdwg.mxu0
    %v2231 = vsel %vm758, %v1694, 0
    %v2234 = vsel %vm2080, %v749, 0
    %2236 = vmatprep.subr.mxu0 0.0
    %2237 = vmatpush1.msra.mxu0 %v2234
    %2238 = vmatprep.subr.mxu0 0.0
    %2239 = vmatpush1.msra.mxu0 0.0
    %2240 = vmatprep.subr.mxu0 0.0
    %2241 = vmatpush1.msra.mxu0 0.0
    %2242 = vmatprep.subr.mxu0 0.0
    %2243 = vmatpush1.msra.mxu0 0.0
    %2244 = vmatprep.subr.mxu0 0.0
    %2245 = vmatpush1.msra.mxu0 0.0
    %2246 = vmatprep.subr.mxu0 0.0
    %2247 = vmatpush1.msra.mxu0 0.0
    %2248 = vmatprep.subr.mxu0 0.0
    %2249 = vmatpush1.msra.mxu0 0.0
    %2250 = vmatprep.subr.mxu0 0.0
    %2251 = vmatpush1.msra.mxu0 0.0
    %2252 = vmatprep.subr.mxu0 0.0
    %2253 = vmatpush1.msra.mxu0 0.0
    %2254 = vmatprep.subr.mxu0 0.0
    %2255 = vmatpush1.msra.mxu0 0.0
    %2256 = vmatprep.subr.mxu0 0.0
    %2257 = vmatpush1.msra.mxu0 0.0
    %2258 = vmatprep.subr.mxu0 0.0
    %2259 = vmatpush1.msra.mxu0 0.0
    %2260 = vmatprep.subr.mxu0 0.0
    %2261 = vmatpush1.msra.mxu0 0.0
    %2262 = vmatprep.subr.mxu0 0.0
    %2263 = vmatpush1.msra.mxu0 0.0
    %2264 = vmatprep.subr.mxu0 0.0
    %2265 = vmatpush1.msra.mxu0 0.0
    %2266 = vmatprep.subr.mxu0 0.0
    %2267 = vmatpush1.msra.mxu0 0.0
    %2268 = vmatprep.subr.mxu0 0.0
    %2269 = vmatpush1.msra.mxu0 0.0
    %2270 = vmatprep.subr.mxu0 0.0
    %2271 = vmatpush1.msra.mxu0 0.0
    %2272 = vmatprep.subr.mxu0 0.0
    %2273 = vmatpush1.msra.mxu0 0.0
    %2274 = vmatprep.subr.mxu0 0.0
    %2275 = vmatpush1.msra.mxu0 0.0
    %2276 = vmatprep.subr.mxu0 0.0
    %2277 = vmatpush1.msra.mxu0 0.0
    %2278 = vmatprep.subr.mxu0 0.0
    %2279 = vmatpush1.msra.mxu0 0.0
    %2280 = vmatprep.subr.mxu0 0.0
    %2281 = vmatpush1.msra.mxu0 0.0
    %2282 = vmatprep.subr.mxu0 0.0
    %2283 = vmatpush1.msra.mxu0 0.0
    %2284 = vmatprep.subr.mxu0 0.0
    %2285 = vmatpush1.msra.mxu0 0.0
    %2286 = vmatprep.subr.mxu0 0.0
    %2287 = vmatpush1.msra.mxu0 0.0
    %2288 = vmatprep.subr.mxu0 0.0
    %2289 = vmatpush1.msra.mxu0 0.0
    %2290 = vmatprep.subr.mxu0 0.0
    %2291 = vmatpush1.msra.mxu0 0.0
    %2292 = vmatprep.subr.mxu0 0.0
    %2293 = vmatpush1.msra.mxu0 0.0
    %2294 = vmatprep.subr.mxu0 0.0
    %2295 = vmatpush1.msra.mxu0 0.0
    %2296 = vmatprep.subr.mxu0 0.0
    %2297 = vmatpush1.msra.mxu0 0.0
    %2298 = vmatprep.subr.mxu0 0.0
    %2299 = vmatpush1.msra.mxu0 0.0
    %2300 = vmatprep.mubr.f32.mxu0 0.0
    %2301 = vmatmul.mubr.f32.gmra.mrb[0].mxu0 %v2231
    %v2302 = vpop.f32.mrb[0].mxu0
    %v2303 = vadd.f32 0.0, %v2302
    %v2304 = vpop.f32.mrb[0].mxu0
    %2305 = vdwg.mxu0
    %v2307 = vsel %vm758, %v1770, 0
    %v2310 = vsel %vm2080, %v750, 0
    %2312 = vmatprep.subr.mxu0 0.0
    %2313 = vmatpush1.msra.mxu0 %v2310
    %2314 = vmatprep.subr.mxu0 0.0
    %2315 = vmatpush1.msra.mxu0 0.0
    %2316 = vmatprep.subr.mxu0 0.0
    %2317 = vmatpush1.msra.mxu0 0.0
    %2318 = vmatprep.subr.mxu0 0.0
    %2319 = vmatpush1.msra.mxu0 0.0
    %2320 = vmatprep.subr.mxu0 0.0
    %2321 = vmatpush1.msra.mxu0 0.0
    %2322 = vmatprep.subr.mxu0 0.0
    %2323 = vmatpush1.msra.mxu0 0.0
    %2324 = vmatprep.subr.mxu0 0.0
    %2325 = vmatpush1.msra.mxu0 0.0
    %2326 = vmatprep.subr.mxu0 0.0
    %2327 = vmatpush1.msra.mxu0 0.0
    %2328 = vmatprep.subr.mxu0 0.0
    %2329 = vmatpush1.msra.mxu0 0.0
    %2330 = vmatprep.subr.mxu0 0.0
    %2331 = vmatpush1.msra.mxu0 0.0
    %2332 = vmatprep.subr.mxu0 0.0
    %2333 = vmatpush1.msra.mxu0 0.0
    %2334 = vmatprep.subr.mxu0 0.0
    %2335 = vmatpush1.msra.mxu0 0.0
    %2336 = vmatprep.subr.mxu0 0.0
    %2337 = vmatpush1.msra.mxu0 0.0
    %2338 = vmatprep.subr.mxu0 0.0
    %2339 = vmatpush1.msra.mxu0 0.0
    %2340 = vmatprep.subr.mxu0 0.0
    %2341 = vmatpush1.msra.mxu0 0.0
    %2342 = vmatprep.subr.mxu0 0.0
    %2343 = vmatpush1.msra.mxu0 0.0
    %2344 = vmatprep.subr.mxu0 0.0
    %2345 = vmatpush1.msra.mxu0 0.0
    %2346 = vmatprep.subr.mxu0 0.0
    %2347 = vmatpush1.msra.mxu0 0.0
    %2348 = vmatprep.subr.mxu0 0.0
    %2349 = vmatpush1.msra.mxu0 0.0
    %2350 = vmatprep.subr.mxu0 0.0
    %2351 = vmatpush1.msra.mxu0 0.0
    %2352 = vmatprep.subr.mxu0 0.0
    %2353 = vmatpush1.msra.mxu0 0.0
    %2354 = vmatprep.subr.mxu0 0.0
    %2355 = vmatpush1.msra.mxu0 0.0
    %2356 = vmatprep.subr.mxu0 0.0
    %2357 = vmatpush1.msra.mxu0 0.0
    %2358 = vmatprep.subr.mxu0 0.0
    %2359 = vmatpush1.msra.mxu0 0.0
    %2360 = vmatprep.subr.mxu0 0.0
    %2361 = vmatpush1.msra.mxu0 0.0
    %2362 = vmatprep.subr.mxu0 0.0
    %2363 = vmatpush1.msra.mxu0 0.0
    %2364 = vmatprep.subr.mxu0 0.0
    %2365 = vmatpush1.msra.mxu0 0.0
    %2366 = vmatprep.subr.mxu0 0.0
    %2367 = vmatpush1.msra.mxu0 0.0
    %2368 = vmatprep.subr.mxu0 0.0
    %2369 = vmatpush1.msra.mxu0 0.0
    %2370 = vmatprep.subr.mxu0 0.0
    %2371 = vmatpush1.msra.mxu0 0.0
    %2372 = vmatprep.subr.mxu0 0.0
    %2373 = vmatpush1.msra.mxu0 0.0
    %2374 = vmatprep.subr.mxu0 0.0
    %2375 = vmatpush1.msra.mxu0 0.0
    %2376 = vmatprep.mubr.f32.mxu0 0.0
    %2377 = vmatmul.mubr.f32.gmra.mrb[0].mxu0 %v2307
    %v2378 = vpop.f32.mrb[0].mxu0
    %v2379 = vadd.f32 0.0, %v2378
    %v2380 = vpop.f32.mrb[0].mxu0
    %2381 = vdwg.mxu0
    %v2383 = vsel %vm758, %v1846, 0
    %v2386 = vsel %vm2080, %v751, 0
    %2388 = vmatprep.subr.mxu0 0.0
    %2389 = vmatpush1.msra.mxu0 %v2386
    %2390 = vmatprep.subr.mxu0 0.0
    %2391 = vmatpush1.msra.mxu0 0.0
    %2392 = vmatprep.subr.mxu0 0.0
    %2393 = vmatpush1.msra.mxu0 0.0
    %2394 = vmatprep.subr.mxu0 0.0
    %2395 = vmatpush1.msra.mxu0 0.0
    %2396 = vmatprep.subr.mxu0 0.0
    %2397 = vmatpush1.msra.mxu0 0.0
    %2398 = vmatprep.subr.mxu0 0.0
    %2399 = vmatpush1.msra.mxu0 0.0
    %2400 = vmatprep.subr.mxu0 0.0
    %2401 = vmatpush1.msra.mxu0 0.0
    %2402 = vmatprep.subr.mxu0 0.0
    %2403 = vmatpush1.msra.mxu0 0.0
    %2404 = vmatprep.subr.mxu0 0.0
    %2405 = vmatpush1.msra.mxu0 0.0
    %2406 = vmatprep.subr.mxu0 0.0
    %2407 = vmatpush1.msra.mxu0 0.0
    %2408 = vmatprep.subr.mxu0 0.0
    %2409 = vmatpush1.msra.mxu0 0.0
    %2410 = vmatprep.subr.mxu0 0.0
    %2411 = vmatpush1.msra.mxu0 0.0
    %2412 = vmatprep.subr.mxu0 0.0
    %2413 = vmatpush1.msra.mxu0 0.0
    %2414 = vmatprep.subr.mxu0 0.0
    %2415 = vmatpush1.msra.mxu0 0.0
    %2416 = vmatprep.subr.mxu0 0.0
    %2417 = vmatpush1.msra.mxu0 0.0
    %2418 = vmatprep.subr.mxu0 0.0
    %2419 = vmatpush1.msra.mxu0 0.0
    %2420 = vmatprep.subr.mxu0 0.0
    %2421 = vmatpush1.msra.mxu0 0.0
    %2422 = vmatprep.subr.mxu0 0.0
    %2423 = vmatpush1.msra.mxu0 0.0
    %2424 = vmatprep.subr.mxu0 0.0
    %2425 = vmatpush1.msra.mxu0 0.0
    %2426 = vmatprep.subr.mxu0 0.0
    %2427 = vmatpush1.msra.mxu0 0.0
    %2428 = vmatprep.subr.mxu0 0.0
    %2429 = vmatpush1.msra.mxu0 0.0
    %2430 = vmatprep.subr.mxu0 0.0
    %2431 = vmatpush1.msra.mxu0 0.0
    %2432 = vmatprep.subr.mxu0 0.0
    %2433 = vmatpush1.msra.mxu0 0.0
    %2434 = vmatprep.subr.mxu0 0.0
    %2435 = vmatpush1.msra.mxu0 0.0
    %2436 = vmatprep.subr.mxu0 0.0
    %2437 = vmatpush1.msra.mxu0 0.0
    %2438 = vmatprep.subr.mxu0 0.0
    %2439 = vmatpush1.msra.mxu0 0.0
    %2440 = vmatprep.subr.mxu0 0.0
    %2441 = vmatpush1.msra.mxu0 0.0
    %2442 = vmatprep.subr.mxu0 0.0
    %2443 = vmatpush1.msra.mxu0 0.0
    %2444 = vmatprep.subr.mxu0 0.0
    %2445 = vmatpush1.msra.mxu0 0.0
    %2446 = vmatprep.subr.mxu0 0.0
    %2447 = vmatpush1.msra.mxu0 0.0
    %2448 = vmatprep.subr.mxu0 0.0
    %2449 = vmatpush1.msra.mxu0 0.0
    %2450 = vmatprep.subr.mxu0 0.0
    %2451 = vmatpush1.msra.mxu0 0.0
    %2452 = vmatprep.mubr.f32.mxu0 0.0
    %2453 = vmatmul.mubr.f32.gmra.mrb[0].mxu0 %v2383
    %v2454 = vpop.f32.mrb[0].mxu0
    %v2455 = vadd.f32 0.0, %v2454
    %v2456 = vpop.f32.mrb[0].mxu0
    %2457 = vdwg.mxu0
    %v2459 = vsel %vm758, %v1922, 0
    %v2462 = vsel %vm2080, %v752, 0
    %2464 = vmatprep.subr.mxu0 0.0
    %2465 = vmatpush1.msra.mxu0 %v2462
    %2466 = vmatprep.subr.mxu0 0.0
    %2467 = vmatpush1.msra.mxu0 0.0
    %2468 = vmatprep.subr.mxu0 0.0
    %2469 = vmatpush1.msra.mxu0 0.0
    %2470 = vmatprep.subr.mxu0 0.0
    %2471 = vmatpush1.msra.mxu0 0.0
    %2472 = vmatprep.subr.mxu0 0.0
    %2473 = vmatpush1.msra.mxu0 0.0
    %2474 = vmatprep.subr.mxu0 0.0
    %2475 = vmatpush1.msra.mxu0 0.0
    %2476 = vmatprep.subr.mxu0 0.0
    %2477 = vmatpush1.msra.mxu0 0.0
    %2478 = vmatprep.subr.mxu0 0.0
    %2479 = vmatpush1.msra.mxu0 0.0
    %2480 = vmatprep.subr.mxu0 0.0
    %2481 = vmatpush1.msra.mxu0 0.0
    %2482 = vmatprep.subr.mxu0 0.0
    %2483 = vmatpush1.msra.mxu0 0.0
    %2484 = vmatprep.subr.mxu0 0.0
    %2485 = vmatpush1.msra.mxu0 0.0
    %2486 = vmatprep.subr.mxu0 0.0
    %2487 = vmatpush1.msra.mxu0 0.0
    %2488 = vmatprep.subr.mxu0 0.0
    %2489 = vmatpush1.msra.mxu0 0.0
    %2490 = vmatprep.subr.mxu0 0.0
    %2491 = vmatpush1.msra.mxu0 0.0
    %2492 = vmatprep.subr.mxu0 0.0
    %2493 = vmatpush1.msra.mxu0 0.0
    %2494 = vmatprep.subr.mxu0 0.0
    %2495 = vmatpush1.msra.mxu0 0.0
    %2496 = vmatprep.subr.mxu0 0.0
    %2497 = vmatpush1.msra.mxu0 0.0
    %2498 = vmatprep.subr.mxu0 0.0
    %2499 = vmatpush1.msra.mxu0 0.0
    %2500 = vmatprep.subr.mxu0 0.0
    %2501 = vmatpush1.msra.mxu0 0.0
    %2502 = vmatprep.subr.mxu0 0.0
    %2503 = vmatpush1.msra.mxu0 0.0
    %2504 = vmatprep.subr.mxu0 0.0
    %2505 = vmatpush1.msra.mxu0 0.0
    %2506 = vmatprep.subr.mxu0 0.0
    %2507 = vmatpush1.msra.mxu0 0.0
    %2508 = vmatprep.subr.mxu0 0.0
    %2509 = vmatpush1.msra.mxu0 0.0
    %2510 = vmatprep.subr.mxu0 0.0
    %2511 = vmatpush1.msra.mxu0 0.0
    %2512 = vmatprep.subr.mxu0 0.0
    %2513 = vmatpush1.msra.mxu0 0.0
    %2514 = vmatprep.subr.mxu0 0.0
    %2515 = vmatpush1.msra.mxu0 0.0
    %2516 = vmatprep.subr.mxu0 0.0
    %2517 = vmatpush1.msra.mxu0 0.0
    %2518 = vmatprep.subr.mxu0 0.0
    %2519 = vmatpush1.msra.mxu0 0.0
    %2520 = vmatprep.subr.mxu0 0.0
    %2521 = vmatpush1.msra.mxu0 0.0
    %2522 = vmatprep.subr.mxu0 0.0
    %2523 = vmatpush1.msra.mxu0 0.0
    %2524 = vmatprep.subr.mxu0 0.0
    %2525 = vmatpush1.msra.mxu0 0.0
    %2526 = vmatprep.subr.mxu0 0.0
    %2527 = vmatpush1.msra.mxu0 0.0
    %2528 = vmatprep.mubr.f32.mxu0 0.0
    %2529 = vmatmul.mubr.f32.gmra.mrb[0].mxu0 %v2459
    %v2530 = vpop.f32.mrb[0].mxu0
    %v2531 = vadd.f32 0.0, %v2530
    %v2532 = vpop.f32.mrb[0].mxu0
    %2533 = vdwg.mxu0
    %v2535 = vsel %vm758, %v1998, 0
    %v2538 = vsel %vm2080, %v753, 0
    %2540 = vmatprep.subr.mxu0 0.0
    %2541 = vmatpush1.msra.mxu0 %v2538
    %2542 = vmatprep.subr.mxu0 0.0
    %2543 = vmatpush1.msra.mxu0 0.0
    %2544 = vmatprep.subr.mxu0 0.0
    %2545 = vmatpush1.msra.mxu0 0.0
    %2546 = vmatprep.subr.mxu0 0.0
    %2547 = vmatpush1.msra.mxu0 0.0
    %2548 = vmatprep.subr.mxu0 0.0
    %2549 = vmatpush1.msra.mxu0 0.0
    %2550 = vmatprep.subr.mxu0 0.0
    %2551 = vmatpush1.msra.mxu0 0.0
    %2552 = vmatprep.subr.mxu0 0.0
    %2553 = vmatpush1.msra.mxu0 0.0
    %2554 = vmatprep.subr.mxu0 0.0
    %2555 = vmatpush1.msra.mxu0 0.0
    %2556 = vmatprep.subr.mxu0 0.0
    %2557 = vmatpush1.msra.mxu0 0.0
    %2558 = vmatprep.subr.mxu0 0.0
    %2559 = vmatpush1.msra.mxu0 0.0
    %2560 = vmatprep.subr.mxu0 0.0
    %2561 = vmatpush1.msra.mxu0 0.0
    %2562 = vmatprep.subr.mxu0 0.0
    %2563 = vmatpush1.msra.mxu0 0.0
    %2564 = vmatprep.subr.mxu0 0.0
    %2565 = vmatpush1.msra.mxu0 0.0
    %2566 = vmatprep.subr.mxu0 0.0
    %2567 = vmatpush1.msra.mxu0 0.0
    %2568 = vmatprep.subr.mxu0 0.0
    %2569 = vmatpush1.msra.mxu0 0.0
    %2570 = vmatprep.subr.mxu0 0.0
    %2571 = vmatpush1.msra.mxu0 0.0
    %2572 = vmatprep.subr.mxu0 0.0
    %2573 = vmatpush1.msra.mxu0 0.0
    %2574 = vmatprep.subr.mxu0 0.0
    %2575 = vmatpush1.msra.mxu0 0.0
    %2576 = vmatprep.subr.mxu0 0.0
    %2577 = vmatpush1.msra.mxu0 0.0
    %2578 = vmatprep.subr.mxu0 0.0
    %2579 = vmatpush1.msra.mxu0 0.0
    %2580 = vmatprep.subr.mxu0 0.0
    %2581 = vmatpush1.msra.mxu0 0.0
    %2582 = vmatprep.subr.mxu0 0.0
    %2583 = vmatpush1.msra.mxu0 0.0
    %2584 = vmatprep.subr.mxu0 0.0
    %2585 = vmatpush1.msra.mxu0 0.0
    %2586 = vmatprep.subr.mxu0 0.0
    %2587 = vmatpush1.msra.mxu0 0.0
    %2588 = vmatprep.subr.mxu0 0.0
    %2589 = vmatpush1.msra.mxu0 0.0
    %2590 = vmatprep.subr.mxu0 0.0
    %2591 = vmatpush1.msra.mxu0 0.0
    %2592 = vmatprep.subr.mxu0 0.0
    %2593 = vmatpush1.msra.mxu0 0.0
    %2594 = vmatprep.subr.mxu0 0.0
    %2595 = vmatpush1.msra.mxu0 0.0
    %2596 = vmatprep.subr.mxu0 0.0
    %2597 = vmatpush1.msra.mxu0 0.0
    %2598 = vmatprep.subr.mxu0 0.0
    %2599 = vmatpush1.msra.mxu0 0.0
    %2600 = vmatprep.subr.mxu0 0.0
    %2601 = vmatpush1.msra.mxu0 0.0
    %2602 = vmatprep.subr.mxu0 0.0
    %2603 = vmatpush1.msra.mxu0 0.0
    %2604 = vmatprep.mubr.f32.mxu0 0.0
    %2605 = vmatmul.mubr.f32.gmra.mrb[0].mxu0 %v2535
    %v2606 = vpop.f32.mrb[0].mxu0
    %v2607 = vadd.f32 0.0, %v2606
    %v2608 = vpop.f32.mrb[0].mxu0
    %2609 = vdwg.mxu0
    %v2611 = vsel %vm758, %v2074, 0
    %v2614 = vsel %vm2080, %v754, 0
    %2616 = vmatprep.subr.mxu0 0.0
    %2617 = vmatpush1.msra.mxu0 %v2614
    %2618 = vmatprep.subr.mxu0 0.0
    %2619 = vmatpush1.msra.mxu0 0.0
    %2620 = vmatprep.subr.mxu0 0.0
    %2621 = vmatpush1.msra.mxu0 0.0
    %2622 = vmatprep.subr.mxu0 0.0
    %2623 = vmatpush1.msra.mxu0 0.0
    %2624 = vmatprep.subr.mxu0 0.0
    %2625 = vmatpush1.msra.mxu0 0.0
    %2626 = vmatprep.subr.mxu0 0.0
    %2627 = vmatpush1.msra.mxu0 0.0
    %2628 = vmatprep.subr.mxu0 0.0
    %2629 = vmatpush1.msra.mxu0 0.0
    %2630 = vmatprep.subr.mxu0 0.0
    %2631 = vmatpush1.msra.mxu0 0.0
    %2632 = vmatprep.subr.mxu0 0.0
    %2633 = vmatpush1.msra.mxu0 0.0
    %2634 = vmatprep.subr.mxu0 0.0
    %2635 = vmatpush1.msra.mxu0 0.0
    %2636 = vmatprep.subr.mxu0 0.0
    %2637 = vmatpush1.msra.mxu0 0.0
    %2638 = vmatprep.subr.mxu0 0.0
    %2639 = vmatpush1.msra.mxu0 0.0
    %2640 = vmatprep.subr.mxu0 0.0
    %2641 = vmatpush1.msra.mxu0 0.0
    %2642 = vmatprep.subr.mxu0 0.0
    %2643 = vmatpush1.msra.mxu0 0.0
    %2644 = vmatprep.subr.mxu0 0.0
    %2645 = vmatpush1.msra.mxu0 0.0
    %2646 = vmatprep.subr.mxu0 0.0
    %2647 = vmatpush1.msra.mxu0 0.0
    %2648 = vmatprep.subr.mxu0 0.0
    %2649 = vmatpush1.msra.mxu0 0.0
    %2650 = vmatprep.subr.mxu0 0.0
    %2651 = vmatpush1.msra.mxu0 0.0
    %2652 = vmatprep.subr.mxu0 0.0
    %2653 = vmatpush1.msra.mxu0 0.0
    %2654 = vmatprep.subr.mxu0 0.0
    %2655 = vmatpush1.msra.mxu0 0.0
    %2656 = vmatprep.subr.mxu0 0.0
    %2657 = vmatpush1.msra.mxu0 0.0
    %2658 = vmatprep.subr.mxu0 0.0
    %2659 = vmatpush1.msra.mxu0 0.0
    %2660 = vmatprep.subr.mxu0 0.0
    %2661 = vmatpush1.msra.mxu0 0.0
    %2662 = vmatprep.subr.mxu0 0.0
    %2663 = vmatpush1.msra.mxu0 0.0
    %2664 = vmatprep.subr.mxu0 0.0
    %2665 = vmatpush1.msra.mxu0 0.0
    %2666 = vmatprep.subr.mxu0 0.0
    %2667 = vmatpush1.msra.mxu0 0.0
    %2668 = vmatprep.subr.mxu0 0.0
    %2669 = vmatpush1.msra.mxu0 0.0
    %2670 = vmatprep.subr.mxu0 0.0
    %2671 = vmatpush1.msra.mxu0 0.0
    %2672 = vmatprep.subr.mxu0 0.0
    %2673 = vmatpush1.msra.mxu0 0.0
    %2674 = vmatprep.subr.mxu0 0.0
    %2675 = vmatpush1.msra.mxu0 0.0
    %2676 = vmatprep.subr.mxu0 0.0
    %2677 = vmatpush1.msra.mxu0 0.0
    %2678 = vmatprep.subr.mxu0 0.0
    %2679 = vmatpush1.msra.mxu0 0.0
    %2680 = vmatprep.mubr.f32.mxu0 0.0
    %2681 = vmatmul.mubr.f32.gmra.mrb[0].mxu0 %v2611
    %v2682 = vpop.f32.mrb[0].mxu0
    %v2683 = vadd.f32 0.0, %v2682
    %v2684 = vpop.f32.mrb[0].mxu0
    %2685 = vdwg.mxu0
    %vm2686 = vcmask 261120
    %v2687 = vsel %vm2686, %v2151, 0.0
    %v2688 = vsel %vm2686, %v2227, 0.0
    %v2689 = vadd.f32 %v2687, %v2688
    %v2690 = vsel %vm2686, %v2303, 0.0
    %v2691 = vadd.f32 %v2689, %v2690
    %v2692 = vsel %vm2686, %v2379, 0.0
    %v2693 = vadd.f32 %v2691, %v2692
    %v2694 = vsel %vm2686, %v2455, 0.0
    %v2695 = vadd.f32 %v2693, %v2694
    %v2696 = vsel %vm2686, %v2531, 0.0
    %v2697 = vadd.f32 %v2695, %v2696
    %v2698 = vsel %vm2686, %v2607, 0.0
    %v2699 = vadd.f32 %v2697, %v2698
    %v2700 = vsel %vm2686, %v2683, 0.0
    %v2701 = vadd.f32 %v2699, %v2700
    %v2702 = vadd.f32 %v2701, %v26
    %v2703 = vsel %vm2686, %v2702, 0.0
    %2704 = vadd.xlane.f32.xlu0 %v2703
    %v2705 = vpop.xlane.xlu0 %2704
    %v2706 = vrcp.pop 32.0
    %v2707 = vmul.f32 %v2705, %v2706
    %v2708 = vsub.f32 %v2702, %v2707
    %v2709 = vmul.f32 %v2708, %v2708
    %v2710 = vsel %vm2686, %v2709, 0.0
    %2711 = vadd.xlane.f32.xlu0 %v2710
    %v2712 = vpop.xlane.xlu0 %2711
    %v2713 = vmul.f32 %v2712, %v2706
    %v2714 = vadd.f32 %v2713, 1e-05
    %v2715 = vrsqrt.pop %v2714
    %v2716 = vmul.f32 %v2708, %v2715
    %v2717 = vld [vmem:[%s4] sm:$0x1]
    %v2719 = vlaneseq
    %v2720 = vshrl.u32 %v2719, 7
    %v2721 = vsub.s32 0, %v2720
    %v2722 = vrot.slane %v2717, %v2721
    %v2724 = vmul.f32 %v2716, %v2722
    %v2725 = vld [vmem:[%s5] sm:$0x1]
    %v2727 = vlaneseq
    %v2728 = vshrl.u32 %v2727, 7
    %v2729 = vsub.s32 0, %v2728
    %v2730 = vrot.slane %v2725, %v2729
    %v2732 = vadd.f32 %v2724, %v2730
    %2733 = vst.msk [vmem:[#allocation2] sm:$0xff] %vm2686, %v2732
    %2735 = vrot.lane.b32.xlu0 %v203, 124
    %v2736 = vpop.permute.xlu0 %2735
    %v2738 = vsel %vm758, %v732, 0
    %v2740 = vsel %vm758, %v2736, 0
    %2742 = vmatprep.subr.mxu0 0.0
    %2743 = vmatpush1.xpose.msra.mxu0 %v2740
    %2744 = vmatprep.subr.mxu0 0.0
    %2745 = vmatpush1.xpose.msra.mxu0 0.0
    %2746 = vmatprep.subr.mxu0 0.0
    %2747 = vmatpush1.xpose.msra.mxu0 0.0
    %2748 = vmatprep.subr.mxu0 0.0
    %2749 = vmatpush1.xpose.msra.mxu0 0.0
    %2750 = vmatprep.subr.mxu0 0.0
    %2751 = vmatpush1.xpose.msra.mxu0 0.0
    %2752 = vmatprep.subr.mxu0 0.0
    %2753 = vmatpush1.xpose.msra.mxu0 0.0
    %2754 = vmatprep.subr.mxu0 0.0
    %2755 = vmatpush1.xpose.msra.mxu0 0.0
    %2756 = vmatprep.subr.mxu0 0.0
    %2757 = vmatpush1.xpose.msra.mxu0 0.0
    %2758 = vmatprep.subr.mxu0 0.0
    %2759 = vmatpush1.xpose.msra.mxu0 0.0
    %2760 = vmatprep.subr.mxu0 0.0
    %2761 = vmatpush1.xpose.msra.mxu0 0.0
    %2762 = vmatprep.subr.mxu0 0.0
    %2763 = vmatpush1.xpose.msra.mxu0 0.0
    %2764 = vmatprep.subr.mxu0 0.0
    %2765 = vmatpush1.xpose.msra.mxu0 0.0
    %2766 = vmatprep.subr.mxu0 0.0
    %2767 = vmatpush1.xpose.msra.mxu0 0.0
    %2768 = vmatprep.subr.mxu0 0.0
    %2769 = vmatpush1.xpose.msra.mxu0 0.0
    %2770 = vmatprep.subr.mxu0 0.0
    %2771 = vmatpush1.xpose.msra.mxu0 0.0
    %2772 = vmatprep.subr.mxu0 0.0
    %2773 = vmatpush1.xpose.msra.mxu0 0.0
    %2774 = vmatprep.subr.mxu0 0.0
    %2775 = vmatpush1.xpose.msra.mxu0 0.0
    %2776 = vmatprep.subr.mxu0 0.0
    %2777 = vmatpush1.xpose.msra.mxu0 0.0
    %2778 = vmatprep.subr.mxu0 0.0
    %2779 = vmatpush1.xpose.msra.mxu0 0.0
    %2780 = vmatprep.subr.mxu0 0.0
    %2781 = vmatpush1.xpose.msra.mxu0 0.0
    %2782 = vmatprep.subr.mxu0 0.0
    %2783 = vmatpush1.xpose.msra.mxu0 0.0
    %2784 = vmatprep.subr.mxu0 0.0
    %2785 = vmatpush1.xpose.msra.mxu0 0.0
    %2786 = vmatprep.subr.mxu0 0.0
    %2787 = vmatpush1.xpose.msra.mxu0 0.0
    %2788 = vmatprep.subr.mxu0 0.0
    %2789 = vmatpush1.xpose.msra.mxu0 0.0
    %2790 = vmatprep.subr.mxu0 0.0
    %2791 = vmatpush1.xpose.msra.mxu0 0.0
    %2792 = vmatprep.subr.mxu0 0.0
    %2793 = vmatpush1.xpose.msra.mxu0 0.0
    %2794 = vmatprep.subr.mxu0 0.0
    %2795 = vmatpush1.xpose.msra.mxu0 0.0
    %2796 = vmatprep.subr.mxu0 0.0
    %2797 = vmatpush1.xpose.msra.mxu0 0.0
    %2798 = vmatprep.subr.mxu0 0.0
    %2799 = vmatpush1.xpose.msra.mxu0 0.0
    %2800 = vmatprep.subr.mxu0 0.0
    %2801 = vmatpush1.xpose.msra.mxu0 0.0
    %2802 = vmatprep.subr.mxu0 0.0
    %2803 = vmatpush1.xpose.msra.mxu0 0.0
    %2804 = vmatprep.subr.mxu0 0.0
    %2805 = vmatpush1.xpose.msra.mxu0 0.0
    %2806 = vmatprep.mubr.f32.mxu0 0.0
    %2807 = vmatmul.mubr.f32.gmra.mrb[0].mxu0 %v2738
    %v2808 = vpop.f32.mrb[0].mxu0
    %v2809 = vadd.f32 0.0, %v2808
    %v2810 = vpop.f32.mrb[0].mxu0
    %2811 = vdwg.mxu0
    %2813 = vrot.lane.b32.xlu0 %v278, 124
    %v2814 = vpop.permute.xlu0 %2813
    %v2816 = vsel %vm758, %v734, 0
    %v2818 = vsel %vm758, %v2814, 0
    %2820 = vmatprep.subr.mxu0 0.0
    %2821 = vmatpush1.xpose.msra.mxu0 %v2818
    %2822 = vmatprep.subr.mxu0 0.0
    %2823 = vmatpush1.xpose.msra.mxu0 0.0
    %2824 = vmatprep.subr.mxu0 0.0
    %2825 = vmatpush1.xpose.msra.mxu0 0.0
    %2826 = vmatprep.subr.mxu0 0.0
    %2827 = vmatpush1.xpose.msra.mxu0 0.0
    %2828 = vmatprep.subr.mxu0 0.0
    %2829 = vmatpush1.xpose.msra.mxu0 0.0
    %2830 = vmatprep.subr.mxu0 0.0
    %2831 = vmatpush1.xpose.msra.mxu0 0.0
    %2832 = vmatprep.subr.mxu0 0.0
    %2833 = vmatpush1.xpose.msra.mxu0 0.0
    %2834 = vmatprep.subr.mxu0 0.0
    %2835 = vmatpush1.xpose.msra.mxu0 0.0
    %2836 = vmatprep.subr.mxu0 0.0
    %2837 = vmatpush1.xpose.msra.mxu0 0.0
    %2838 = vmatprep.subr.mxu0 0.0
    %2839 = vmatpush1.xpose.msra.mxu0 0.0
    %2840 = vmatprep.subr.mxu0 0.0
    %2841 = vmatpush1.xpose.msra.mxu0 0.0
    %2842 = vmatprep.subr.mxu0 0.0
    %2843 = vmatpush1.xpose.msra.mxu0 0.0
    %2844 = vmatprep.subr.mxu0 0.0
    %2845 = vmatpush1.xpose.msra.mxu0 0.0
    %2846 = vmatprep.subr.mxu0 0.0
    %2847 = vmatpush1.xpose.msra.mxu0 0.0
    %2848 = vmatprep.subr.mxu0 0.0
    %2849 = vmatpush1.xpose.msra.mxu0 0.0
    %2850 = vmatprep.subr.mxu0 0.0
    %2851 = vmatpush1.xpose.msra.mxu0 0.0
    %2852 = vmatprep.subr.mxu0 0.0
    %2853 = vmatpush1.xpose.msra.mxu0 0.0
    %2854 = vmatprep.subr.mxu0 0.0
    %2855 = vmatpush1.xpose.msra.mxu0 0.0
    %2856 = vmatprep.subr.mxu0 0.0
    %2857 = vmatpush1.xpose.msra.mxu0 0.0
    %2858 = vmatprep.subr.mxu0 0.0
    %2859 = vmatpush1.xpose.msra.mxu0 0.0
    %2860 = vmatprep.subr.mxu0 0.0
    %2861 = vmatpush1.xpose.msra.mxu0 0.0
    %2862 = vmatprep.subr.mxu0 0.0
    %2863 = vmatpush1.xpose.msra.mxu0 0.0
    %2864 = vmatprep.subr.mxu0 0.0
    %2865 = vmatpush1.xpose.msra.mxu0 0.0
    %2866 = vmatprep.subr.mxu0 0.0
    %2867 = vmatpush1.xpose.msra.mxu0 0.0
    %2868 = vmatprep.subr.mxu0 0.0
    %2869 = vmatpush1.xpose.msra.mxu0 0.0
    %2870 = vmatprep.subr.mxu0 0.0
    %2871 = vmatpush1.xpose.msra.mxu0 0.0
    %2872 = vmatprep.subr.mxu0 0.0
    %2873 = vmatpush1.xpose.msra.mxu0 0.0
    %2874 = vmatprep.subr.mxu0 0.0
    %2875 = vmatpush1.xpose.msra.mxu0 0.0
    %2876 = vmatprep.subr.mxu0 0.0
    %2877 = vmatpush1.xpose.msra.mxu0 0.0
    %2878 = vmatprep.subr.mxu0 0.0
    %2879 = vmatpush1.xpose.msra.mxu0 0.0
    %2880 = vmatprep.subr.mxu0 0.0
    %2881 = vmatpush1.xpose.msra.mxu0 0.0
    %2882 = vmatprep.subr.mxu0 0.0
    %2883 = vmatpush1.xpose.msra.mxu0 0.0
    %2884 = vmatprep.mubr.f32.mxu0 0.0
    %2885 = vmatmul.mubr.f32.gmra.mrb[0].mxu0 %v2816
    %v2886 = vpop.f32.mrb[0].mxu0
    %v2887 = vadd.f32 0.0, %v2886
    %v2888 = vpop.f32.mrb[0].mxu0
    %2889 = vdwg.mxu0
    %2891 = vrot.lane.b32.xlu0 %v353, 124
    %v2892 = vpop.permute.xlu0 %2891
    %v2894 = vsel %vm758, %v736, 0
    %v2896 = vsel %vm758, %v2892, 0
    %2898 = vmatprep.subr.mxu0 0.0
    %2899 = vmatpush1.xpose.msra.mxu0 %v2896
    %2900 = vmatprep.subr.mxu0 0.0
    %2901 = vmatpush1.xpose.msra.mxu0 0.0
    %2902 = vmatprep.subr.mxu0 0.0
    %2903 = vmatpush1.xpose.msra.mxu0 0.0
    %2904 = vmatprep.subr.mxu0 0.0
    %2905 = vmatpush1.xpose.msra.mxu0 0.0
    %2906 = vmatprep.subr.mxu0 0.0
    %2907 = vmatpush1.xpose.msra.mxu0 0.0
    %2908 = vmatprep.subr.mxu0 0.0
    %2909 = vmatpush1.xpose.msra.mxu0 0.0
    %2910 = vmatprep.subr.mxu0 0.0
    %2911 = vmatpush1.xpose.msra.mxu0 0.0
    %2912 = vmatprep.subr.mxu0 0.0
    %2913 = vmatpush1.xpose.msra.mxu0 0.0
    %2914 = vmatprep.subr.mxu0 0.0
    %2915 = vmatpush1.xpose.msra.mxu0 0.0
    %2916 = vmatprep.subr.mxu0 0.0
    %2917 = vmatpush1.xpose.msra.mxu0 0.0
    %2918 = vmatprep.subr.mxu0 0.0
    %2919 = vmatpush1.xpose.msra.mxu0 0.0
    %2920 = vmatprep.subr.mxu0 0.0
    %2921 = vmatpush1.xpose.msra.mxu0 0.0
    %2922 = vmatprep.subr.mxu0 0.0
    %2923 = vmatpush1.xpose.msra.mxu0 0.0
    %2924 = vmatprep.subr.mxu0 0.0
    %2925 = vmatpush1.xpose.msra.mxu0 0.0
    %2926 = vmatprep.subr.mxu0 0.0
    %2927 = vmatpush1.xpose.msra.mxu0 0.0
    %2928 = vmatprep.subr.mxu0 0.0
    %2929 = vmatpush1.xpose.msra.mxu0 0.0
    %2930 = vmatprep.subr.mxu0 0.0
    %2931 = vmatpush1.xpose.msra.mxu0 0.0
    %2932 = vmatprep.subr.mxu0 0.0
    %2933 = vmatpush1.xpose.msra.mxu0 0.0
    %2934 = vmatprep.subr.mxu0 0.0
    %2935 = vmatpush1.xpose.msra.mxu0 0.0
    %2936 = vmatprep.subr.mxu0 0.0
    %2937 = vmatpush1.xpose.msra.mxu0 0.0
    %2938 = vmatprep.subr.mxu0 0.0
    %2939 = vmatpush1.xpose.msra.mxu0 0.0
    %2940 = vmatprep.subr.mxu0 0.0
    %2941 = vmatpush1.xpose.msra.mxu0 0.0
    %2942 = vmatprep.subr.mxu0 0.0
    %2943 = vmatpush1.xpose.msra.mxu0 0.0
    %2944 = vmatprep.subr.mxu0 0.0
    %2945 = vmatpush1.xpose.msra.mxu0 0.0
    %2946 = vmatprep.subr.mxu0 0.0
    %2947 = vmatpush1.xpose.msra.mxu0 0.0
    %2948 = vmatprep.subr.mxu0 0.0
    %2949 = vmatpush1.xpose.msra.mxu0 0.0
    %2950 = vmatprep.subr.mxu0 0.0
    %2951 = vmatpush1.xpose.msra.mxu0 0.0
    %2952 = vmatprep.subr.mxu0 0.0
    %2953 = vmatpush1.xpose.msra.mxu0 0.0
    %2954 = vmatprep.subr.mxu0 0.0
    %2955 = vmatpush1.xpose.msra.mxu0 0.0
    %2956 = vmatprep.subr.mxu0 0.0
    %2957 = vmatpush1.xpose.msra.mxu0 0.0
    %2958 = vmatprep.subr.mxu0 0.0
    %2959 = vmatpush1.xpose.msra.mxu0 0.0
    %2960 = vmatprep.subr.mxu0 0.0
    %2961 = vmatpush1.xpose.msra.mxu0 0.0
    %2962 = vmatprep.mubr.f32.mxu0 0.0
    %2963 = vmatmul.mubr.f32.gmra.mrb[0].mxu0 %v2894
    %v2964 = vpop.f32.mrb[0].mxu0
    %v2965 = vadd.f32 0.0, %v2964
    %v2966 = vpop.f32.mrb[0].mxu0
    %2967 = vdwg.mxu0
    %2969 = vrot.lane.b32.xlu0 %v428, 124
    %v2970 = vpop.permute.xlu0 %2969
    %v2972 = vsel %vm758, %v738, 0
    %v2974 = vsel %vm758, %v2970, 0
    %2976 = vmatprep.subr.mxu0 0.0
    %2977 = vmatpush1.xpose.msra.mxu0 %v2974
    %2978 = vmatprep.subr.mxu0 0.0
    %2979 = vmatpush1.xpose.msra.mxu0 0.0
    %2980 = vmatprep.subr.mxu0 0.0
    %2981 = vmatpush1.xpose.msra.mxu0 0.0
    %2982 = vmatprep.subr.mxu0 0.0
    %2983 = vmatpush1.xpose.msra.mxu0 0.0
    %2984 = vmatprep.subr.mxu0 0.0
    %2985 = vmatpush1.xpose.msra.mxu0 0.0
    %2986 = vmatprep.subr.mxu0 0.0
    %2987 = vmatpush1.xpose.msra.mxu0 0.0
    %2988 = vmatprep.subr.mxu0 0.0
    %2989 = vmatpush1.xpose.msra.mxu0 0.0
    %2990 = vmatprep.subr.mxu0 0.0
    %2991 = vmatpush1.xpose.msra.mxu0 0.0
    %2992 = vmatprep.subr.mxu0 0.0
    %2993 = vmatpush1.xpose.msra.mxu0 0.0
    %2994 = vmatprep.subr.mxu0 0.0
    %2995 = vmatpush1.xpose.msra.mxu0 0.0
    %2996 = vmatprep.subr.mxu0 0.0
    %2997 = vmatpush1.xpose.msra.mxu0 0.0
    %2998 = vmatprep.subr.mxu0 0.0
    %2999 = vmatpush1.xpose.msra.mxu0 0.0
    %3000 = vmatprep.subr.mxu0 0.0
    %3001 = vmatpush1.xpose.msra.mxu0 0.0
    %3002 = vmatprep.subr.mxu0 0.0
    %3003 = vmatpush1.xpose.msra.mxu0 0.0
    %3004 = vmatprep.subr.mxu0 0.0
    %3005 = vmatpush1.xpose.msra.mxu0 0.0
    %3006 = vmatprep.subr.mxu0 0.0
    %3007 = vmatpush1.xpose.msra.mxu0 0.0
    %3008 = vmatprep.subr.mxu0 0.0
    %3009 = vmatpush1.xpose.msra.mxu0 0.0
    %3010 = vmatprep.subr.mxu0 0.0
    %3011 = vmatpush1.xpose.msra.mxu0 0.0
    %3012 = vmatprep.subr.mxu0 0.0
    %3013 = vmatpush1.xpose.msra.mxu0 0.0
    %3014 = vmatprep.subr.mxu0 0.0
    %3015 = vmatpush1.xpose.msra.mxu0 0.0
    %3016 = vmatprep.subr.mxu0 0.0
    %3017 = vmatpush1.xpose.msra.mxu0 0.0
    %3018 = vmatprep.subr.mxu0 0.0
    %3019 = vmatpush1.xpose.msra.mxu0 0.0
    %3020 = vmatprep.subr.mxu0 0.0
    %3021 = vmatpush1.xpose.msra.mxu0 0.0
    %3022 = vmatprep.subr.mxu0 0.0
    %3023 = vmatpush1.xpose.msra.mxu0 0.0
    %3024 = vmatprep.subr.mxu0 0.0
    %3025 = vmatpush1.xpose.msra.mxu0 0.0
    %3026 = vmatprep.subr.mxu0 0.0
    %3027 = vmatpush1.xpose.msra.mxu0 0.0
    %3028 = vmatprep.subr.mxu0 0.0
    %3029 = vmatpush1.xpose.msra.mxu0 0.0
    %3030 = vmatprep.subr.mxu0 0.0
    %3031 = vmatpush1.xpose.msra.mxu0 0.0
    %3032 = vmatprep.subr.mxu0 0.0
    %3033 = vmatpush1.xpose.msra.mxu0 0.0
    %3034 = vmatprep.subr.mxu0 0.0
    %3035 = vmatpush1.xpose.msra.mxu0 0.0
    %3036 = vmatprep.subr.mxu0 0.0
    %3037 = vmatpush1.xpose.msra.mxu0 0.0
    %3038 = vmatprep.subr.mxu0 0.0
    %3039 = vmatpush1.xpose.msra.mxu0 0.0
    %3040 = vmatprep.mubr.f32.mxu0 0.0
    %3041 = vmatmul.mubr.f32.gmra.mrb[0].mxu0 %v2972
    %v3042 = vpop.f32.mrb[0].mxu0
    %v3043 = vadd.f32 0.0, %v3042
    %v3044 = vpop.f32.mrb[0].mxu0
    %3045 = vdwg.mxu0
    %3047 = vrot.lane.b32.xlu0 %v503, 124
    %v3048 = vpop.permute.xlu0 %3047
    %v3050 = vsel %vm758, %v740, 0
    %v3052 = vsel %vm758, %v3048, 0
    %3054 = vmatprep.subr.mxu0 0.0
    %3055 = vmatpush1.xpose.msra.mxu0 %v3052
    %3056 = vmatprep.subr.mxu0 0.0
    %3057 = vmatpush1.xpose.msra.mxu0 0.0
    %3058 = vmatprep.subr.mxu0 0.0
    %3059 = vmatpush1.xpose.msra.mxu0 0.0
    %3060 = vmatprep.subr.mxu0 0.0
    %3061 = vmatpush1.xpose.msra.mxu0 0.0
    %3062 = vmatprep.subr.mxu0 0.0
    %3063 = vmatpush1.xpose.msra.mxu0 0.0
    %3064 = vmatprep.subr.mxu0 0.0
    %3065 = vmatpush1.xpose.msra.mxu0 0.0
    %3066 = vmatprep.subr.mxu0 0.0
    %3067 = vmatpush1.xpose.msra.mxu0 0.0
    %3068 = vmatprep.subr.mxu0 0.0
    %3069 = vmatpush1.xpose.msra.mxu0 0.0
    %3070 = vmatprep.subr.mxu0 0.0
    %3071 = vmatpush1.xpose.msra.mxu0 0.0
    %3072 = vmatprep.subr.mxu0 0.0
    %3073 = vmatpush1.xpose.msra.mxu0 0.0
    %3074 = vmatprep.subr.mxu0 0.0
    %3075 = vmatpush1.xpose.msra.mxu0 0.0
    %3076 = vmatprep.subr.mxu0 0.0
    %3077 = vmatpush1.xpose.msra.mxu0 0.0
    %3078 = vmatprep.subr.mxu0 0.0
    %3079 = vmatpush1.xpose.msra.mxu0 0.0
    %3080 = vmatprep.subr.mxu0 0.0
    %3081 = vmatpush1.xpose.msra.mxu0 0.0
    %3082 = vmatprep.subr.mxu0 0.0
    %3083 = vmatpush1.xpose.msra.mxu0 0.0
    %3084 = vmatprep.subr.mxu0 0.0
    %3085 = vmatpush1.xpose.msra.mxu0 0.0
    %3086 = vmatprep.subr.mxu0 0.0
    %3087 = vmatpush1.xpose.msra.mxu0 0.0
    %3088 = vmatprep.subr.mxu0 0.0
    %3089 = vmatpush1.xpose.msra.mxu0 0.0
    %3090 = vmatprep.subr.mxu0 0.0
    %3091 = vmatpush1.xpose.msra.mxu0 0.0
    %3092 = vmatprep.subr.mxu0 0.0
    %3093 = vmatpush1.xpose.msra.mxu0 0.0
    %3094 = vmatprep.subr.mxu0 0.0
    %3095 = vmatpush1.xpose.msra.mxu0 0.0
    %3096 = vmatprep.subr.mxu0 0.0
    %3097 = vmatpush1.xpose.msra.mxu0 0.0
    %3098 = vmatprep.subr.mxu0 0.0
    %3099 = vmatpush1.xpose.msra.mxu0 0.0
    %3100 = vmatprep.subr.mxu0 0.0
    %3101 = vmatpush1.xpose.msra.mxu0 0.0
    %3102 = vmatprep.subr.mxu0 0.0
    %3103 = vmatpush1.xpose.msra.mxu0 0.0
    %3104 = vmatprep.subr.mxu0 0.0
    %3105 = vmatpush1.xpose.msra.mxu0 0.0
    %3106 = vmatprep.subr.mxu0 0.0
    %3107 = vmatpush1.xpose.msra.mxu0 0.0
    %3108 = vmatprep.subr.mxu0 0.0
    %3109 = vmatpush1.xpose.msra.mxu0 0.0
    %3110 = vmatprep.subr.mxu0 0.0
    %3111 = vmatpush1.xpose.msra.mxu0 0.0
    %3112 = vmatprep.subr.mxu0 0.0
    %3113 = vmatpush1.xpose.msra.mxu0 0.0
    %3114 = vmatprep.subr.mxu0 0.0
    %3115 = vmatpush1.xpose.msra.mxu0 0.0
    %3116 = vmatprep.subr.mxu0 0.0
    %3117 = vmatpush1.xpose.msra.mxu0 0.0
    %3118 = vmatprep.mubr.f32.mxu0 0.0
    %3119 = vmatmul.mubr.f32.gmra.mrb[0].mxu0 %v3050
    %v3120 = vpop.f32.mrb[0].mxu0
    %v3121 = vadd.f32 0.0, %v3120
    %v3122 = vpop.f32.mrb[0].mxu0
    %3123 = vdwg.mxu0
    %3125 = vrot.lane.b32.xlu0 %v578, 124
    %v3126 = vpop.permute.xlu0 %3125
    %v3128 = vsel %vm758, %v742, 0
    %v3130 = vsel %vm758, %v3126, 0
    %3132 = vmatprep.subr.mxu0 0.0
    %3133 = vmatpush1.xpose.msra.mxu0 %v3130
    %3134 = vmatprep.subr.mxu0 0.0
    %3135 = vmatpush1.xpose.msra.mxu0 0.0
    %3136 = vmatprep.subr.mxu0 0.0
    %3137 = vmatpush1.xpose.msra.mxu0 0.0
    %3138 = vmatprep.subr.mxu0 0.0
    %3139 = vmatpush1.xpose.msra.mxu0 0.0
    %3140 = vmatprep.subr.mxu0 0.0
    %3141 = vmatpush1.xpose.msra.mxu0 0.0
    %3142 = vmatprep.subr.mxu0 0.0
    %3143 = vmatpush1.xpose.msra.mxu0 0.0
    %3144 = vmatprep.subr.mxu0 0.0
    %3145 = vmatpush1.xpose.msra.mxu0 0.0
    %3146 = vmatprep.subr.mxu0 0.0
    %3147 = vmatpush1.xpose.msra.mxu0 0.0
    %3148 = vmatprep.subr.mxu0 0.0
    %3149 = vmatpush1.xpose.msra.mxu0 0.0
    %3150 = vmatprep.subr.mxu0 0.0
    %3151 = vmatpush1.xpose.msra.mxu0 0.0
    %3152 = vmatprep.subr.mxu0 0.0
    %3153 = vmatpush1.xpose.msra.mxu0 0.0
    %3154 = vmatprep.subr.mxu0 0.0
    %3155 = vmatpush1.xpose.msra.mxu0 0.0
    %3156 = vmatprep.subr.mxu0 0.0
    %3157 = vmatpush1.xpose.msra.mxu0 0.0
    %3158 = vmatprep.subr.mxu0 0.0
    %3159 = vmatpush1.xpose.msra.mxu0 0.0
    %3160 = vmatprep.subr.mxu0 0.0
    %3161 = vmatpush1.xpose.msra.mxu0 0.0
    %3162 = vmatprep.subr.mxu0 0.0
    %3163 = vmatpush1.xpose.msra.mxu0 0.0
    %3164 = vmatprep.subr.mxu0 0.0
    %3165 = vmatpush1.xpose.msra.mxu0 0.0
    %3166 = vmatprep.subr.mxu0 0.0
    %3167 = vmatpush1.xpose.msra.mxu0 0.0
    %3168 = vmatprep.subr.mxu0 0.0
    %3169 = vmatpush1.xpose.msra.mxu0 0.0
    %3170 = vmatprep.subr.mxu0 0.0
    %3171 = vmatpush1.xpose.msra.mxu0 0.0
    %3172 = vmatprep.subr.mxu0 0.0
    %3173 = vmatpush1.xpose.msra.mxu0 0.0
    %3174 = vmatprep.subr.mxu0 0.0
    %3175 = vmatpush1.xpose.msra.mxu0 0.0
    %3176 = vmatprep.subr.mxu0 0.0
    %3177 = vmatpush1.xpose.msra.mxu0 0.0
    %3178 = vmatprep.subr.mxu0 0.0
    %3179 = vmatpush1.xpose.msra.mxu0 0.0
    %3180 = vmatprep.subr.mxu0 0.0
    %3181 = vmatpush1.xpose.msra.mxu0 0.0
    %3182 = vmatprep.subr.mxu0 0.0
    %3183 = vmatpush1.xpose.msra.mxu0 0.0
    %3184 = vmatprep.subr.mxu0 0.0
    %3185 = vmatpush1.xpose.msra.mxu0 0.0
    %3186 = vmatprep.subr.mxu0 0.0
    %3187 = vmatpush1.xpose.msra.mxu0 0.0
    %3188 = vmatprep.subr.mxu0 0.0
    %3189 = vmatpush1.xpose.msra.mxu0 0.0
    %3190 = vmatprep.subr.mxu0 0.0
    %3191 = vmatpush1.xpose.msra.mxu0 0.0
    %3192 = vmatprep.subr.mxu0 0.0
    %3193 = vmatpush1.xpose.msra.mxu0 0.0
    %3194 = vmatprep.subr.mxu0 0.0
    %3195 = vmatpush1.xpose.msra.mxu0 0.0
    %3196 = vmatprep.mubr.f32.mxu0 0.0
    %3197 = vmatmul.mubr.f32.gmra.mrb[0].mxu0 %v3128
    %v3198 = vpop.f32.mrb[0].mxu0
    %v3199 = vadd.f32 0.0, %v3198
    %v3200 = vpop.f32.mrb[0].mxu0
    %3201 = vdwg.mxu0
    %3203 = vrot.lane.b32.xlu0 %v653, 124
    %v3204 = vpop.permute.xlu0 %3203
    %v3206 = vsel %vm758, %v744, 0
    %v3208 = vsel %vm758, %v3204, 0
    %3210 = vmatprep.subr.mxu0 0.0
    %3211 = vmatpush1.xpose.msra.mxu0 %v3208
    %3212 = vmatprep.subr.mxu0 0.0
    %3213 = vmatpush1.xpose.msra.mxu0 0.0
    %3214 = vmatprep.subr.mxu0 0.0
    %3215 = vmatpush1.xpose.msra.mxu0 0.0
    %3216 = vmatprep.subr.mxu0 0.0
    %3217 = vmatpush1.xpose.msra.mxu0 0.0
    %3218 = vmatprep.subr.mxu0 0.0
    %3219 = vmatpush1.xpose.msra.mxu0 0.0
    %3220 = vmatprep.subr.mxu0 0.0
    %3221 = vmatpush1.xpose.msra.mxu0 0.0
    %3222 = vmatprep.subr.mxu0 0.0
    %3223 = vmatpush1.xpose.msra.mxu0 0.0
    %3224 = vmatprep.subr.mxu0 0.0
    %3225 = vmatpush1.xpose.msra.mxu0 0.0
    %3226 = vmatprep.subr.mxu0 0.0
    %3227 = vmatpush1.xpose.msra.mxu0 0.0
    %3228 = vmatprep.subr.mxu0 0.0
    %3229 = vmatpush1.xpose.msra.mxu0 0.0
    %3230 = vmatprep.subr.mxu0 0.0
    %3231 = vmatpush1.xpose.msra.mxu0 0.0
    %3232 = vmatprep.subr.mxu0 0.0
    %3233 = vmatpush1.xpose.msra.mxu0 0.0
    %3234 = vmatprep.subr.mxu0 0.0
    %3235 = vmatpush1.xpose.msra.mxu0 0.0
    %3236 = vmatprep.subr.mxu0 0.0
    %3237 = vmatpush1.xpose.msra.mxu0 0.0
    %3238 = vmatprep.subr.mxu0 0.0
    %3239 = vmatpush1.xpose.msra.mxu0 0.0
    %3240 = vmatprep.subr.mxu0 0.0
    %3241 = vmatpush1.xpose.msra.mxu0 0.0
    %3242 = vmatprep.subr.mxu0 0.0
    %3243 = vmatpush1.xpose.msra.mxu0 0.0
    %3244 = vmatprep.subr.mxu0 0.0
    %3245 = vmatpush1.xpose.msra.mxu0 0.0
    %3246 = vmatprep.subr.mxu0 0.0
    %3247 = vmatpush1.xpose.msra.mxu0 0.0
    %3248 = vmatprep.subr.mxu0 0.0
    %3249 = vmatpush1.xpose.msra.mxu0 0.0
    %3250 = vmatprep.subr.mxu0 0.0
    %3251 = vmatpush1.xpose.msra.mxu0 0.0
    %3252 = vmatprep.subr.mxu0 0.0
    %3253 = vmatpush1.xpose.msra.mxu0 0.0
    %3254 = vmatprep.subr.mxu0 0.0
    %3255 = vmatpush1.xpose.msra.mxu0 0.0
    %3256 = vmatprep.subr.mxu0 0.0
    %3257 = vmatpush1.xpose.msra.mxu0 0.0
    %3258 = vmatprep.subr.mxu0 0.0
    %3259 = vmatpush1.xpose.msra.mxu0 0.0
    %3260 = vmatprep.subr.mxu0 0.0
    %3261 = vmatpush1.xpose.msra.mxu0 0.0
    %3262 = vmatprep.subr.mxu0 0.0
    %3263 = vmatpush1.xpose.msra.mxu0 0.0
    %3264 = vmatprep.subr.mxu0 0.0
    %3265 = vmatpush1.xpose.msra.mxu0 0.0
    %3266 = vmatprep.subr.mxu0 0.0
    %3267 = vmatpush1.xpose.msra.mxu0 0.0
    %3268 = vmatprep.subr.mxu0 0.0
    %3269 = vmatpush1.xpose.msra.mxu0 0.0
    %3270 = vmatprep.subr.mxu0 0.0
    %3271 = vmatpush1.xpose.msra.mxu0 0.0
    %3272 = vmatprep.subr.mxu0 0.0
    %3273 = vmatpush1.xpose.msra.mxu0 0.0
    %3274 = vmatprep.mubr.f32.mxu0 0.0
    %3275 = vmatmul.mubr.f32.gmra.mrb[0].mxu0 %v3206
    %v3276 = vpop.f32.mrb[0].mxu0
    %v3277 = vadd.f32 0.0, %v3276
    %v3278 = vpop.f32.mrb[0].mxu0
    %3279 = vdwg.mxu0
    %3281 = vrot.lane.b32.xlu0 %v728, 124
    %v3282 = vpop.permute.xlu0 %3281
    %v3284 = vsel %vm758, %v746, 0
    %v3286 = vsel %vm758, %v3282, 0
    %3288 = vmatprep.subr.mxu0 0.0
    %3289 = vmatpush1.xpose.msra.mxu0 %v3286
    %3290 = vmatprep.subr.mxu0 0.0
    %3291 = vmatpush1.xpose.msra.mxu0 0.0
    %3292 = vmatprep.subr.mxu0 0.0
    %3293 = vmatpush1.xpose.msra.mxu0 0.0
    %3294 = vmatprep.subr.mxu0 0.0
    %3295 = vmatpush1.xpose.msra.mxu0 0.0
    %3296 = vmatprep.subr.mxu0 0.0
    %3297 = vmatpush1.xpose.msra.mxu0 0.0
    %3298 = vmatprep.subr.mxu0 0.0
    %3299 = vmatpush1.xpose.msra.mxu0 0.0
    %3300 = vmatprep.subr.mxu0 0.0
    %3301 = vmatpush1.xpose.msra.mxu0 0.0
    %3302 = vmatprep.subr.mxu0 0.0
    %3303 = vmatpush1.xpose.msra.mxu0 0.0
    %3304 = vmatprep.subr.mxu0 0.0
    %3305 = vmatpush1.xpose.msra.mxu0 0.0
    %3306 = vmatprep.subr.mxu0 0.0
    %3307 = vmatpush1.xpose.msra.mxu0 0.0
    %3308 = vmatprep.subr.mxu0 0.0
    %3309 = vmatpush1.xpose.msra.mxu0 0.0
    %3310 = vmatprep.subr.mxu0 0.0
    %3311 = vmatpush1.xpose.msra.mxu0 0.0
    %3312 = vmatprep.subr.mxu0 0.0
    %3313 = vmatpush1.xpose.msra.mxu0 0.0
    %3314 = vmatprep.subr.mxu0 0.0
    %3315 = vmatpush1.xpose.msra.mxu0 0.0
    %3316 = vmatprep.subr.mxu0 0.0
    %3317 = vmatpush1.xpose.msra.mxu0 0.0
    %3318 = vmatprep.subr.mxu0 0.0
    %3319 = vmatpush1.xpose.msra.mxu0 0.0
    %3320 = vmatprep.subr.mxu0 0.0
    %3321 = vmatpush1.xpose.msra.mxu0 0.0
    %3322 = vmatprep.subr.mxu0 0.0
    %3323 = vmatpush1.xpose.msra.mxu0 0.0
    %3324 = vmatprep.subr.mxu0 0.0
    %3325 = vmatpush1.xpose.msra.mxu0 0.0
    %3326 = vmatprep.subr.mxu0 0.0
    %3327 = vmatpush1.xpose.msra.mxu0 0.0
    %3328 = vmatprep.subr.mxu0 0.0
    %3329 = vmatpush1.xpose.msra.mxu0 0.0
    %3330 = vmatprep.subr.mxu0 0.0
    %3331 = vmatpush1.xpose.msra.mxu0 0.0
    %3332 = vmatprep.subr.mxu0 0.0
    %3333 = vmatpush1.xpose.msra.mxu0 0.0
    %3334 = vmatprep.subr.mxu0 0.0
    %3335 = vmatpush1.xpose.msra.mxu0 0.0
    %3336 = vmatprep.subr.mxu0 0.0
    %3337 = vmatpush1.xpose.msra.mxu0 0.0
    %3338 = vmatprep.subr.mxu0 0.0
    %3339 = vmatpush1.xpose.msra.mxu0 0.0
    %3340 = vmatprep.subr.mxu0 0.0
    %3341 = vmatpush1.xpose.msra.mxu0 0.0
    %3342 = vmatprep.subr.mxu0 0.0
    %3343 = vmatpush1.xpose.msra.mxu0 0.0
    %3344 = vmatprep.subr.mxu0 0.0
    %3345 = vmatpush1.xpose.msra.mxu0 0.0
    %3346 = vmatprep.subr.mxu0 0.0
    %3347 = vmatpush1.xpose.msra.mxu0 0.0
    %3348 = vmatprep.subr.mxu0 0.0
    %3349 = vmatpush1.xpose.msra.mxu0 0.0
    %3350 = vmatprep.subr.mxu0 0.0
    %3351 = vmatpush1.xpose.msra.mxu0 0.0
    %3352 = vmatprep.mubr.f32.mxu0 0.0
    %3353 = vmatmul.mubr.f32.gmra.mrb[0].mxu0 %v3284
    %v3354 = vpop.f32.mrb[0].mxu0
    %v3355 = vadd.f32 0.0, %v3354
    %v3356 = vpop.f32.mrb[0].mxu0
    %3357 = vdwg.mxu0
    %v3358 = vsel %vm1380, %v2809, -inf
    %3359 = vmax.xlane.f32.xlu0 %v3358
    %v3360 = vpop.xlane.xlu0 %3359
    %v3361 = vsel %vm1380, %v2887, -inf
    %3362 = vmax.xlane.f32.xlu0 %v3361
    %v3363 = vpop.xlane.xlu0 %3362
    %v3364 = vsel %vm1380, %v2965, -inf
    %3365 = vmax.xlane.f32.xlu0 %v3364
    %v3366 = vpop.xlane.xlu0 %3365
    %v3367 = vsel %vm1380, %v3043, -inf
    %3368 = vmax.xlane.f32.xlu0 %v3367
    %v3369 = vpop.xlane.xlu0 %3368
    %v3370 = vsel %vm1380, %v3121, -inf
    %3371 = vmax.xlane.f32.xlu0 %v3370
    %v3372 = vpop.xlane.xlu0 %3371
    %v3373 = vsel %vm1380, %v3199, -inf
    %3374 = vmax.xlane.f32.xlu0 %v3373
    %v3375 = vpop.xlane.xlu0 %3374
    %v3376 = vsel %vm1380, %v3277, -inf
    %3377 = vmax.xlane.f32.xlu0 %v3376
    %v3378 = vpop.xlane.xlu0 %3377
    %v3379 = vsel %vm1380, %v3355, -inf
    %3380 = vmax.xlane.f32.xlu0 %v3379
    %v3381 = vpop.xlane.xlu0 %3380
    %v3382 = vsub.f32 %v2809, %v3360
    %v3383 = vsub.f32 %v2887, %v3363
    %v3384 = vsub.f32 %v2965, %v3366
    %v3385 = vsub.f32 %v3043, %v3369
    %v3386 = vsub.f32 %v3121, %v3372
    %v3387 = vsub.f32 %v3199, %v3375
    %v3388 = vsub.f32 %v3277, %v3378
    %v3389 = vsub.f32 %v3355, %v3381
    %v3390 = vmul.f32 %v3382, 1.442695
    %v3391 = vpow.pop %v3390
    %v3392 = vmul.f32 %v3383, 1.442695
    %v3393 = vpow.pop %v3392
    %v3394 = vmul.f32 %v3384, 1.442695
    %v3395 = vpow.pop %v3394
    %v3396 = vmul.f32 %v3385, 1.442695
    %v3397 = vpow.pop %v3396
    %v3398 = vmul.f32 %v3386, 1.442695
    %v3399 = vpow.pop %v3398
    %v3400 = vmul.f32 %v3387, 1.442695
    %v3401 = vpow.pop %v3400
    %v3402 = vmul.f32 %v3388, 1.442695
    %v3403 = vpow.pop %v3402
    %v3404 = vmul.f32 %v3389, 1.442695
    %v3405 = vpow.pop %v3404
    %v3406 = vsel %vm1380, %v3391, 0.0
    %3407 = vadd.xlane.f32.xlu0 %v3406
    %v3408 = vpop.xlane.xlu0 %3407
    %v3409 = vsel %vm1380, %v3393, 0.0
    %3410 = vadd.xlane.f32.xlu0 %v3409
    %v3411 = vpop.xlane.xlu0 %3410
    %v3412 = vsel %vm1380, %v3395, 0.0
    %3413 = vadd.xlane.f32.xlu0 %v3412
    %v3414 = vpop.xlane.xlu0 %3413
    %v3415 = vsel %vm1380, %v3397, 0.0
    %3416 = vadd.xlane.f32.xlu0 %v3415
    %v3417 = vpop.xlane.xlu0 %3416
    %v3418 = vsel %vm1380, %v3399, 0.0
    %3419 = vadd.xlane.f32.xlu0 %v3418
    %v3420 = vpop.xlane.xlu0 %3419
    %v3421 = vsel %vm1380, %v3401, 0.0
    %3422 = vadd.xlane.f32.xlu0 %v3421
    %v3423 = vpop.xlane.xlu0 %3422
    %v3424 = vsel %vm1380, %v3403, 0.0
    %3425 = vadd.xlane.f32.xlu0 %v3424
    %v3426 = vpop.xlane.xlu0 %3425
    %v3427 = vsel %vm1380, %v3405, 0.0
    %3428 = vadd.xlane.f32.xlu0 %v3427
    %v3429 = vpop.xlane.xlu0 %3428
    %v3430 = vrcp.pop %v3408
    %v3431 = vrcp.pop %v3411
    %v3432 = vrcp.pop %v3414
    %v3433 = vrcp.pop %v3417
    %v3434 = vrcp.pop %v3420
    %v3435 = vrcp.pop %v3423
    %v3436 = vrcp.pop %v3426
    %v3437 = vrcp.pop %v3429
    %v3438 = vmul.f32 %v3391, %v3430
    %v3439 = vmul.f32 %v3393, %v3431
    %v3440 = vmul.f32 %v3395, %v3432
    %v3441 = vmul.f32 %v3397, %v3433
    %v3442 = vmul.f32 %v3399, %v3434
    %v3443 = vmul.f32 %v3401, %v3435
    %v3444 = vmul.f32 %v3403, %v3436
    %v3445 = vmul.f32 %v3405, %v3437
    %3446 = vrot.lane.b32.xlu0 %v203, 120
    %v3447 = vpop.permute.xlu0 %3446
    %v3450 = vsel %vm1380, %v3438, 0
    %3452 = vmatprep.subr.mxu0 0.0
    %3453 = vmatpush1.msra.mxu0 %v3447
    %3454 = vmatprep.subr.mxu0 0.0
    %3455 = vmatpush1.msra.mxu0 0.0
    %3456 = vmatprep.subr.mxu0 0.0
    %3457 = vmatpush1.msra.mxu0 0.0
    %3458 = vmatprep.subr.mxu0 0.0
    %3459 = vmatpush1.msra.mxu0 0.0
    %3460 = vmatprep.subr.mxu0 0.0
    %3461 = vmatpush1.msra.mxu0 0.0
    %3462 = vmatprep.subr.mxu0 0.0
    %3463 = vmatpush1.msra.mxu0 0.0
    %3464 = vmatprep.subr.mxu0 0.0
    %3465 = vmatpush1.msra.mxu0 0.0
    %3466 = vmatprep.subr.mxu0 0.0
    %3467 = vmatpush1.msra.mxu0 0.0
    %3468 = vmatprep.subr.mxu0 0.0
    %3469 = vmatpush1.msra.mxu0 0.0
    %3470 = vmatprep.subr.mxu0 0.0
    %3471 = vmatpush1.msra.mxu0 0.0
    %3472 = vmatprep.subr.mxu0 0.0
    %3473 = vmatpush1.msra.mxu0 0.0
    %3474 = vmatprep.subr.mxu0 0.0
    %3475 = vmatpush1.msra.mxu0 0.0
    %3476 = vmatprep.subr.mxu0 0.0
    %3477 = vmatpush1.msra.mxu0 0.0
    %3478 = vmatprep.subr.mxu0 0.0
    %3479 = vmatpush1.msra.mxu0 0.0
    %3480 = vmatprep.subr.mxu0 0.0
    %3481 = vmatpush1.msra.mxu0 0.0
    %3482 = vmatprep.subr.mxu0 0.0
    %3483 = vmatpush1.msra.mxu0 0.0
    %3484 = vmatprep.subr.mxu0 0.0
    %3485 = vmatpush1.msra.mxu0 0.0
    %3486 = vmatprep.subr.mxu0 0.0
    %3487 = vmatpush1.msra.mxu0 0.0
    %3488 = vmatprep.subr.mxu0 0.0
    %3489 = vmatpush1.msra.mxu0 0.0
    %3490 = vmatprep.subr.mxu0 0.0
    %3491 = vmatpush1.msra.mxu0 0.0
    %3492 = vmatprep.subr.mxu0 0.0
    %3493 = vmatpush1.msra.mxu0 0.0
    %3494 = vmatprep.subr.mxu0 0.0
    %3495 = vmatpush1.msra.mxu0 0.0
    %3496 = vmatprep.subr.mxu0 0.0
    %3497 = vmatpush1.msra.mxu0 0.0
    %3498 = vmatprep.subr.mxu0 0.0
    %3499 = vmatpush1.msra.mxu0 0.0
    %3500 = vmatprep.subr.mxu0 0.0
    %3501 = vmatpush1.msra.mxu0 0.0
    %3502 = vmatprep.subr.mxu0 0.0
    %3503 = vmatpush1.msra.mxu0 0.0
    %3504 = vmatprep.subr.mxu0 0.0
    %3505 = vmatpush1.msra.mxu0 0.0
    %3506 = vmatprep.subr.mxu0 0.0
    %3507 = vmatpush1.msra.mxu0 0.0
    %3508 = vmatprep.subr.mxu0 0.0
    %3509 = vmatpush1.msra.mxu0 0.0
    %3510 = vmatprep.subr.mxu0 0.0
    %3511 = vmatpush1.msra.mxu0 0.0
    %3512 = vmatprep.subr.mxu0 0.0
    %3513 = vmatpush1.msra.mxu0 0.0
    %3514 = vmatprep.subr.mxu0 0.0
    %3515 = vmatpush1.msra.mxu0 0.0
    %3516 = vmatprep.mubr.f32.mxu0 0.0
    %3517 = vmatmul.mubr.f32.gmra.mrb[0].mxu0 %v3450
    %v3518 = vpop.f32.mrb[0].mxu0
    %v3519 = vadd.f32 0.0, %v3518
    %v3520 = vpop.f32.mrb[0].mxu0
    %3521 = vdwg.mxu0
    %3522 = vrot.lane.b32.xlu0 %v278, 120
    %v3523 = vpop.permute.xlu0 %3522
    %v3526 = vsel %vm1380, %v3439, 0
    %3528 = vmatprep.subr.mxu0 0.0
    %3529 = vmatpush1.msra.mxu0 %v3523
    %3530 = vmatprep.subr.mxu0 0.0
    %3531 = vmatpush1.msra.mxu0 0.0
    %3532 = vmatprep.subr.mxu0 0.0
    %3533 = vmatpush1.msra.mxu0 0.0
    %3534 = vmatprep.subr.mxu0 0.0
    %3535 = vmatpush1.msra.mxu0 0.0
    %3536 = vmatprep.subr.mxu0 0.0
    %3537 = vmatpush1.msra.mxu0 0.0
    %3538 = vmatprep.subr.mxu0 0.0
    %3539 = vmatpush1.msra.mxu0 0.0
    %3540 = vmatprep.subr.mxu0 0.0
    %3541 = vmatpush1.msra.mxu0 0.0
    %3542 = vmatprep.subr.mxu0 0.0
    %3543 = vmatpush1.msra.mxu0 0.0
    %3544 = vmatprep.subr.mxu0 0.0
    %3545 = vmatpush1.msra.mxu0 0.0
    %3546 = vmatprep.subr.mxu0 0.0
    %3547 = vmatpush1.msra.mxu0 0.0
    %3548 = vmatprep.subr.mxu0 0.0
    %3549 = vmatpush1.msra.mxu0 0.0
    %3550 = vmatprep.subr.mxu0 0.0
    %3551 = vmatpush1.msra.mxu0 0.0
    %3552 = vmatprep.subr.mxu0 0.0
    %3553 = vmatpush1.msra.mxu0 0.0
    %3554 = vmatprep.subr.mxu0 0.0
    %3555 = vmatpush1.msra.mxu0 0.0
    %3556 = vmatprep.subr.mxu0 0.0
    %3557 = vmatpush1.msra.mxu0 0.0
    %3558 = vmatprep.subr.mxu0 0.0
    %3559 = vmatpush1.msra.mxu0 0.0
    %3560 = vmatprep.subr.mxu0 0.0
    %3561 = vmatpush1.msra.mxu0 0.0
    %3562 = vmatprep.subr.mxu0 0.0
    %3563 = vmatpush1.msra.mxu0 0.0
    %3564 = vmatprep.subr.mxu0 0.0
    %3565 = vmatpush1.msra.mxu0 0.0
    %3566 = vmatprep.subr.mxu0 0.0
    %3567 = vmatpush1.msra.mxu0 0.0
    %3568 = vmatprep.subr.mxu0 0.0
    %3569 = vmatpush1.msra.mxu0 0.0
    %3570 = vmatprep.subr.mxu0 0.0
    %3571 = vmatpush1.msra.mxu0 0.0
    %3572 = vmatprep.subr.mxu0 0.0
    %3573 = vmatpush1.msra.mxu0 0.0
    %3574 = vmatprep.subr.mxu0 0.0
    %3575 = vmatpush1.msra.mxu0 0.0
    %3576 = vmatprep.subr.mxu0 0.0
    %3577 = vmatpush1.msra.mxu0 0.0
    %3578 = vmatprep.subr.mxu0 0.0
    %3579 = vmatpush1.msra.mxu0 0.0
    %3580 = vmatprep.subr.mxu0 0.0
    %3581 = vmatpush1.msra.mxu0 0.0
    %3582 = vmatprep.subr.mxu0 0.0
    %3583 = vmatpush1.msra.mxu0 0.0
    %3584 = vmatprep.subr.mxu0 0.0
    %3585 = vmatpush1.msra.mxu0 0.0
    %3586 = vmatprep.subr.mxu0 0.0
    %3587 = vmatpush1.msra.mxu0 0.0
    %3588 = vmatprep.subr.mxu0 0.0
    %3589 = vmatpush1.msra.mxu0 0.0
    %3590 = vmatprep.subr.mxu0 0.0
    %3591 = vmatpush1.msra.mxu0 0.0
    %3592 = vmatprep.mubr.f32.mxu0 0.0
    %3593 = vmatmul.mubr.f32.gmra.mrb[0].mxu0 %v3526
    %v3594 = vpop.f32.mrb[0].mxu0
    %v3595 = vadd.f32 0.0, %v3594
    %v3596 = vpop.f32.mrb[0].mxu0
    %3597 = vdwg.mxu0
    %3598 = vrot.lane.b32.xlu0 %v353, 120
    %v3599 = vpop.permute.xlu0 %3598
    %v3602 = vsel %vm1380, %v3440, 0
    %3604 = vmatprep.subr.mxu0 0.0
    %3605 = vmatpush1.msra.mxu0 %v3599
    %3606 = vmatprep.subr.mxu0 0.0
    %3607 = vmatpush1.msra.mxu0 0.0
    %3608 = vmatprep.subr.mxu0 0.0
    %3609 = vmatpush1.msra.mxu0 0.0
    %3610 = vmatprep.subr.mxu0 0.0
    %3611 = vmatpush1.msra.mxu0 0.0
    %3612 = vmatprep.subr.mxu0 0.0
    %3613 = vmatpush1.msra.mxu0 0.0
    %3614 = vmatprep.subr.mxu0 0.0
    %3615 = vmatpush1.msra.mxu0 0.0
    %3616 = vmatprep.subr.mxu0 0.0
    %3617 = vmatpush1.msra.mxu0 0.0
    %3618 = vmatprep.subr.mxu0 0.0
    %3619 = vmatpush1.msra.mxu0 0.0
    %3620 = vmatprep.subr.mxu0 0.0
    %3621 = vmatpush1.msra.mxu0 0.0
    %3622 = vmatprep.subr.mxu0 0.0
    %3623 = vmatpush1.msra.mxu0 0.0
    %3624 = vmatprep.subr.mxu0 0.0
    %3625 = vmatpush1.msra.mxu0 0.0
    %3626 = vmatprep.subr.mxu0 0.0
    %3627 = vmatpush1.msra.mxu0 0.0
    %3628 = vmatprep.subr.mxu0 0.0
    %3629 = vmatpush1.msra.mxu0 0.0
    %3630 = vmatprep.subr.mxu0 0.0
    %3631 = vmatpush1.msra.mxu0 0.0
    %3632 = vmatprep.subr.mxu0 0.0
    %3633 = vmatpush1.msra.mxu0 0.0
    %3634 = vmatprep.subr.mxu0 0.0
    %3635 = vmatpush1.msra.mxu0 0.0
    %3636 = vmatprep.subr.mxu0 0.0
    %3637 = vmatpush1.msra.mxu0 0.0
    %3638 = vmatprep.subr.mxu0 0.0
    %3639 = vmatpush1.msra.mxu0 0.0
    %3640 = vmatprep.subr.mxu0 0.0
    %3641 = vmatpush1.msra.mxu0 0.0
    %3642 = vmatprep.subr.mxu0 0.0
    %3643 = vmatpush1.msra.mxu0 0.0
    %3644 = vmatprep.subr.mxu0 0.0
    %3645 = vmatpush1.msra.mxu0 0.0
    %3646 = vmatprep.subr.mxu0 0.0
    %3647 = vmatpush1.msra.mxu0 0.0
    %3648 = vmatprep.subr.mxu0 0.0
    %3649 = vmatpush1.msra.mxu0 0.0
    %3650 = vmatprep.subr.mxu0 0.0
    %3651 = vmatpush1.msra.mxu0 0.0
    %3652 = vmatprep.subr.mxu0 0.0
    %3653 = vmatpush1.msra.mxu0 0.0
    %3654 = vmatprep.subr.mxu0 0.0
    %3655 = vmatpush1.msra.mxu0 0.0
    %3656 = vmatprep.subr.mxu0 0.0
    %3657 = vmatpush1.msra.mxu0 0.0
    %3658 = vmatprep.subr.mxu0 0.0
    %3659 = vmatpush1.msra.mxu0 0.0
    %3660 = vmatprep.subr.mxu0 0.0
    %3661 = vmatpush1.msra.mxu0 0.0
    %3662 = vmatprep.subr.mxu0 0.0
    %3663 = vmatpush1.msra.mxu0 0.0
    %3664 = vmatprep.subr.mxu0 0.0
    %3665 = vmatpush1.msra.mxu0 0.0
    %3666 = vmatprep.subr.mxu0 0.0
    %3667 = vmatpush1.msra.mxu0 0.0
    %3668 = vmatprep.mubr.f32.mxu0 0.0
    %3669 = vmatmul.mubr.f32.gmra.mrb[0].mxu0 %v3602
    %v3670 = vpop.f32.mrb[0].mxu0
    %v3671 = vadd.f32 0.0, %v3670
    %v3672 = vpop.f32.mrb[0].mxu0
    %3673 = vdwg.mxu0
    %3674 = vrot.lane.b32.xlu0 %v428, 120
    %v3675 = vpop.permute.xlu0 %3674
    %v3678 = vsel %vm1380, %v3441, 0
    %3680 = vmatprep.subr.mxu0 0.0
    %3681 = vmatpush1.msra.mxu0 %v3675
    %3682 = vmatprep.subr.mxu0 0.0
    %3683 = vmatpush1.msra.mxu0 0.0
    %3684 = vmatprep.subr.mxu0 0.0
    %3685 = vmatpush1.msra.mxu0 0.0
    %3686 = vmatprep.subr.mxu0 0.0
    %3687 = vmatpush1.msra.mxu0 0.0
    %3688 = vmatprep.subr.mxu0 0.0
    %3689 = vmatpush1.msra.mxu0 0.0
    %3690 = vmatprep.subr.mxu0 0.0
    %3691 = vmatpush1.msra.mxu0 0.0
    %3692 = vmatprep.subr.mxu0 0.0
    %3693 = vmatpush1.msra.mxu0 0.0
    %3694 = vmatprep.subr.mxu0 0.0
    %3695 = vmatpush1.msra.mxu0 0.0
    %3696 = vmatprep.subr.mxu0 0.0
    %3697 = vmatpush1.msra.mxu0 0.0
    %3698 = vmatprep.subr.mxu0 0.0
    %3699 = vmatpush1.msra.mxu0 0.0
    %3700 = vmatprep.subr.mxu0 0.0
    %3701 = vmatpush1.msra.mxu0 0.0
    %3702 = vmatprep.subr.mxu0 0.0
    %3703 = vmatpush1.msra.mxu0 0.0
    %3704 = vmatprep.subr.mxu0 0.0
    %3705 = vmatpush1.msra.mxu0 0.0
    %3706 = vmatprep.subr.mxu0 0.0
    %3707 = vmatpush1.msra.mxu0 0.0
    %3708 = vmatprep.subr.mxu0 0.0
    %3709 = vmatpush1.msra.mxu0 0.0
    %3710 = vmatprep.subr.mxu0 0.0
    %3711 = vmatpush1.msra.mxu0 0.0
    %3712 = vmatprep.subr.mxu0 0.0
    %3713 = vmatpush1.msra.mxu0 0.0
    %3714 = vmatprep.subr.mxu0 0.0
    %3715 = vmatpush1.msra.mxu0 0.0
    %3716 = vmatprep.subr.mxu0 0.0
    %3717 = vmatpush1.msra.mxu0 0.0
    %3718 = vmatprep.subr.mxu0 0.0
    %3719 = vmatpush1.msra.mxu0 0.0
    %3720 = vmatprep.subr.mxu0 0.0
    %3721 = vmatpush1.msra.mxu0 0.0
    %3722 = vmatprep.subr.mxu0 0.0
    %3723 = vmatpush1.msra.mxu0 0.0
    %3724 = vmatprep.subr.mxu0 0.0
    %3725 = vmatpush1.msra.mxu0 0.0
    %3726 = vmatprep.subr.mxu0 0.0
    %3727 = vmatpush1.msra.mxu0 0.0
    %3728 = vmatprep.subr.mxu0 0.0
    %3729 = vmatpush1.msra.mxu0 0.0
    %3730 = vmatprep.subr.mxu0 0.0
    %3731 = vmatpush1.msra.mxu0 0.0
    %3732 = vmatprep.subr.mxu0 0.0
    %3733 = vmatpush1.msra.mxu0 0.0
    %3734 = vmatprep.subr.mxu0 0.0
    %3735 = vmatpush1.msra.mxu0 0.0
    %3736 = vmatprep.subr.mxu0 0.0
    %3737 = vmatpush1.msra.mxu0 0.0
    %3738 = vmatprep.subr.mxu0 0.0
    %3739 = vmatpush1.msra.mxu0 0.0
    %3740 = vmatprep.subr.mxu0 0.0
    %3741 = vmatpush1.msra.mxu0 0.0
    %3742 = vmatprep.subr.mxu0 0.0
    %3743 = vmatpush1.msra.mxu0 0.0
    %3744 = vmatprep.mubr.f32.mxu0 0.0
    %3745 = vmatmul.mubr.f32.gmra.mrb[0].mxu0 %v3678
    %v3746 = vpop.f32.mrb[0].mxu0
    %v3747 = vadd.f32 0.0, %v3746
    %v3748 = vpop.f32.mrb[0].mxu0
    %3749 = vdwg.mxu0
    %3750 = vrot.lane.b32.xlu0 %v503, 120
    %v3751 = vpop.permute.xlu0 %3750
    %v3754 = vsel %vm1380, %v3442, 0
    %3756 = vmatprep.subr.mxu0 0.0
    %3757 = vmatpush1.msra.mxu0 %v3751
    %3758 = vmatprep.subr.mxu0 0.0
    %3759 = vmatpush1.msra.mxu0 0.0
    %3760 = vmatprep.subr.mxu0 0.0
    %3761 = vmatpush1.msra.mxu0 0.0
    %3762 = vmatprep.subr.mxu0 0.0
    %3763 = vmatpush1.msra.mxu0 0.0
    %3764 = vmatprep.subr.mxu0 0.0
    %3765 = vmatpush1.msra.mxu0 0.0
    %3766 = vmatprep.subr.mxu0 0.0
    %3767 = vmatpush1.msra.mxu0 0.0
    %3768 = vmatprep.subr.mxu0 0.0
    %3769 = vmatpush1.msra.mxu0 0.0
    %3770 = vmatprep.subr.mxu0 0.0
    %3771 = vmatpush1.msra.mxu0 0.0
    %3772 = vmatprep.subr.mxu0 0.0
    %3773 = vmatpush1.msra.mxu0 0.0
    %3774 = vmatprep.subr.mxu0 0.0
    %3775 = vmatpush1.msra.mxu0 0.0
    %3776 = vmatprep.subr.mxu0 0.0
    %3777 = vmatpush1.msra.mxu0 0.0
    %3778 = vmatprep.subr.mxu0 0.0
    %3779 = vmatpush1.msra.mxu0 0.0
    %3780 = vmatprep.subr.mxu0 0.0
    %3781 = vmatpush1.msra.mxu0 0.0
    %3782 = vmatprep.subr.mxu0 0.0
    %3783 = vmatpush1.msra.mxu0 0.0
    %3784 = vmatprep.subr.mxu0 0.0
    %3785 = vmatpush1.msra.mxu0 0.0
    %3786 = vmatprep.subr.mxu0 0.0
    %3787 = vmatpush1.msra.mxu0 0.0
    %3788 = vmatprep.subr.mxu0 0.0
    %3789 = vmatpush1.msra.mxu0 0.0
    %3790 = vmatprep.subr.mxu0 0.0
    %3791 = vmatpush1.msra.mxu0 0.0
    %3792 = vmatprep.subr.mxu0 0.0
    %3793 = vmatpush1.msra.mxu0 0.0
    %3794 = vmatprep.subr.mxu0 0.0
    %3795 = vmatpush1.msra.mxu0 0.0
    %3796 = vmatprep.subr.mxu0 0.0
    %3797 = vmatpush1.msra.mxu0 0.0
    %3798 = vmatprep.subr.mxu0 0.0
    %3799 = vmatpush1.msra.mxu0 0.0
    %3800 = vmatprep.subr.mxu0 0.0
    %3801 = vmatpush1.msra.mxu0 0.0
    %3802 = vmatprep.subr.mxu0 0.0
    %3803 = vmatpush1.msra.mxu0 0.0
    %3804 = vmatprep.subr.mxu0 0.0
    %3805 = vmatpush1.msra.mxu0 0.0
    %3806 = vmatprep.subr.mxu0 0.0
    %3807 = vmatpush1.msra.mxu0 0.0
    %3808 = vmatprep.subr.mxu0 0.0
    %3809 = vmatpush1.msra.mxu0 0.0
    %3810 = vmatprep.subr.mxu0 0.0
    %3811 = vmatpush1.msra.mxu0 0.0
    %3812 = vmatprep.subr.mxu0 0.0
    %3813 = vmatpush1.msra.mxu0 0.0
    %3814 = vmatprep.subr.mxu0 0.0
    %3815 = vmatpush1.msra.mxu0 0.0
    %3816 = vmatprep.subr.mxu0 0.0
    %3817 = vmatpush1.msra.mxu0 0.0
    %3818 = vmatprep.subr.mxu0 0.0
    %3819 = vmatpush1.msra.mxu0 0.0
    %3820 = vmatprep.mubr.f32.mxu0 0.0
    %3821 = vmatmul.mubr.f32.gmra.mrb[0].mxu0 %v3754
    %v3822 = vpop.f32.mrb[0].mxu0
    %v3823 = vadd.f32 0.0, %v3822
    %v3824 = vpop.f32.mrb[0].mxu0
    %3825 = vdwg.mxu0
    %3826 = vrot.lane.b32.xlu0 %v578, 120
    %v3827 = vpop.permute.xlu0 %3826
    %v3830 = vsel %vm1380, %v3443, 0
    %3832 = vmatprep.subr.mxu0 0.0
    %3833 = vmatpush1.msra.mxu0 %v3827
    %3834 = vmatprep.subr.mxu0 0.0
    %3835 = vmatpush1.msra.mxu0 0.0
    %3836 = vmatprep.subr.mxu0 0.0
    %3837 = vmatpush1.msra.mxu0 0.0
    %3838 = vmatprep.subr.mxu0 0.0
    %3839 = vmatpush1.msra.mxu0 0.0
    %3840 = vmatprep.subr.mxu0 0.0
    %3841 = vmatpush1.msra.mxu0 0.0
    %3842 = vmatprep.subr.mxu0 0.0
    %3843 = vmatpush1.msra.mxu0 0.0
    %3844 = vmatprep.subr.mxu0 0.0
    %3845 = vmatpush1.msra.mxu0 0.0
    %3846 = vmatprep.subr.mxu0 0.0
    %3847 = vmatpush1.msra.mxu0 0.0
    %3848 = vmatprep.subr.mxu0 0.0
    %3849 = vmatpush1.msra.mxu0 0.0
    %3850 = vmatprep.subr.mxu0 0.0
    %3851 = vmatpush1.msra.mxu0 0.0
    %3852 = vmatprep.subr.mxu0 0.0
    %3853 = vmatpush1.msra.mxu0 0.0
    %3854 = vmatprep.subr.mxu0 0.0
    %3855 = vmatpush1.msra.mxu0 0.0
    %3856 = vmatprep.subr.mxu0 0.0
    %3857 = vmatpush1.msra.mxu0 0.0
    %3858 = vmatprep.subr.mxu0 0.0
    %3859 = vmatpush1.msra.mxu0 0.0
    %3860 = vmatprep.subr.mxu0 0.0
    %3861 = vmatpush1.msra.mxu0 0.0
    %3862 = vmatprep.subr.mxu0 0.0
    %3863 = vmatpush1.msra.mxu0 0.0
    %3864 = vmatprep.subr.mxu0 0.0
    %3865 = vmatpush1.msra.mxu0 0.0
    %3866 = vmatprep.subr.mxu0 0.0
    %3867 = vmatpush1.msra.mxu0 0.0
    %3868 = vmatprep.subr.mxu0 0.0
    %3869 = vmatpush1.msra.mxu0 0.0
    %3870 = vmatprep.subr.mxu0 0.0
    %3871 = vmatpush1.msra.mxu0 0.0
    %3872 = vmatprep.subr.mxu0 0.0
    %3873 = vmatpush1.msra.mxu0 0.0
    %3874 = vmatprep.subr.mxu0 0.0
    %3875 = vmatpush1.msra.mxu0 0.0
    %3876 = vmatprep.subr.mxu0 0.0
    %3877 = vmatpush1.msra.mxu0 0.0
    %3878 = vmatprep.subr.mxu0 0.0
    %3879 = vmatpush1.msra.mxu0 0.0
    %3880 = vmatprep.subr.mxu0 0.0
    %3881 = vmatpush1.msra.mxu0 0.0
    %3882 = vmatprep.subr.mxu0 0.0
    %3883 = vmatpush1.msra.mxu0 0.0
    %3884 = vmatprep.subr.mxu0 0.0
    %3885 = vmatpush1.msra.mxu0 0.0
    %3886 = vmatprep.subr.mxu0 0.0
    %3887 = vmatpush1.msra.mxu0 0.0
    %3888 = vmatprep.subr.mxu0 0.0
    %3889 = vmatpush1.msra.mxu0 0.0
    %3890 = vmatprep.subr.mxu0 0.0
    %3891 = vmatpush1.msra.mxu0 0.0
    %3892 = vmatprep.subr.mxu0 0.0
    %3893 = vmatpush1.msra.mxu0 0.0
    %3894 = vmatprep.subr.mxu0 0.0
    %3895 = vmatpush1.msra.mxu0 0.0
    %3896 = vmatprep.mubr.f32.mxu0 0.0
    %3897 = vmatmul.mubr.f32.gmra.mrb[0].mxu0 %v3830
    %v3898 = vpop.f32.mrb[0].mxu0
    %v3899 = vadd.f32 0.0, %v3898
    %v3900 = vpop.f32.mrb[0].mxu0
    %3901 = vdwg.mxu0
    %3902 = vrot.lane.b32.xlu0 %v653, 120
    %v3903 = vpop.permute.xlu0 %3902
    %v3906 = vsel %vm1380, %v3444, 0
    %3908 = vmatprep.subr.mxu0 0.0
    %3909 = vmatpush1.msra.mxu0 %v3903
    %3910 = vmatprep.subr.mxu0 0.0
    %3911 = vmatpush1.msra.mxu0 0.0
    %3912 = vmatprep.subr.mxu0 0.0
    %3913 = vmatpush1.msra.mxu0 0.0
    %3914 = vmatprep.subr.mxu0 0.0
    %3915 = vmatpush1.msra.mxu0 0.0
    %3916 = vmatprep.subr.mxu0 0.0
    %3917 = vmatpush1.msra.mxu0 0.0
    %3918 = vmatprep.subr.mxu0 0.0
    %3919 = vmatpush1.msra.mxu0 0.0
    %3920 = vmatprep.subr.mxu0 0.0
    %3921 = vmatpush1.msra.mxu0 0.0
    %3922 = vmatprep.subr.mxu0 0.0
    %3923 = vmatpush1.msra.mxu0 0.0
    %3924 = vmatprep.subr.mxu0 0.0
    %3925 = vmatpush1.msra.mxu0 0.0
    %3926 = vmatprep.subr.mxu0 0.0
    %3927 = vmatpush1.msra.mxu0 0.0
    %3928 = vmatprep.subr.mxu0 0.0
    %3929 = vmatpush1.msra.mxu0 0.0
    %3930 = vmatprep.subr.mxu0 0.0
    %3931 = vmatpush1.msra.mxu0 0.0
    %3932 = vmatprep.subr.mxu0 0.0
    %3933 = vmatpush1.msra.mxu0 0.0
    %3934 = vmatprep.subr.mxu0 0.0
    %3935 = vmatpush1.msra.mxu0 0.0
    %3936 = vmatprep.subr.mxu0 0.0
    %3937 = vmatpush1.msra.mxu0 0.0
    %3938 = vmatprep.subr.mxu0 0.0
    %3939 = vmatpush1.msra.mxu0 0.0
    %3940 = vmatprep.subr.mxu0 0.0
    %3941 = vmatpush1.msra.mxu0 0.0
    %3942 = vmatprep.subr.mxu0 0.0
    %3943 = vmatpush1.msra.mxu0 0.0
    %3944 = vmatprep.subr.mxu0 0.0
    %3945 = vmatpush1.msra.mxu0 0.0
    %3946 = vmatprep.subr.mxu0 0.0
    %3947 = vmatpush1.msra.mxu0 0.0
    %3948 = vmatprep.subr.mxu0 0.0
    %3949 = vmatpush1.msra.mxu0 0.0
    %3950 = vmatprep.subr.mxu0 0.0
    %3951 = vmatpush1.msra.mxu0 0.0
    %3952 = vmatprep.subr.mxu0 0.0
    %3953 = vmatpush1.msra.mxu0 0.0
    %3954 = vmatprep.subr.mxu0 0.0
    %3955 = vmatpush1.msra.mxu0 0.0
    %3956 = vmatprep.subr.mxu0 0.0
    %3957 = vmatpush1.msra.mxu0 0.0
    %3958 = vmatprep.subr.mxu0 0.0
    %3959 = vmatpush1.msra.mxu0 0.0
    %3960 = vmatprep.subr.mxu0 0.0
    %3961 = vmatpush1.msra.mxu0 0.0
    %3962 = vmatprep.subr.mxu0 0.0
    %3963 = vmatpush1.msra.mxu0 0.0
    %3964 = vmatprep.subr.mxu0 0.0
    %3965 = vmatpush1.msra.mxu0 0.0
    %3966 = vmatprep.subr.mxu0 0.0
    %3967 = vmatpush1.msra.mxu0 0.0
    %3968 = vmatprep.subr.mxu0 0.0
    %3969 = vmatpush1.msra.mxu0 0.0
    %3970 = vmatprep.subr.mxu0 0.0
    %3971 = vmatpush1.msra.mxu0 0.0
    %3972 = vmatprep.mubr.f32.mxu0 0.0
    %3973 = vmatmul.mubr.f32.gmra.mrb[0].mxu0 %v3906
    %v3974 = vpop.f32.mrb[0].mxu0
    %v3975 = vadd.f32 0.0, %v3974
    %v3976 = vpop.f32.mrb[0].mxu0
    %3977 = vdwg.mxu0
    %3978 = vrot.lane.b32.xlu0 %v728, 120
    %v3979 = vpop.permute.xlu0 %3978
    %v3982 = vsel %vm1380, %v3445, 0
    %3984 = vmatprep.subr.mxu0 0.0
    %3985 = vmatpush1.msra.mxu0 %v3979
    %3986 = vmatprep.subr.mxu0 0.0
    %3987 = vmatpush1.msra.mxu0 0.0
    %3988 = vmatprep.subr.mxu0 0.0
    %3989 = vmatpush1.msra.mxu0 0.0
    %3990 = vmatprep.subr.mxu0 0.0
    %3991 = vmatpush1.msra.mxu0 0.0
    %3992 = vmatprep.subr.mxu0 0.0
    %3993 = vmatpush1.msra.mxu0 0.0
    %3994 = vmatprep.subr.mxu0 0.0
    %3995 = vmatpush1.msra.mxu0 0.0
    %3996 = vmatprep.subr.mxu0 0.0
    %3997 = vmatpush1.msra.mxu0 0.0
    %3998 = vmatprep.subr.mxu0 0.0
    %3999 = vmatpush1.msra.mxu0 0.0
    %4000 = vmatprep.subr.mxu0 0.0
    %4001 = vmatpush1.msra.mxu0 0.0
    %4002 = vmatprep.subr.mxu0 0.0
    %4003 = vmatpush1.msra.mxu0 0.0
    %4004 = vmatprep.subr.mxu0 0.0
    %4005 = vmatpush1.msra.mxu0 0.0
    %4006 = vmatprep.subr.mxu0 0.0
    %4007 = vmatpush1.msra.mxu0 0.0
    %4008 = vmatprep.subr.mxu0 0.0
    %4009 = vmatpush1.msra.mxu0 0.0
    %4010 = vmatprep.subr.mxu0 0.0
    %4011 = vmatpush1.msra.mxu0 0.0
    %4012 = vmatprep.subr.mxu0 0.0
    %4013 = vmatpush1.msra.mxu0 0.0
    %4014 = vmatprep.subr.mxu0 0.0
    %4015 = vmatpush1.msra.mxu0 0.0
    %4016 = vmatprep.subr.mxu0 0.0
    %4017 = vmatpush1.msra.mxu0 0.0
    %4018 = vmatprep.subr.mxu0 0.0
    %4019 = vmatpush1.msra.mxu0 0.0
    %4020 = vmatprep.subr.mxu0 0.0
    %4021 = vmatpush1.msra.mxu0 0.0
    %4022 = vmatprep.subr.mxu0 0.0
    %4023 = vmatpush1.msra.mxu0 0.0
    %4024 = vmatprep.subr.mxu0 0.0
    %4025 = vmatpush1.msra.mxu0 0.0
    %4026 = vmatprep.subr.mxu0 0.0
    %4027 = vmatpush1.msra.mxu0 0.0
    %4028 = vmatprep.subr.mxu0 0.0
    %4029 = vmatpush1.msra.mxu0 0.0
    %4030 = vmatprep.subr.mxu0 0.0
    %4031 = vmatpush1.msra.mxu0 0.0
    %4032 = vmatprep.subr.mxu0 0.0
    %4033 = vmatpush1.msra.mxu0 0.0
    %4034 = vmatprep.subr.mxu0 0.0
    %4035 = vmatpush1.msra.mxu0 0.0
    %4036 = vmatprep.subr.mxu0 0.0
    %4037 = vmatpush1.msra.mxu0 0.0
    %4038 = vmatprep.subr.mxu0 0.0
    %4039 = vmatpush1.msra.mxu0 0.0
    %4040 = vmatprep.subr.mxu0 0.0
    %4041 = vmatpush1.msra.mxu0 0.0
    %4042 = vmatprep.subr.mxu0 0.0
    %4043 = vmatpush1.msra.mxu0 0.0
    %4044 = vmatprep.subr.mxu0 0.0
    %4045 = vmatpush1.msra.mxu0 0.0
    %4046 = vmatprep.subr.mxu0 0.0
    %4047 = vmatpush1.msra.mxu0 0.0
    %4048 = vmatprep.mubr.f32.mxu0 0.0
    %4049 = vmatmul.mubr.f32.gmra.mrb[0].mxu0 %v3982
    %v4050 = vpop.f32.mrb[0].mxu0
    %v4051 = vadd.f32 0.0, %v4050
    %v4052 = vpop.f32.mrb[0].mxu0
    %4053 = vdwg.mxu0
    %v4055 = vsel %vm758, %v3519, 0
    %4057 = vmatprep.subr.mxu0 0.0
    %4058 = vmatpush1.msra.mxu0 %v2082
    %4059 = vmatprep.subr.mxu0 0.0
    %4060 = vmatpush1.msra.mxu0 0.0
    %4061 = vmatprep.subr.mxu0 0.0
    %4062 = vmatpush1.msra.mxu0 0.0
    %4063 = vmatprep.subr.mxu0 0.0
    %4064 = vmatpush1.msra.mxu0 0.0
    %4065 = vmatprep.subr.mxu0 0.0
    %4066 = vmatpush1.msra.mxu0 0.0
    %4067 = vmatprep.subr.mxu0 0.0
    %4068 = vmatpush1.msra.mxu0 0.0
    %4069 = vmatprep.subr.mxu0 0.0
    %4070 = vmatpush1.msra.mxu0 0.0
    %4071 = vmatprep.subr.mxu0 0.0
    %4072 = vmatpush1.msra.mxu0 0.0
    %4073 = vmatprep.subr.mxu0 0.0
    %4074 = vmatpush1.msra.mxu0 0.0
    %4075 = vmatprep.subr.mxu0 0.0
    %4076 = vmatpush1.msra.mxu0 0.0
    %4077 = vmatprep.subr.mxu0 0.0
    %4078 = vmatpush1.msra.mxu0 0.0
    %4079 = vmatprep.subr.mxu0 0.0
    %4080 = vmatpush1.msra.mxu0 0.0
    %4081 = vmatprep.subr.mxu0 0.0
    %4082 = vmatpush1.msra.mxu0 0.0
    %4083 = vmatprep.subr.mxu0 0.0
    %4084 = vmatpush1.msra.mxu0 0.0
    %4085 = vmatprep.subr.mxu0 0.0
    %4086 = vmatpush1.msra.mxu0 0.0
    %4087 = vmatprep.subr.mxu0 0.0
    %4088 = vmatpush1.msra.mxu0 0.0
    %4089 = vmatprep.subr.mxu0 0.0
    %4090 = vmatpush1.msra.mxu0 0.0
    %4091 = vmatprep.subr.mxu0 0.0
    %4092 = vmatpush1.msra.mxu0 0.0
    %4093 = vmatprep.subr.mxu0 0.0
    %4094 = vmatpush1.msra.mxu0 0.0
    %4095 = vmatprep.subr.mxu0 0.0
    %4096 = vmatpush1.msra.mxu0 0.0
    %4097 = vmatprep.subr.mxu0 0.0
    %4098 = vmatpush1.msra.mxu0 0.0
    %4099 = vmatprep.subr.mxu0 0.0
    %4100 = vmatpush1.msra.mxu0 0.0
    %4101 = vmatprep.subr.mxu0 0.0
    %4102 = vmatpush1.msra.mxu0 0.0
    %4103 = vmatprep.subr.mxu0 0.0
    %4104 = vmatpush1.msra.mxu0 0.0
    %4105 = vmatprep.subr.mxu0 0.0
    %4106 = vmatpush1.msra.mxu0 0.0
    %4107 = vmatprep.subr.mxu0 0.0
    %4108 = vmatpush1.msra.mxu0 0.0
    %4109 = vmatprep.subr.mxu0 0.0
    %4110 = vmatpush1.msra.mxu0 0.0
    %4111 = vmatprep.subr.mxu0 0.0
    %4112 = vmatpush1.msra.mxu0 0.0
    %4113 = vmatprep.subr.mxu0 0.0
    %4114 = vmatpush1.msra.mxu0 0.0
    %4115 = vmatprep.subr.mxu0 0.0
    %4116 = vmatpush1.msra.mxu0 0.0
    %4117 = vmatprep.subr.mxu0 0.0
    %4118 = vmatpush1.msra.mxu0 0.0
    %4119 = vmatprep.subr.mxu0 0.0
    %4120 = vmatpush1.msra.mxu0 0.0
    %4121 = vmatprep.mubr.f32.mxu0 0.0
    %4122 = vmatmul.mubr.f32.gmra.mrb[0].mxu0 %v4055
    %v4123 = vpop.f32.mrb[0].mxu0
    %v4124 = vadd.f32 0.0, %v4123
    %v4125 = vpop.f32.mrb[0].mxu0
    %4126 = vdwg.mxu0
    %v4128 = vsel %vm758, %v3595, 0
    %4130 = vmatprep.subr.mxu0 0.0
    %4131 = vmatpush1.msra.mxu0 %v2158
    %4132 = vmatprep.subr.mxu0 0.0
    %4133 = vmatpush1.msra.mxu0 0.0
    %4134 = vmatprep.subr.mxu0 0.0
    %4135 = vmatpush1.msra.mxu0 0.0
    %4136 = vmatprep.subr.mxu0 0.0
    %4137 = vmatpush1.msra.mxu0 0.0
    %4138 = vmatprep.subr.mxu0 0.0
    %4139 = vmatpush1.msra.mxu0 0.0
    %4140 = vmatprep.subr.mxu0 0.0
    %4141 = vmatpush1.msra.mxu0 0.0
    %4142 = vmatprep.subr.mxu0 0.0
    %4143 = vmatpush1.msra.mxu0 0.0
    %4144 = vmatprep.subr.mxu0 0.0
    %4145 = vmatpush1.msra.mxu0 0.0
    %4146 = vmatprep.subr.mxu0 0.0
    %4147 = vmatpush1.msra.mxu0 0.0
    %4148 = vmatprep.subr.mxu0 0.0
    %4149 = vmatpush1.msra.mxu0 0.0
    %4150 = vmatprep.subr.mxu0 0.0
    %4151 = vmatpush1.msra.mxu0 0.0
    %4152 = vmatprep.subr.mxu0 0.0
    %4153 = vmatpush1.msra.mxu0 0.0
    %4154 = vmatprep.subr.mxu0 0.0
    %4155 = vmatpush1.msra.mxu0 0.0
    %4156 = vmatprep.subr.mxu0 0.0
    %4157 = vmatpush1.msra.mxu0 0.0
    %4158 = vmatprep.subr.mxu0 0.0
    %4159 = vmatpush1.msra.mxu0 0.0
    %4160 = vmatprep.subr.mxu0 0.0
    %4161 = vmatpush1.msra.mxu0 0.0
    %4162 = vmatprep.subr.mxu0 0.0
    %4163 = vmatpush1.msra.mxu0 0.0
    %4164 = vmatprep.subr.mxu0 0.0
    %4165 = vmatpush1.msra.mxu0 0.0
    %4166 = vmatprep.subr.mxu0 0.0
    %4167 = vmatpush1.msra.mxu0 0.0
    %4168 = vmatprep.subr.mxu0 0.0
    %4169 = vmatpush1.msra.mxu0 0.0
    %4170 = vmatprep.subr.mxu0 0.0
    %4171 = vmatpush1.msra.mxu0 0.0
    %4172 = vmatprep.subr.mxu0 0.0
    %4173 = vmatpush1.msra.mxu0 0.0
    %4174 = vmatprep.subr.mxu0 0.0
    %4175 = vmatpush1.msra.mxu0 0.0
    %4176 = vmatprep.subr.mxu0 0.0
    %4177 = vmatpush1.msra.mxu0 0.0
    %4178 = vmatprep.subr.mxu0 0.0
    %4179 = vmatpush1.msra.mxu0 0.0
    %4180 = vmatprep.subr.mxu0 0.0
    %4181 = vmatpush1.msra.mxu0 0.0
    %4182 = vmatprep.subr.mxu0 0.0
    %4183 = vmatpush1.msra.mxu0 0.0
    %4184 = vmatprep.subr.mxu0 0.0
    %4185 = vmatpush1.msra.mxu0 0.0
    %4186 = vmatprep.subr.mxu0 0.0
    %4187 = vmatpush1.msra.mxu0 0.0
    %4188 = vmatprep.subr.mxu0 0.0
    %4189 = vmatpush1.msra.mxu0 0.0
    %4190 = vmatprep.subr.mxu0 0.0
    %4191 = vmatpush1.msra.mxu0 0.0
    %4192 = vmatprep.subr.mxu0 0.0
    %4193 = vmatpush1.msra.mxu0 0.0
    %4194 = vmatprep.mubr.f32.mxu0 0.0
    %4195 = vmatmul.mubr.f32.gmra.mrb[0].mxu0 %v4128
    %v4196 = vpop.f32.mrb[0].mxu0
    %v4197 = vadd.f32 0.0, %v4196
    %v4198 = vpop.f32.mrb[0].mxu0
    %4199 = vdwg.mxu0
    %v4201 = vsel %vm758, %v3671, 0
    %4203 = vmatprep.subr.mxu0 0.0
    %4204 = vmatpush1.msra.mxu0 %v2234
    %4205 = vmatprep.subr.mxu0 0.0
    %4206 = vmatpush1.msra.mxu0 0.0
    %4207 = vmatprep.subr.mxu0 0.0
    %4208 = vmatpush1.msra.mxu0 0.0
    %4209 = vmatprep.subr.mxu0 0.0
    %4210 = vmatpush1.msra.mxu0 0.0
    %4211 = vmatprep.subr.mxu0 0.0
    %4212 = vmatpush1.msra.mxu0 0.0
    %4213 = vmatprep.subr.mxu0 0.0
    %4214 = vmatpush1.msra.mxu0 0.0
    %4215 = vmatprep.subr.mxu0 0.0
    %4216 = vmatpush1.msra.mxu0 0.0
    %4217 = vmatprep.subr.mxu0 0.0
    %4218 = vmatpush1.msra.mxu0 0.0
    %4219 = vmatprep.subr.mxu0 0.0
    %4220 = vmatpush1.msra.mxu0 0.0
    %4221 = vmatprep.subr.mxu0 0.0
    %4222 = vmatpush1.msra.mxu0 0.0
    %4223 = vmatprep.subr.mxu0 0.0
    %4224 = vmatpush1.msra.mxu0 0.0
    %4225 = vmatprep.subr.mxu0 0.0
    %4226 = vmatpush1.msra.mxu0 0.0
    %4227 = vmatprep.subr.mxu0 0.0
    %4228 = vmatpush1.msra.mxu0 0.0
    %4229 = vmatprep.subr.mxu0 0.0
    %4230 = vmatpush1.msra.mxu0 0.0
    %4231 = vmatprep.subr.mxu0 0.0
    %4232 = vmatpush1.msra.mxu0 0.0
    %4233 = vmatprep.subr.mxu0 0.0
    %4234 = vmatpush1.msra.mxu0 0.0
    %4235 = vmatprep.subr.mxu0 0.0
    %4236 = vmatpush1.msra.mxu0 0.0
    %4237 = vmatprep.subr.mxu0 0.0
    %4238 = vmatpush1.msra.mxu0 0.0
    %4239 = vmatprep.subr.mxu0 0.0
    %4240 = vmatpush1.msra.mxu0 0.0
    %4241 = vmatprep.subr.mxu0 0.0
    %4242 = vmatpush1.msra.mxu0 0.0
    %4243 = vmatprep.subr.mxu0 0.0
    %4244 = vmatpush1.msra.mxu0 0.0
    %4245 = vmatprep.subr.mxu0 0.0
    %4246 = vmatpush1.msra.mxu0 0.0
    %4247 = vmatprep.subr.mxu0 0.0
    %4248 = vmatpush1.msra.mxu0 0.0
    %4249 = vmatprep.subr.mxu0 0.0
    %4250 = vmatpush1.msra.mxu0 0.0
    %4251 = vmatprep.subr.mxu0 0.0
    %4252 = vmatpush1.msra.mxu0 0.0
    %4253 = vmatprep.subr.mxu0 0.0
    %4254 = vmatpush1.msra.mxu0 0.0
    %4255 = vmatprep.subr.mxu0 0.0
    %4256 = vmatpush1.msra.mxu0 0.0
    %4257 = vmatprep.subr.mxu0 0.0
    %4258 = vmatpush1.msra.mxu0 0.0
    %4259 = vmatprep.subr.mxu0 0.0
    %4260 = vmatpush1.msra.mxu0 0.0
    %4261 = vmatprep.subr.mxu0 0.0
    %4262 = vmatpush1.msra.mxu0 0.0
    %4263 = vmatprep.subr.mxu0 0.0
    %4264 = vmatpush1.msra.mxu0 0.0
    %4265 = vmatprep.subr.mxu0 0.0
    %4266 = vmatpush1.msra.mxu0 0.0
    %4267 = vmatprep.mubr.f32.mxu0 0.0
    %4268 = vmatmul.mubr.f32.gmra.mrb[0].mxu0 %v4201
    %v4269 = vpop.f32.mrb[0].mxu0
    %v4270 = vadd.f32 0.0, %v4269
    %v4271 = vpop.f32.mrb[0].mxu0
    %4272 = vdwg.mxu0
    %v4274 = vsel %vm758, %v3747, 0
    %4276 = vmatprep.subr.mxu0 0.0
    %4277 = vmatpush1.msra.mxu0 %v2310
    %4278 = vmatprep.subr.mxu0 0.0
    %4279 = vmatpush1.msra.mxu0 0.0
    %4280 = vmatprep.subr.mxu0 0.0
    %4281 = vmatpush1.msra.mxu0 0.0
    %4282 = vmatprep.subr.mxu0 0.0
    %4283 = vmatpush1.msra.mxu0 0.0
    %4284 = vmatprep.subr.mxu0 0.0
    %4285 = vmatpush1.msra.mxu0 0.0
    %4286 = vmatprep.subr.mxu0 0.0
    %4287 = vmatpush1.msra.mxu0 0.0
    %4288 = vmatprep.subr.mxu0 0.0
    %4289 = vmatpush1.msra.mxu0 0.0
    %4290 = vmatprep.subr.mxu0 0.0
    %4291 = vmatpush1.msra.mxu0 0.0
    %4292 = vmatprep.subr.mxu0 0.0
    %4293 = vmatpush1.msra.mxu0 0.0
    %4294 = vmatprep.subr.mxu0 0.0
    %4295 = vmatpush1.msra.mxu0 0.0
    %4296 = vmatprep.subr.mxu0 0.0
    %4297 = vmatpush1.msra.mxu0 0.0
    %4298 = vmatprep.subr.mxu0 0.0
    %4299 = vmatpush1.msra.mxu0 0.0
    %4300 = vmatprep.subr.mxu0 0.0
    %4301 = vmatpush1.msra.mxu0 0.0
    %4302 = vmatprep.subr.mxu0 0.0
    %4303 = vmatpush1.msra.mxu0 0.0
    %4304 = vmatprep.subr.mxu0 0.0
    %4305 = vmatpush1.msra.mxu0 0.0
    %4306 = vmatprep.subr.mxu0 0.0
    %4307 = vmatpush1.msra.mxu0 0.0
    %4308 = vmatprep.subr.mxu0 0.0
    %4309 = vmatpush1.msra.mxu0 0.0
    %4310 = vmatprep.subr.mxu0 0.0
    %4311 = vmatpush1.msra.mxu0 0.0
    %4312 = vmatprep.subr.mxu0 0.0
    %4313 = vmatpush1.msra.mxu0 0.0
    %4314 = vmatprep.subr.mxu0 0.0
    %4315 = vmatpush1.msra.mxu0 0.0
    %4316 = vmatprep.subr.mxu0 0.0
    %4317 = vmatpush1.msra.mxu0 0.0
    %4318 = vmatprep.subr.mxu0 0.0
    %4319 = vmatpush1.msra.mxu0 0.0
    %4320 = vmatprep.subr.mxu0 0.0
    %4321 = vmatpush1.msra.mxu0 0.0
    %4322 = vmatprep.subr.mxu0 0.0
    %4323 = vmatpush1.msra.mxu0 0.0
    %4324 = vmatprep.subr.mxu0 0.0
    %4325 = vmatpush1.msra.mxu0 0.0
    %4326 = vmatprep.subr.mxu0 0.0
    %4327 = vmatpush1.msra.mxu0 0.0
    %4328 = vmatprep.subr.mxu0 0.0
    %4329 = vmatpush1.msra.mxu0 0.0
    %4330 = vmatprep.subr.mxu0 0.0
    %4331 = vmatpush1.msra.mxu0 0.0
    %4332 = vmatprep.subr.mxu0 0.0
    %4333 = vmatpush1.msra.mxu0 0.0
    %4334 = vmatprep.subr.mxu0 0.0
    %4335 = vmatpush1.msra.mxu0 0.0
    %4336 = vmatprep.subr.mxu0 0.0
    %4337 = vmatpush1.msra.mxu0 0.0
    %4338 = vmatprep.subr.mxu0 0.0
    %4339 = vmatpush1.msra.mxu0 0.0
    %4340 = vmatprep.mubr.f32.mxu0 0.0
    %4341 = vmatmul.mubr.f32.gmra.mrb[0].mxu0 %v4274
    %v4342 = vpop.f32.mrb[0].mxu0
    %v4343 = vadd.f32 0.0, %v4342
    %v4344 = vpop.f32.mrb[0].mxu0
    %4345 = vdwg.mxu0
    %v4347 = vsel %vm758, %v3823, 0
    %4349 = vmatprep.subr.mxu0 0.0
    %4350 = vmatpush1.msra.mxu0 %v2386
    %4351 = vmatprep.subr.mxu0 0.0
    %4352 = vmatpush1.msra.mxu0 0.0
    %4353 = vmatprep.subr.mxu0 0.0
    %4354 = vmatpush1.msra.mxu0 0.0
    %4355 = vmatprep.subr.mxu0 0.0
    %4356 = vmatpush1.msra.mxu0 0.0
    %4357 = vmatprep.subr.mxu0 0.0
    %4358 = vmatpush1.msra.mxu0 0.0
    %4359 = vmatprep.subr.mxu0 0.0
    %4360 = vmatpush1.msra.mxu0 0.0
    %4361 = vmatprep.subr.mxu0 0.0
    %4362 = vmatpush1.msra.mxu0 0.0
    %4363 = vmatprep.subr.mxu0 0.0
    %4364 = vmatpush1.msra.mxu0 0.0
    %4365 = vmatprep.subr.mxu0 0.0
    %4366 = vmatpush1.msra.mxu0 0.0
    %4367 = vmatprep.subr.mxu0 0.0
    %4368 = vmatpush1.msra.mxu0 0.0
    %4369 = vmatprep.subr.mxu0 0.0
    %4370 = vmatpush1.msra.mxu0 0.0
    %4371 = vmatprep.subr.mxu0 0.0
    %4372 = vmatpush1.msra.mxu0 0.0
    %4373 = vmatprep.subr.mxu0 0.0
    %4374 = vmatpush1.msra.mxu0 0.0
    %4375 = vmatprep.subr.mxu0 0.0
    %4376 = vmatpush1.msra.mxu0 0.0
    %4377 = vmatprep.subr.mxu0 0.0
    %4378 = vmatpush1.msra.mxu0 0.0
    %4379 = vmatprep.subr.mxu0 0.0
    %4380 = vmatpush1.msra.mxu0 0.0
    %4381 = vmatprep.subr.mxu0 0.0
    %4382 = vmatpush1.msra.mxu0 0.0
    %4383 = vmatprep.subr.mxu0 0.0
    %4384 = vmatpush1.msra.mxu0 0.0
    %4385 = vmatprep.subr.mxu0 0.0
    %4386 = vmatpush1.msra.mxu0 0.0
    %4387 = vmatprep.subr.mxu0 0.0
    %4388 = vmatpush1.msra.mxu0 0.0
    %4389 = vmatprep.subr.mxu0 0.0
    %4390 = vmatpush1.msra.mxu0 0.0
    %4391 = vmatprep.subr.mxu0 0.0
    %4392 = vmatpush1.msra.mxu0 0.0
    %4393 = vmatprep.subr.mxu0 0.0
    %4394 = vmatpush1.msra.mxu0 0.0
    %4395 = vmatprep.subr.mxu0 0.0
    %4396 = vmatpush1.msra.mxu0 0.0
    %4397 = vmatprep.subr.mxu0 0.0
    %4398 = vmatpush1.msra.mxu0 0.0
    %4399 = vmatprep.subr.mxu0 0.0
    %4400 = vmatpush1.msra.mxu0 0.0
    %4401 = vmatprep.subr.mxu0 0.0
    %4402 = vmatpush1.msra.mxu0 0.0
    %4403 = vmatprep.subr.mxu0 0.0
    %4404 = vmatpush1.msra.mxu0 0.0
    %4405 = vmatprep.subr.mxu0 0.0
    %4406 = vmatpush1.msra.mxu0 0.0
    %4407 = vmatprep.subr.mxu0 0.0
    %4408 = vmatpush1.msra.mxu0 0.0
    %4409 = vmatprep.subr.mxu0 0.0
    %4410 = vmatpush1.msra.mxu0 0.0
    %4411 = vmatprep.subr.mxu0 0.0
    %4412 = vmatpush1.msra.mxu0 0.0
    %4413 = vmatprep.mubr.f32.mxu0 0.0
    %4414 = vmatmul.mubr.f32.gmra.mrb[0].mxu0 %v4347
    %v4415 = vpop.f32.mrb[0].mxu0
    %v4416 = vadd.f32 0.0, %v4415
    %v4417 = vpop.f32.mrb[0].mxu0
    %4418 = vdwg.mxu0
    %v4420 = vsel %vm758, %v3899, 0
    %4422 = vmatprep.subr.mxu0 0.0
    %4423 = vmatpush1.msra.mxu0 %v2462
    %4424 = vmatprep.subr.mxu0 0.0
    %4425 = vmatpush1.msra.mxu0 0.0
    %4426 = vmatprep.subr.mxu0 0.0
    %4427 = vmatpush1.msra.mxu0 0.0
    %4428 = vmatprep.subr.mxu0 0.0
    %4429 = vmatpush1.msra.mxu0 0.0
    %4430 = vmatprep.subr.mxu0 0.0
    %4431 = vmatpush1.msra.mxu0 0.0
    %4432 = vmatprep.subr.mxu0 0.0
    %4433 = vmatpush1.msra.mxu0 0.0
    %4434 = vmatprep.subr.mxu0 0.0
    %4435 = vmatpush1.msra.mxu0 0.0
    %4436 = vmatprep.subr.mxu0 0.0
    %4437 = vmatpush1.msra.mxu0 0.0
    %4438 = vmatprep.subr.mxu0 0.0
    %4439 = vmatpush1.msra.mxu0 0.0
    %4440 = vmatprep.subr.mxu0 0.0
    %4441 = vmatpush1.msra.mxu0 0.0
    %4442 = vmatprep.subr.mxu0 0.0
    %4443 = vmatpush1.msra.mxu0 0.0
    %4444 = vmatprep.subr.mxu0 0.0
    %4445 = vmatpush1.msra.mxu0 0.0
    %4446 = vmatprep.subr.mxu0 0.0
    %4447 = vmatpush1.msra.mxu0 0.0
    %4448 = vmatprep.subr.mxu0 0.0
    %4449 = vmatpush1.msra.mxu0 0.0
    %4450 = vmatprep.subr.mxu0 0.0
    %4451 = vmatpush1.msra.mxu0 0.0
    %4452 = vmatprep.subr.mxu0 0.0
    %4453 = vmatpush1.msra.mxu0 0.0
    %4454 = vmatprep.subr.mxu0 0.0
    %4455 = vmatpush1.msra.mxu0 0.0
    %4456 = vmatprep.subr.mxu0 0.0
    %4457 = vmatpush1.msra.mxu0 0.0
    %4458 = vmatprep.subr.mxu0 0.0
    %4459 = vmatpush1.msra.mxu0 0.0
    %4460 = vmatprep.subr.mxu0 0.0
    %4461 = vmatpush1.msra.mxu0 0.0
    %4462 = vmatprep.subr.mxu0 0.0
    %4463 = vmatpush1.msra.mxu0 0.0
    %4464 = vmatprep.subr.mxu0 0.0
    %4465 = vmatpush1.msra.mxu0 0.0
    %4466 = vmatprep.subr.mxu0 0.0
    %4467 = vmatpush1.msra.mxu0 0.0
    %4468 = vmatprep.subr.mxu0 0.0
    %4469 = vmatpush1.msra.mxu0 0.0
    %4470 = vmatprep.subr.mxu0 0.0
    %4471 = vmatpush1.msra.mxu0 0.0
    %4472 = vmatprep.subr.mxu0 0.0
    %4473 = vmatpush1.msra.mxu0 0.0
    %4474 = vmatprep.subr.mxu0 0.0
    %4475 = vmatpush1.msra.mxu0 0.0
    %4476 = vmatprep.subr.mxu0 0.0
    %4477 = vmatpush1.msra.mxu0 0.0
    %4478 = vmatprep.subr.mxu0 0.0
    %4479 = vmatpush1.msra.mxu0 0.0
    %4480 = vmatprep.subr.mxu0 0.0
    %4481 = vmatpush1.msra.mxu0 0.0
    %4482 = vmatprep.subr.mxu0 0.0
    %4483 = vmatpush1.msra.mxu0 0.0
    %4484 = vmatprep.subr.mxu0 0.0
    %4485 = vmatpush1.msra.mxu0 0.0
    %4486 = vmatprep.mubr.f32.mxu0 0.0
    %4487 = vmatmul.mubr.f32.gmra.mrb[0].mxu0 %v4420
    %v4488 = vpop.f32.mrb[0].mxu0
    %v4489 = vadd.f32 0.0, %v4488
    %v4490 = vpop.f32.mrb[0].mxu0
    %4491 = vdwg.mxu0
    %v4493 = vsel %vm758, %v3975, 0
    %4495 = vmatprep.subr.mxu0 0.0
    %4496 = vmatpush1.msra.mxu0 %v2538
    %4497 = vmatprep.subr.mxu0 0.0
    %4498 = vmatpush1.msra.mxu0 0.0
    %4499 = vmatprep.subr.mxu0 0.0
    %4500 = vmatpush1.msra.mxu0 0.0
    %4501 = vmatprep.subr.mxu0 0.0
    %4502 = vmatpush1.msra.mxu0 0.0
    %4503 = vmatprep.subr.mxu0 0.0
    %4504 = vmatpush1.msra.mxu0 0.0
    %4505 = vmatprep.subr.mxu0 0.0
    %4506 = vmatpush1.msra.mxu0 0.0
    %4507 = vmatprep.subr.mxu0 0.0
    %4508 = vmatpush1.msra.mxu0 0.0
    %4509 = vmatprep.subr.mxu0 0.0
    %4510 = vmatpush1.msra.mxu0 0.0
    %4511 = vmatprep.subr.mxu0 0.0
    %4512 = vmatpush1.msra.mxu0 0.0
    %4513 = vmatprep.subr.mxu0 0.0
    %4514 = vmatpush1.msra.mxu0 0.0
    %4515 = vmatprep.subr.mxu0 0.0
    %4516 = vmatpush1.msra.mxu0 0.0
    %4517 = vmatprep.subr.mxu0 0.0
    %4518 = vmatpush1.msra.mxu0 0.0
    %4519 = vmatprep.subr.mxu0 0.0
    %4520 = vmatpush1.msra.mxu0 0.0
    %4521 = vmatprep.subr.mxu0 0.0
    %4522 = vmatpush1.msra.mxu0 0.0
    %4523 = vmatprep.subr.mxu0 0.0
    %4524 = vmatpush1.msra.mxu0 0.0
    %4525 = vmatprep.subr.mxu0 0.0
    %4526 = vmatpush1.msra.mxu0 0.0
    %4527 = vmatprep.subr.mxu0 0.0
    %4528 = vmatpush1.msra.mxu0 0.0
    %4529 = vmatprep.subr.mxu0 0.0
    %4530 = vmatpush1.msra.mxu0 0.0
    %4531 = vmatprep.subr.mxu0 0.0
    %4532 = vmatpush1.msra.mxu0 0.0
    %4533 = vmatprep.subr.mxu0 0.0
    %4534 = vmatpush1.msra.mxu0 0.0
    %4535 = vmatprep.subr.mxu0 0.0
    %4536 = vmatpush1.msra.mxu0 0.0
    %4537 = vmatprep.subr.mxu0 0.0
    %4538 = vmatpush1.msra.mxu0 0.0
    %4539 = vmatprep.subr.mxu0 0.0
    %4540 = vmatpush1.msra.mxu0 0.0
    %4541 = vmatprep.subr.mxu0 0.0
    %4542 = vmatpush1.msra.mxu0 0.0
    %4543 = vmatprep.subr.mxu0 0.0
    %4544 = vmatpush1.msra.mxu0 0.0
    %4545 = vmatprep.subr.mxu0 0.0
    %4546 = vmatpush1.msra.mxu0 0.0
    %4547 = vmatprep.subr.mxu0 0.0
    %4548 = vmatpush1.msra.mxu0 0.0
    %4549 = vmatprep.subr.mxu0 0.0
    %4550 = vmatpush1.msra.mxu0 0.0
    %4551 = vmatprep.subr.mxu0 0.0
    %4552 = vmatpush1.msra.mxu0 0.0
    %4553 = vmatprep.subr.mxu0 0.0
    %4554 = vmatpush1.msra.mxu0 0.0
    %4555 = vmatprep.subr.mxu0 0.0
    %4556 = vmatpush1.msra.mxu0 0.0
    %4557 = vmatprep.subr.mxu0 0.0
    %4558 = vmatpush1.msra.mxu0 0.0
    %4559 = vmatprep.mubr.f32.mxu0 0.0
    %4560 = vmatmul.mubr.f32.gmra.mrb[0].mxu0 %v4493
    %v4561 = vpop.f32.mrb[0].mxu0
    %v4562 = vadd.f32 0.0, %v4561
    %v4563 = vpop.f32.mrb[0].mxu0
    %4564 = vdwg.mxu0
    %v4566 = vsel %vm758, %v4051, 0
    %4568 = vmatprep.subr.mxu0 0.0
    %4569 = vmatpush1.msra.mxu0 %v2614
    %4570 = vmatprep.subr.mxu0 0.0
    %4571 = vmatpush1.msra.mxu0 0.0
    %4572 = vmatprep.subr.mxu0 0.0
    %4573 = vmatpush1.msra.mxu0 0.0
    %4574 = vmatprep.subr.mxu0 0.0
    %4575 = vmatpush1.msra.mxu0 0.0
    %4576 = vmatprep.subr.mxu0 0.0
    %4577 = vmatpush1.msra.mxu0 0.0
    %4578 = vmatprep.subr.mxu0 0.0
    %4579 = vmatpush1.msra.mxu0 0.0
    %4580 = vmatprep.subr.mxu0 0.0
    %4581 = vmatpush1.msra.mxu0 0.0
    %4582 = vmatprep.subr.mxu0 0.0
    %4583 = vmatpush1.msra.mxu0 0.0
    %4584 = vmatprep.subr.mxu0 0.0
    %4585 = vmatpush1.msra.mxu0 0.0
    %4586 = vmatprep.subr.mxu0 0.0
    %4587 = vmatpush1.msra.mxu0 0.0
    %4588 = vmatprep.subr.mxu0 0.0
    %4589 = vmatpush1.msra.mxu0 0.0
    %4590 = vmatprep.subr.mxu0 0.0
    %4591 = vmatpush1.msra.mxu0 0.0
    %4592 = vmatprep.subr.mxu0 0.0
    %4593 = vmatpush1.msra.mxu0 0.0
    %4594 = vmatprep.subr.mxu0 0.0
    %4595 = vmatpush1.msra.mxu0 0.0
    %4596 = vmatprep.subr.mxu0 0.0
    %4597 = vmatpush1.msra.mxu0 0.0
    %4598 = vmatprep.subr.mxu0 0.0
    %4599 = vmatpush1.msra.mxu0 0.0
    %4600 = vmatprep.subr.mxu0 0.0
    %4601 = vmatpush1.msra.mxu0 0.0
    %4602 = vmatprep.subr.mxu0 0.0
    %4603 = vmatpush1.msra.mxu0 0.0
    %4604 = vmatprep.subr.mxu0 0.0
    %4605 = vmatpush1.msra.mxu0 0.0
    %4606 = vmatprep.subr.mxu0 0.0
    %4607 = vmatpush1.msra.mxu0 0.0
    %4608 = vmatprep.subr.mxu0 0.0
    %4609 = vmatpush1.msra.mxu0 0.0
    %4610 = vmatprep.subr.mxu0 0.0
    %4611 = vmatpush1.msra.mxu0 0.0
    %4612 = vmatprep.subr.mxu0 0.0
    %4613 = vmatpush1.msra.mxu0 0.0
    %4614 = vmatprep.subr.mxu0 0.0
    %4615 = vmatpush1.msra.mxu0 0.0
    %4616 = vmatprep.subr.mxu0 0.0
    %4617 = vmatpush1.msra.mxu0 0.0
    %4618 = vmatprep.subr.mxu0 0.0
    %4619 = vmatpush1.msra.mxu0 0.0
    %4620 = vmatprep.subr.mxu0 0.0
    %4621 = vmatpush1.msra.mxu0 0.0
    %4622 = vmatprep.subr.mxu0 0.0
    %4623 = vmatpush1.msra.mxu0 0.0
    %4624 = vmatprep.subr.mxu0 0.0
    %4625 = vmatpush1.msra.mxu0 0.0
    %4626 = vmatprep.subr.mxu0 0.0
    %4627 = vmatpush1.msra.mxu0 0.0
    %4628 = vmatprep.subr.mxu0 0.0
    %4629 = vmatpush1.msra.mxu0 0.0
    %4630 = vmatprep.subr.mxu0 0.0
    %4631 = vmatpush1.msra.mxu0 0.0
    %4632 = vmatprep.mubr.f32.mxu0 0.0
    %4633 = vmatmul.mubr.f32.gmra.mrb[0].mxu0 %v4566
    %v4634 = vpop.f32.mrb[0].mxu0
    %v4635 = vadd.f32 0.0, %v4634
    %v4636 = vpop.f32.mrb[0].mxu0
    %4637 = vdwg.mxu0
    %v4638 = vsel %vm2686, %v4124, 0.0
    %v4639 = vsel %vm2686, %v4197, 0.0
    %v4640 = vadd.f32 %v4638, %v4639
    %v4641 = vsel %vm2686, %v4270, 0.0
    %v4642 = vadd.f32 %v4640, %v4641
    %v4643 = vsel %vm2686, %v4343, 0.0
    %v4644 = vadd.f32 %v4642, %v4643
    %v4645 = vsel %vm2686, %v4416, 0.0
    %v4646 = vadd.f32 %v4644, %v4645
    %v4647 = vsel %vm2686, %v4489, 0.0
    %v4648 = vadd.f32 %v4646, %v4647
    %v4649 = vsel %vm2686, %v4562, 0.0
    %v4650 = vadd.f32 %v4648, %v4649
    %v4651 = vsel %vm2686, %v4635, 0.0
    %v4652 = vadd.f32 %v4650, %v4651
    %v4653 = vadd.f32 %v4652, %v27
    %v4654 = vsel %vm2686, %v4653, 0.0
    %4655 = vadd.xlane.f32.xlu0 %v4654
    %v4656 = vpop.xlane.xlu0 %4655
    %v4657 = vmul.f32 %v4656, %v2706
    %v4658 = vsub.f32 %v4653, %v4657
    %v4659 = vmul.f32 %v4658, %v4658
    %v4660 = vsel %vm2686, %v4659, 0.0
    %4661 = vadd.xlane.f32.xlu0 %v4660
    %v4662 = vpop.xlane.xlu0 %4661
    %v4663 = vmul.f32 %v4662, %v2706
    %v4664 = vadd.f32 %v4663, 1e-05
    %v4665 = vrsqrt.pop %v4664
    %v4666 = vmul.f32 %v4658, %v4665
    %v4667 = vld [vmem:[%s4] sm:$0x1]
    %v4669 = vlaneseq
    %v4670 = vshrl.u32 %v4669, 7
    %v4671 = vsub.s32 0, %v4670
    %v4672 = vrot.slane %v4667, %v4671
    %v4674 = vmul.f32 %v4666, %v4672
    %v4675 = vld [vmem:[%s5] sm:$0x1]
    %v4677 = vlaneseq
    %v4678 = vshrl.u32 %v4677, 7
    %v4679 = vsub.s32 0, %v4678
    %v4680 = vrot.slane %v4675, %v4679
    %v4682 = vadd.f32 %v4674, %v4680
    %4683 = vst.msk [vmem:[#allocation2 + $0x8] sm:$0xff] %vm2686, %v4682
    // Predicated region
    $region26: #{tpu_custom_call.1} parent=1 // pred_check
      _
    $region27: #{tpu_custom_call.1} parent=1 // pred_check_branch
      %4685 = sbr.rel (0) target = $region29
    $region28: #{tpu_custom_call.1} parent=1 // pred_region
      %s4687 = ssub.s32 256, 256
      %4688 = vsyncadd [#allocation3], %s4687
      %s4689 = sshll.u32 [#allocation2], 4
      %s4690 = int_to_ptr.vmem [resolvable:$true] %s4689
      %4695 = dma.vmem_to_hbm [thread:$0]  %s4690, 256, %s6, [#allocation3], 128, 128, 8
    $region29: #{tpu_custom_call.1} parent=1 // pred_fallthru
      _
    // Predicated region
    $region30: #{tpu_custom_call.1} parent=1 // pred_check
      _
    $region31: #{tpu_custom_call.1} parent=1 // pred_check_branch
      %4697 = sbr.rel (0) target = $region33
    $region32: #{tpu_custom_call.1} parent=1 // pred_region
      %4698 = dma.done [#allocation3], 256
    $region33: #{tpu_custom_call.1} parent=1 // pred_fallthru
      _
    %4699 = vsyncpa [#allocation3], 1

</llo_original>
